<compile_context>
chip_gen: v7x
topology: tpu7x:2x2x1
jax: 0.10.0
libtpu: 0.0.40
codegen_flags: <defaults>
</compile_context>

<pallas_src>
import functools
import jax
import jax.numpy as jnp
from jax import lax
from jax.experimental import pallas as pl
from jax.experimental.pallas import tpu as pltpu

EPS = 1e-5  # nn.LayerNorm default eps


def _gelu(v):
    # exact (erf-based) GELU, matching torch.nn.GELU default
    return 0.5 * v * (1.0 + lax.erf(v / jnp.sqrt(2.0).astype(v.dtype)))


def _layernorm(v, gamma, beta):
    mu = jnp.mean(v, axis=-1, keepdims=True)
    var = jnp.mean((v - mu) ** 2, axis=-1, keepdims=True)
    return (v - mu) * lax.rsqrt(var + EPS) * gamma + beta


def _vmem_capacity_bytes():
    try:
        return int(pltpu.get_tpu_info().vmem_capacity_bytes)
    except Exception:
        return 64 * 1024 * 1024  # conservative fallback (v7x per-core physical)


# ----------------------------------------------------------------------------
# Kernel A: fused LN -> GELU -> Linear(d_in, d_h) -> LN -> GELU -> *mask
# rows = flattened (N*L*L) positions; output stored bf16 (one HBM write).
# ----------------------------------------------------------------------------
def seq1_kernel(x_ref, m_ref, g1_ref, b1_ref, w1_ref, bias1_ref, g2_ref, b2_ref,
                o_ref):
    x = x_ref[...].astype(jnp.float32)
    h = _gelu(_layernorm(x, g1_ref[...], b1_ref[...]))
    h = jnp.dot(h.astype(jnp.bfloat16), w1_ref[...],
                preferred_element_type=jnp.float32) + bias1_ref[...]
    h = _gelu(_layernorm(h, g2_ref[...], b2_ref[...]))
    h = h * m_ref[...].astype(jnp.float32)    # MaskedConv2d's pre-conv mask, fused here
    o_ref[...] = h.astype(o_ref.dtype)        # bf16


def _pick_seq1_tile(M, d_in, d_h, budget):
    """Largest row tile for kernel A whose footprint fits the per-chip budget."""
    for tm in (2048, 1024, 512, 256, 128):
        if tm > M:
            continue
        need = (2 * tm * d_in * 4              # double-buffered f32 x blocks
                + 2 * tm * 2                   # double-buffered bf16 mask blocks
                + 2 * tm * d_h * 2             # double-buffered bf16 out blocks
                + 2 * d_in * d_h * 2           # w1 (bf16)
                + 4 * tm * max(d_in, d_h) * 4)  # headroom for f32 temporaries
        if need <= budget:
            return tm
    return min(M, 128)


def run_seq1(x2d, mask2d_bf16, g1, b1, w1_bf16, bias1, g2, b2, *, vmem_cap):
    M, d_in = x2d.shape
    d_h = w1_bf16.shape[1]
    tm = _pick_seq1_tile(M, d_in, d_h, budget=int(0.45 * vmem_cap))
    full = lambda i: (0, 0)
    return pl.pallas_call(
        seq1_kernel,
        out_shape=jax.ShapeDtypeStruct((M, d_h), jnp.bfloat16),
        grid=(pl.cdiv(M, tm),),
        in_specs=[
            pl.BlockSpec((tm, d_in), lambda i: (i, 0)),
            pl.BlockSpec((tm, 1), lambda i: (i, 0)),
            pl.BlockSpec((1, d_in), full),
            pl.BlockSpec((1, d_in), full),
            pl.BlockSpec((d_in, d_h), full),
            pl.BlockSpec((1, d_h), full),
            pl.BlockSpec((1, d_h), full),
            pl.BlockSpec((1, d_h), full),
        ],
        out_specs=pl.BlockSpec((tm, d_h), lambda i: (i, 0)),
        compiler_params=pltpu.CompilerParams(
            dimension_semantics=("parallel",),
            vmem_limit_bytes=int(0.8 * vmem_cap)),
    )(x2d, mask2d_bf16, g1.reshape(1, -1), b1.reshape(1, -1), w1_bf16,
      bias1.reshape(1, -1), g2.reshape(1, -1), b2.reshape(1, -1))


# ----------------------------------------------------------------------------
# Kernel B: row-tiled dilated "same" conv (halo rows via coalesced manual DMA)
#           fused with sequence2 (LN -> GELU -> Linear) and the residual add.
# ----------------------------------------------------------------------------
def conv_seq2_kernel(h_hbm, x_ref, wc_ref, bc_ref, g3_ref, b3_ref, w2_ref, bias2_ref,
                     o_ref, hbuf, acc, sems, *, L, TL, k, dilation, pad, d_h):
    n = pl.program_id(0)            # sample
    t = pl.program_id(1)            # output-row tile
    n_tiles = pl.num_programs(1)

    # hbuf holds TL + 2*pad un-padded-width rows; row r <-> global image row
    # t*TL - pad + r (zeros if that row is outside [0, L)).
    def body_cp():
        return pltpu.make_async_copy(h_hbm.at[n, pl.ds(t * TL, TL)],
                                     hbuf.at[pl.ds(pad, TL)], sems.at[0])

    def top_cp():
        return pltpu.make_async_copy(h_hbm.at[n, pl.ds(t * TL - pad, pad)],
                                     hbuf.at[pl.ds(0, pad)], sems.at[1])

    def bot_cp():
        return pltpu.make_async_copy(h_hbm.at[n, pl.ds((t + 1) * TL, pad)],
                                     hbuf.at[pl.ds(TL + pad, pad)], sems.at[2])

    # ---- issue the (at most 3) coalesced halo DMAs ----
    body_cp().start()
    if pad > 0:
        @pl.when(t > 0)
        def _():
            top_cp().start()

        @pl.when(t < n_tiles - 1)
        def _():
            bot_cp().start()

        # ---- zero only the out-of-range halo rows, overlapping the DMAs ----
        @pl.when(t == 0)
        def _():
            hbuf[pl.ds(0, pad), :, :] = jnp.zeros((pad, L, d_h), hbuf.dtype)

        @pl.when(t == n_tiles - 1)
        def _():
            hbuf[pl.ds(TL + pad, pad), :, :] = jnp.zeros((pad, L, d_h), hbuf.dtype)

    body_cp().wait()
    if pad > 0:
        @pl.when(t > 0)
        def _():
            top_cp().wait()

        @pl.when(t < n_tiles - 1)
        def _():
            bot_cp().wait()

    # ---- dilated conv as k*k tap matmuls ----
    # kj outer: build one width-shifted slab per kj (left/right zero padding is
    # produced in-value, never DMA'd/stored); ki inner: cheap leading-axis slice.
    Hh = TL + 2 * pad
    first = True
    for kj in range(k):
        zl = max(0, pad - kj * dilation)        # left zero width
        zr = max(0, kj * dilation - pad)        # right zero width
        s0 = max(0, kj * dilation - pad)        # start column in the image
        parts = []
        if zl > 0:
            parts.append(jnp.zeros((Hh, zl, d_h), hbuf.dtype))
        parts.append(hbuf[:, s0:s0 + (L - zl - zr), :])
        if zr > 0:
            parts.append(jnp.zeros((Hh, zr, d_h), hbuf.dtype))
        slab = parts[0] if len(parts) == 1 else jnp.concatenate(parts, axis=1)
        for ki in range(k):
            patch = slab[ki * dilation: ki * dilation + TL]          # (TL, L, d_h)
            contrib = jnp.dot(patch.reshape(TL * L, d_h), wc_ref[ki * k + kj],
                              preferred_element_type=jnp.float32)
            if first:
                acc[...] = contrib      # no zero-init pass over the accumulator
                first = False
            else:
                acc[...] += contrib

    # ---- sequence2 + residual, fused on the tile before writeback ----
    hcv = acc[...] + bc_ref[...]
    y = _gelu(_layernorm(hcv, g3_ref[...], b3_ref[...]))
    y = jnp.dot(y.astype(jnp.bfloat16), w2_ref[...],
                preferred_element_type=jnp.float32) + bias2_ref[...]
    xres = x_ref[...].reshape(TL * L, -1).astype(jnp.float32)
    o_ref[...] = (xres + y).reshape(TL, L, -1).astype(o_ref.dtype)


def _pick_row_tile(L, pad, d_h, d_in, d_out, k, budget):
    """Largest divisor of L (with TL >= pad, or TL == L) fitting the VMEM budget."""
    cands = [TL for TL in range(L, 0, -1)
             if L % TL == 0 and (TL >= pad or TL == L)]
    for TL in cands:
        Hh = TL + 2 * pad
        need = (Hh * L * d_h * 2                    # halo'd bf16 tile (scratch)
                + TL * L * d_h * 4                  # f32 conv accumulator (scratch)
                + 2 * Hh * L * d_h * 2              # per-kj slab temporaries (headroom)
                + 2 * TL * L * d_in * 4             # x residual block (double-buffered)
                + 2 * TL * L * d_out * 4            # output block (double-buffered)
                + 2 * k * k * d_h * d_h * 2         # conv weights (double-buffered, bf16)
                + 2 * d_h * d_out * 2               # w2 (double-buffered, bf16)
                + 2 * TL * L * max(d_h, d_out) * 4)  # seq2 f32 temporaries
        if need <= budget:
            return TL
    return cands[-1]


def run_conv_seq2(h, x, wc_taps_bf16, bc, g3, b3, w2_bf16, bias2, *,
                  L, k, dilation, pad, vmem_cap, row_tile=None):
    N = x.shape[0]
    d_in = x.shape[-1]
    d_h = wc_taps_bf16.shape[-1]
    d_out = w2_bf16.shape[1]
    if row_tile is None:
        TL = _pick_row_tile(L, pad, d_h, d_in, d_out, k, budget=int(0.5 * vmem_cap))
    else:
        TL = row_tile
    assert L % TL == 0, (L, TL)
    assert TL >= pad or TL == L, (TL, pad)

    kern = functools.partial(conv_seq2_kernel, L=L, TL=TL, k=k,
                             dilation=dilation, pad=pad, d_h=d_h)
    fullp = lambda n, t: (0, 0)
    return pl.pallas_call(
        kern,
        out_shape=jax.ShapeDtypeStruct((N, L, L, d_out), x.dtype),
        grid=(N, L // TL),
        in_specs=[
            pl.BlockSpec(memory_space=pl.ANY),                         # h in HBM (bf16)
            pl.BlockSpec((None, TL, L, d_in), lambda n, t: (n, t, 0, 0)),
            pl.BlockSpec((k * k, d_h, d_h), lambda n, t: (0, 0, 0)),
            pl.BlockSpec((1, d_h), fullp),
            pl.BlockSpec((1, d_h), fullp),
            pl.BlockSpec((1, d_h), fullp),
            pl.BlockSpec((d_h, d_out), fullp),
            pl.BlockSpec((1, d_out), fullp),
        ],
        out_specs=pl.BlockSpec((None, TL, L, d_out), lambda n, t: (n, t, 0, 0)),
        scratch_shapes=[
            pltpu.VMEM((TL + 2 * pad, L, d_h), jnp.bfloat16),  # halo'd row window
            pltpu.VMEM((TL * L, d_h), jnp.float32),            # conv accumulator
            pltpu.SemaphoreType.DMA((3,)),                     # body / top / bottom
        ],
        compiler_params=pltpu.CompilerParams(
            dimension_semantics=("parallel", "parallel"),
            vmem_limit_bytes=int(0.8 * vmem_cap)),
    )(h, x, wc_taps_bf16, bc.reshape(1, -1), g3.reshape(1, -1), b3.reshape(1, -1),
      w2_bf16, bias2.reshape(1, -1))


# ----------------------------------------------------------------------------
# Full ByteNetBlock2d forward
# ----------------------------------------------------------------------------
def bytenet_block2d_forward(x, input_mask, P, *, kernel_size, dilation,
                            groups=1, row_tile=None):
    # TODO(synk): groups > 1 (depth-wise) path of MaskedConv2d is not implemented.
    assert groups == 1
    N, L, L2, d_in = x.shape
    assert L2 == L
    d_h = P["w1"].shape[1]
    d_out = P["w2"].shape[1]
    assert d_out == d_in, "residual add requires d_in == d_out (as in the module)"
    k = kernel_size
    pad = dilation * (k - 1) // 2
    assert 2 * pad == dilation * (k - 1), "need odd effective kernel for same-size output"

    vmem_cap = _vmem_capacity_bytes()
    M = N * L * L
    if input_mask is None:
        input_mask = jnp.ones((N, L, L, 1), jnp.float32)

    # bf16 weights -> single-pass MXU matmuls (f32 accumulation in-kernel).
    # TODO(synk): channel counts < 128 lanes leave MXU lanes / vregs underused;
    # padding channels to 128 would need masked LayerNorm statistics (model level).
    w1 = P["w1"].astype(jnp.bfloat16)
    wc = P["wc"].reshape(k * k, d_h, d_h).astype(jnp.bfloat16)
    w2 = P["w2"].astype(jnp.bfloat16)

    # Kernel A: sequence1 + mask, hidden activation written once (bf16).
    h = run_seq1(x.reshape(M, d_in),
                 input_mask.reshape(M, 1).astype(jnp.bfloat16),
                 P["g1"], P["b1"], w1, P["bias1"], P["g2"], P["b2"],
                 vmem_cap=vmem_cap)
    h = h.reshape(N, L, L, d_h)

    # Kernel B: conv (halo rows via coalesced DMA) + sequence2 + residual.
    # TODO(synk): structural option — fuse seq1 into this kernel (recompute on the
    # halo rows) to drop h from HBM entirely.
    return run_conv_seq2(h, x, wc, P["bc"], P["g3"], P["b3"], w2, P["bias2"],
                         L=L, k=k, dilation=dilation, pad=pad,
                         vmem_cap=vmem_cap, row_tile=row_tile)


# ----------------------------------------------------------------------------
# Pure-JAX reference (full f32) for verification
# ----------------------------------------------------------------------------
def ref_forward(x, input_mask, P, *, kernel_size, dilation):
    def ln(v, g, b):
        mu = jnp.mean(v, -1, keepdims=True)
        var = jnp.mean((v - mu) ** 2, -1, keepdims=True)
        return (v - mu) / jnp.sqrt(var + EPS) * g + b

    def gelu(v):
        return 0.5 * v * (1.0 + lax.erf(v / jnp.sqrt(2.0)))

    h = gelu(ln(x, P["g1"], P["b1"]))
    h = jnp.einsum("nijc,cd->nijd", h, P["w1"],
                   precision=lax.Precision.HIGHEST) + P["bias1"]
    h = gelu(ln(h, P["g2"], P["b2"]))
    if input_mask is not None:
        h = h * input_mask
    pad = dilation * (kernel_size - 1) // 2
    h = lax.conv_general_dilated(
        h, P["wc"], window_strides=(1, 1), padding=[(pad, pad), (pad, pad)],
        rhs_dilation=(dilation, dilation),
        dimension_numbers=("NHWC", "HWIO", "NHWC"),
        precision=lax.Precision.HIGHEST) + P["bc"]
    y = gelu(ln(h, P["g3"], P["b3"]))
    y = jnp.einsum("nijc,cd->nijd", y, P["w2"],
                   precision=lax.Precision.HIGHEST) + P["bias2"]
    return x + y


if __name__ == "__main__":
    # small shapes consistent with the module (residual requires d_in == d_out)
    N, L = 2, 16
    d_in, d_h, d_out = 16, 32, 16
    kernel_size, dilation = 3, 2        # dilation=2 exercises the halo/padding path

    key = jax.random.PRNGKey(0)
    ks = jax.random.split(key, 14)

    x = jax.random.normal(ks[0], (N, L, L, d_in), jnp.float32)
    input_mask = (jax.random.uniform(ks[1], (N, L, L, 1)) > 0.2).astype(jnp.float32)

    P = {
        # sequence1: LN(d_in), Linear(d_in, d_h), LN(d_h)
        "g1": 1.0 + 0.1 * jax.random.normal(ks[2], (d_in,), jnp.float32),
        "b1": 0.1 * jax.random.normal(ks[3], (d_in,), jnp.float32),
        "w1": jax.random.normal(ks[4], (d_in, d_h), jnp.float32) / jnp.sqrt(d_in),
        "bias1": 0.1 * jax.random.normal(ks[5], (d_h,), jnp.float32),
        "g2": 1.0 + 0.1 * jax.random.normal(ks[6], (d_h,), jnp.float32),
        "b2": 0.1 * jax.random.normal(ks[7], (d_h,), jnp.float32),
        # MaskedConv2d(d_h, d_h, k, dilation): weight HWIO, bias (d_h,)
        "wc": jax.random.normal(ks[8], (kernel_size, kernel_size, d_h, d_h),
                                jnp.float32) / jnp.sqrt(d_h * kernel_size * kernel_size),
        "bc": 0.1 * jax.random.normal(ks[9], (d_h,), jnp.float32),
        # sequence2: LN(d_h), Linear(d_h, d_out)
        "g3": 1.0 + 0.1 * jax.random.normal(ks[10], (d_h,), jnp.float32),
        "b3": 0.1 * jax.random.normal(ks[11], (d_h,), jnp.float32),
        "w2": jax.random.normal(ks[12], (d_h, d_out), jnp.float32) / jnp.sqrt(d_h),
        "bias2": 0.1 * jax.random.normal(ks[13], (d_out,), jnp.float32),
    }

    # row_tile=8 forces two row-tiles per image so border (zero-pad) and interior
    # (halo DMA from the neighbouring tile) paths are both exercised.
    out = bytenet_block2d_forward(x, input_mask, P, kernel_size=kernel_size,
                                  dilation=dilation, row_tile=8)
    out = jax.block_until_ready(out)

    ref = ref_forward(x, input_mask, P, kernel_size=kernel_size, dilation=dilation)
    assert out.shape == (N, L, L, d_out), out.shape
    # bf16 single-pass MXU matmuls + bf16 hidden activation -> loose-ish tolerance
    assert jnp.allclose(out, ref, rtol=5e-2, atol=5e-2), \
        float(jnp.max(jnp.abs(out - ref)))

    print("KERNEL_OK")
</pallas_src>

<mosaic_0001>
module attributes {stable_mosaic.version = 11 : i64} {
  func.func @seq1_kernel(%arg0: i32, %arg1: memref<512x16xf32, #tpu.memory_space<vmem>>, %arg2: memref<512x1xbf16, #tpu.memory_space<vmem>>, %arg3: memref<1x16xf32, #tpu.memory_space<vmem>>, %arg4: memref<1x16xf32, #tpu.memory_space<vmem>>, %arg5: memref<16x32xbf16, #tpu.memory_space<vmem>>, %arg6: memref<1x32xf32, #tpu.memory_space<vmem>>, %arg7: memref<1x32xf32, #tpu.memory_space<vmem>>, %arg8: memref<1x32xf32, #tpu.memory_space<vmem>>, %arg9: memref<512x32xbf16, #tpu.memory_space<vmem>>) attributes {dimension_semantics = [#tpu.dimension_semantics<parallel>], iteration_bounds = array<i64: 1>, scalar_prefetch = 0 : i64, scratch_operands = 0 : i64, tpu.core_type = #tpu.core_type<tc>, window_params = [{transform_indices = @transform_0, window_bounds = array<i64: 512, 16>}, {transform_indices = @transform_1, window_bounds = array<i64: 512, 1>}, {pipeline_mode = #tpu.pipeline_mode<synchronous>, transform_indices = @transform_2, window_bounds = array<i64: 1, 16>}, {pipeline_mode = #tpu.pipeline_mode<synchronous>, transform_indices = @transform_3, window_bounds = array<i64: 1, 16>}, {pipeline_mode = #tpu.pipeline_mode<synchronous>, transform_indices = @transform_4, window_bounds = array<i64: 16, 32>}, {pipeline_mode = #tpu.pipeline_mode<synchronous>, transform_indices = @transform_5, window_bounds = array<i64: 1, 32>}, {pipeline_mode = #tpu.pipeline_mode<synchronous>, transform_indices = @transform_6, window_bounds = array<i64: 1, 32>}, {pipeline_mode = #tpu.pipeline_mode<synchronous>, transform_indices = @transform_7, window_bounds = array<i64: 1, 32>}, {transform_indices = @transform_8, window_bounds = array<i64: 512, 32>}]} {
    %c0 = arith.constant 0 : index
    %c0_0 = arith.constant 0 : index
    %0 = vector.load %arg1[%c0, %c0_0] : memref<512x16xf32, #tpu.memory_space<vmem>>, vector<512x16xf32>
    %c0_1 = arith.constant 0 : index
    %c0_2 = arith.constant 0 : index
    %1 = vector.load %arg3[%c0_1, %c0_2] : memref<1x16xf32, #tpu.memory_space<vmem>>, vector<1x16xf32>
    %c0_3 = arith.constant 0 : index
    %c0_4 = arith.constant 0 : index
    %2 = vector.load %arg4[%c0_3, %c0_4] : memref<1x16xf32, #tpu.memory_space<vmem>>, vector<1x16xf32>
    %cst = arith.constant dense<0.000000e+00> : vector<512xf32>
    %3 = vector.multi_reduction <add>, %0, %cst [1] : vector<512x16xf32> to vector<512xf32>
    %4 = vector.shape_cast %3 : vector<512xf32> to vector<512x1xf32>
    %cst_5 = arith.constant 1.600000e+01 : f32
    %5 = vector.broadcast %cst_5 : f32 to vector<512x1xf32>
    %6 = arith.divf %4, %5 : vector<512x1xf32>
    %7 = vector.broadcast %6 : vector<512x1xf32> to vector<512x16xf32>
    %8 = arith.subf %0, %7 : vector<512x16xf32>
    %9 = arith.mulf %8, %8 : vector<512x16xf32>
    %cst_6 = arith.constant dense<0.000000e+00> : vector<512xf32>
    %10 = vector.multi_reduction <add>, %9, %cst_6 [1] : vector<512x16xf32> to vector<512xf32>
    %11 = vector.shape_cast %10 : vector<512xf32> to vector<512x1xf32>
    %cst_7 = arith.constant 1.600000e+01 : f32
    %12 = vector.broadcast %cst_7 : f32 to vector<512x1xf32>
    %13 = arith.divf %11, %12 : vector<512x1xf32>
    %14 = vector.broadcast %6 : vector<512x1xf32> to vector<512x16xf32>
    %15 = arith.subf %0, %14 : vector<512x16xf32>
    %cst_8 = arith.constant 9.99999974E-6 : f32
    %16 = vector.broadcast %cst_8 : f32 to vector<512x1xf32>
    %17 = arith.addf %13, %16 : vector<512x1xf32>
    %18 = math.rsqrt %17 : vector<512x1xf32>
    %19 = vector.broadcast %18 : vector<512x1xf32> to vector<512x16xf32>
    %20 = arith.mulf %15, %19 : vector<512x16xf32>
    %21 = vector.broadcast %1 : vector<1x16xf32> to vector<512x16xf32>
    %22 = arith.mulf %20, %21 : vector<512x16xf32>
    %23 = vector.broadcast %2 : vector<1x16xf32> to vector<512x16xf32>
    %24 = arith.addf %22, %23 : vector<512x16xf32>
    %cst_9 = arith.constant 5.000000e-01 : f32
    %25 = vector.broadcast %cst_9 : f32 to vector<512x16xf32>
    %26 = arith.mulf %25, %24 : vector<512x16xf32>
    %cst_10 = arith.constant 2.000000e+00 : f32
    %27 = math.sqrt %cst_10 : f32
    %28 = vector.broadcast %27 : f32 to vector<512x16xf32>
    %29 = arith.divf %24, %28 : vector<512x16xf32>
    %30 = math.erf %29 : vector<512x16xf32>
    %cst_11 = arith.constant 1.000000e+00 : f32
    %31 = vector.broadcast %cst_11 : f32 to vector<512x16xf32>
    %32 = arith.addf %31, %30 : vector<512x16xf32>
    %33 = arith.mulf %26, %32 : vector<512x16xf32>
    %34 = arith.truncf %33 : vector<512x16xf32> to vector<512x16xbf16>
    %c0_12 = arith.constant 0 : index
    %c0_13 = arith.constant 0 : index
    %35 = vector.load %arg5[%c0_12, %c0_13] : memref<16x32xbf16, #tpu.memory_space<vmem>>, vector<16x32xbf16>
    %cst_14 = arith.constant dense<0.000000e+00> : vector<512x32xf32>
    %36 = tpu.matmul %34, %35, %cst_14 {dimension_numbers = #tpu.dot_dimension_numbers<[1], [0], [0], [1], [0, 0, 1, 1], [], []>} : vector<512x16xbf16>, vector<16x32xbf16>, vector<512x32xf32> -> vector<512x32xf32>
    %c0_15 = arith.constant 0 : index
    %c0_16 = arith.constant 0 : index
    %37 = vector.load %arg6[%c0_15, %c0_16] : memref<1x32xf32, #tpu.memory_space<vmem>>, vector<1x32xf32>
    %38 = vector.broadcast %37 : vector<1x32xf32> to vector<512x32xf32>
    %39 = arith.addf %36, %38 : vector<512x32xf32>
    %c0_17 = arith.constant 0 : index
    %c0_18 = arith.constant 0 : index
    %40 = vector.load %arg7[%c0_17, %c0_18] : memref<1x32xf32, #tpu.memory_space<vmem>>, vector<1x32xf32>
    %c0_19 = arith.constant 0 : index
    %c0_20 = arith.constant 0 : index
    %41 = vector.load %arg8[%c0_19, %c0_20] : memref<1x32xf32, #tpu.memory_space<vmem>>, vector<1x32xf32>
    %cst_21 = arith.constant dense<0.000000e+00> : vector<512xf32>
    %42 = vector.multi_reduction <add>, %39, %cst_21 [1] : vector<512x32xf32> to vector<512xf32>
    %43 = vector.shape_cast %42 : vector<512xf32> to vector<512x1xf32>
    %cst_22 = arith.constant 3.200000e+01 : f32
    %44 = vector.broadcast %cst_22 : f32 to vector<512x1xf32>
    %45 = arith.divf %43, %44 : vector<512x1xf32>
    %46 = vector.broadcast %45 : vector<512x1xf32> to vector<512x32xf32>
    %47 = arith.subf %39, %46 : vector<512x32xf32>
    %48 = arith.mulf %47, %47 : vector<512x32xf32>
    %cst_23 = arith.constant dense<0.000000e+00> : vector<512xf32>
    %49 = vector.multi_reduction <add>, %48, %cst_23 [1] : vector<512x32xf32> to vector<512xf32>
    %50 = vector.shape_cast %49 : vector<512xf32> to vector<512x1xf32>
    %cst_24 = arith.constant 3.200000e+01 : f32
    %51 = vector.broadcast %cst_24 : f32 to vector<512x1xf32>
    %52 = arith.divf %50, %51 : vector<512x1xf32>
    %53 = vector.broadcast %45 : vector<512x1xf32> to vector<512x32xf32>
    %54 = arith.subf %39, %53 : vector<512x32xf32>
    %cst_25 = arith.constant 9.99999974E-6 : f32
    %55 = vector.broadcast %cst_25 : f32 to vector<512x1xf32>
    %56 = arith.addf %52, %55 : vector<512x1xf32>
    %57 = math.rsqrt %56 : vector<512x1xf32>
    %58 = vector.broadcast %57 : vector<512x1xf32> to vector<512x32xf32>
    %59 = arith.mulf %54, %58 : vector<512x32xf32>
    %60 = vector.broadcast %40 : vector<1x32xf32> to vector<512x32xf32>
    %61 = arith.mulf %59, %60 : vector<512x32xf32>
    %62 = vector.broadcast %41 : vector<1x32xf32> to vector<512x32xf32>
    %63 = arith.addf %61, %62 : vector<512x32xf32>
    %cst_26 = arith.constant 5.000000e-01 : f32
    %64 = vector.broadcast %cst_26 : f32 to vector<512x32xf32>
    %65 = arith.mulf %64, %63 : vector<512x32xf32>
    %cst_27 = arith.constant 2.000000e+00 : f32
    %66 = math.sqrt %cst_27 : f32
    %67 = vector.broadcast %66 : f32 to vector<512x32xf32>
    %68 = arith.divf %63, %67 : vector<512x32xf32>
    %69 = math.erf %68 : vector<512x32xf32>
    %cst_28 = arith.constant 1.000000e+00 : f32
    %70 = vector.broadcast %cst_28 : f32 to vector<512x32xf32>
    %71 = arith.addf %70, %69 : vector<512x32xf32>
    %72 = arith.mulf %65, %71 : vector<512x32xf32>
    %c0_29 = arith.constant 0 : index
    %c0_30 = arith.constant 0 : index
    %73 = vector.load %arg2[%c0_29, %c0_30] : memref<512x1xbf16, #tpu.memory_space<vmem>>, vector<512x1xbf16>
    %74 = arith.extf %73 : vector<512x1xbf16> to vector<512x1xf32>
    %75 = vector.broadcast %74 : vector<512x1xf32> to vector<512x32xf32>
    %76 = arith.mulf %72, %75 : vector<512x32xf32>
    %77 = arith.truncf %76 : vector<512x32xf32> to vector<512x32xbf16>
    %c0_31 = arith.constant 0 : index
    %c0_32 = arith.constant 0 : index
    %78 = vector.load %arg9[%c0_31, %c0_32] : memref<512x32xbf16, #tpu.memory_space<vmem>>, vector<512x32xbf16>
    tpu.vector_store %arg9[%c0_31, %c0_32], %77 {strides = array<i32>} : memref<512x32xbf16, #tpu.memory_space<vmem>>, vector<512x32xbf16>,
    return
  }
  func.func @transform_0(%arg0: i32) -> (i32, i32) {
    %c0_i32 = arith.constant 0 : i32
    %c0_i32_0 = arith.constant 0 : i32
    return %arg0, %c0_i32 : i32, i32
  }
  func.func @transform_1(%arg0: i32) -> (i32, i32) {
    %c0_i32 = arith.constant 0 : i32
    %c0_i32_0 = arith.constant 0 : i32
    return %arg0, %c0_i32 : i32, i32
  }
  func.func @transform_2(%arg0: i32) -> (i32, i32) {
    %c0_i32 = arith.constant 0 : i32
    %c0_i32_0 = arith.constant 0 : i32
    %c0_i32_1 = arith.constant 0 : i32
    return %c0_i32, %c0_i32_0 : i32, i32
  }
  func.func @transform_3(%arg0: i32) -> (i32, i32) {
    %c0_i32 = arith.constant 0 : i32
    %c0_i32_0 = arith.constant 0 : i32
    %c0_i32_1 = arith.constant 0 : i32
    return %c0_i32, %c0_i32_0 : i32, i32
  }
  func.func @transform_4(%arg0: i32) -> (i32, i32) {
    %c0_i32 = arith.constant 0 : i32
    %c0_i32_0 = arith.constant 0 : i32
    %c0_i32_1 = arith.constant 0 : i32
    return %c0_i32, %c0_i32_0 : i32, i32
  }
  func.func @transform_5(%arg0: i32) -> (i32, i32) {
    %c0_i32 = arith.constant 0 : i32
    %c0_i32_0 = arith.constant 0 : i32
    %c0_i32_1 = arith.constant 0 : i32
    return %c0_i32, %c0_i32_0 : i32, i32
  }
  func.func @transform_6(%arg0: i32) -> (i32, i32) {
    %c0_i32 = arith.constant 0 : i32
    %c0_i32_0 = arith.constant 0 : i32
    %c0_i32_1 = arith.constant 0 : i32
    return %c0_i32, %c0_i32_0 : i32, i32
  }
  func.func @transform_7(%arg0: i32) -> (i32, i32) {
    %c0_i32 = arith.constant 0 : i32
    %c0_i32_0 = arith.constant 0 : i32
    %c0_i32_1 = arith.constant 0 : i32
    return %c0_i32, %c0_i32_0 : i32, i32
  }
  func.func @transform_8(%arg0: i32) -> (i32, i32) {
    %c0_i32 = arith.constant 0 : i32
    %c0_i32_0 = arith.constant 0 : i32
    return %arg0, %c0_i32 : i32, i32
  }
}

</mosaic_0001>

<llo_original>
// kernel: tpu_custom_call.1
$region0: #{tpu_custom_call.1}
  #allocation0 [shape = 'u32[]', space=smem, size = 0x4, offset = 0x4, fixed_abs, tag = 'smem constant byte address 0x4 - core index']
  #allocation1 [shape = 'u32[144,128]{1,0:T(1,128)}', space=vmem, size = 0x12000, scoped, tag = 'internal scratch']
  %s0 = inlined_call_operand.vmem [shape: f32[512,16], index: 0, kind: input, shape index: {}]
  %s1 = inlined_call_operand.vmem [shape: bf16[512,1], index: 1, kind: input, shape index: {}]
  %s2 = inlined_call_operand.vmem [shape: f32[1,16], index: 2, kind: input, shape index: {}]
  %s3 = inlined_call_operand.vmem [shape: f32[1,16], index: 3, kind: input, shape index: {}]
  %s4 = inlined_call_operand.vmem [shape: bf16[16,32], index: 4, kind: input, shape index: {}]
  %s5 = inlined_call_operand.vmem [shape: f32[1,32], index: 5, kind: input, shape index: {}]
  %s6 = inlined_call_operand.vmem [shape: f32[1,32], index: 6, kind: input, shape index: {}]
  %s7 = inlined_call_operand.vmem [shape: f32[1,32], index: 7, kind: input, shape index: {}]
  %s8 = inlined_call_operand.vmem [shape: bf16[512,32], index: 8, kind: output, shape index: {}]
  %s9 = sld [smem:[#allocation0]]
  $region42: #{tpu_custom_call.1} parent=0
    _
  %s11 = ssub.s32 1, %s9
  %s12 = scalar_select 0, %s11, %s9
  // Predicated region
  $region2: #{tpu_custom_call.1} parent=0 // pred_check
    _
  $region3: #{tpu_custom_call.1} parent=0 // pred_check_branch
    %14 = sbr.rel (0) target = $region5
  $region4: #{tpu_custom_call.1} parent=0 // pred_region
    _
  $region5: #{tpu_custom_call.1} parent=0 // pred_fallthru
    _
  // Predicated region
  $region6: #{tpu_custom_call.1} parent=0 // pred_check
    _
  $region7: #{tpu_custom_call.1} parent=0 // pred_check_branch
    %16 = sbr.rel (0) target = $region9
  $region8: #{tpu_custom_call.1} parent=0 // pred_region
    _
  $region9: #{tpu_custom_call.1} parent=0 // pred_fallthru
    _
  // Predicated region
  $region10: #{tpu_custom_call.1} parent=0 // pred_check
    _
  $region11: #{tpu_custom_call.1} parent=0 // pred_check_branch
    %18 = sbr.rel (0) target = $region13
  $region12: #{tpu_custom_call.1} parent=0 // pred_region
    _
  $region13: #{tpu_custom_call.1} parent=0 // pred_fallthru
    _
  // Predicated region
  $region14: #{tpu_custom_call.1} parent=0 // pred_check
    _
  $region15: #{tpu_custom_call.1} parent=0 // pred_check_branch
    %20 = sbr.rel (0) target = $region17
  $region16: #{tpu_custom_call.1} parent=0 // pred_region
    _
  $region17: #{tpu_custom_call.1} parent=0 // pred_fallthru
    _
  // Predicated region
  $region18: #{tpu_custom_call.1} parent=0 // pred_check
    _
  $region19: #{tpu_custom_call.1} parent=0 // pred_check_branch
    %22 = sbr.rel (0) target = $region21
  $region20: #{tpu_custom_call.1} parent=0 // pred_region
    _
  $region21: #{tpu_custom_call.1} parent=0 // pred_fallthru
    _
  // Predicated region
  $region22: #{tpu_custom_call.1} parent=0 // pred_check
    _
  $region23: #{tpu_custom_call.1} parent=0 // pred_check_branch
    %24 = sbr.rel (0) target = $region25
  $region24: #{tpu_custom_call.1} parent=0 // pred_region
    _
  $region25: #{tpu_custom_call.1} parent=0 // pred_fallthru
    _
  // Predicated region
  $region26: #{tpu_custom_call.1} parent=0 // pred_check
    _
  $region27: #{tpu_custom_call.1} parent=0 // pred_check_branch
    %26 = sbr.rel (0) target = $region29
  $region28: #{tpu_custom_call.1} parent=0 // pred_region
    _
  $region29: #{tpu_custom_call.1} parent=0 // pred_fallthru
    _
  // Predicated region
  $region30: #{tpu_custom_call.1} parent=0 // pred_check
    _
  $region31: #{tpu_custom_call.1} parent=0 // pred_check_branch
    %28 = sbr.rel (0) target = $region33
  $region32: #{tpu_custom_call.1} parent=0 // pred_region
    _
  $region33: #{tpu_custom_call.1} parent=0 // pred_fallthru
    _
  %v30 = vld [vmem:[%s0] sm:$0xff]
  %v31 = vld [vmem:[%s0 + $0x8] sm:$0xff]
  %v32 = vld [vmem:[%s0 + $0x10] sm:$0xff]
  %v33 = vld [vmem:[%s0 + $0x18] sm:$0xff]
  %v34 = vld [vmem:[%s0 + $0x20] sm:$0xff]
  %v35 = vld [vmem:[%s0 + $0x28] sm:$0xff]
  %v36 = vld [vmem:[%s0 + $0x30] sm:$0xff]
  %v37 = vld [vmem:[%s0 + $0x38] sm:$0xff]
  %v38 = vld [vmem:[%s0 + $0x40] sm:$0xff]
  %v39 = vld [vmem:[%s0 + $0x48] sm:$0xff]
  %v40 = vld [vmem:[%s0 + $0x50] sm:$0xff]
  %v41 = vld [vmem:[%s0 + $0x58] sm:$0xff]
  %v42 = vld [vmem:[%s0 + $0x60] sm:$0xff]
  %v43 = vld [vmem:[%s0 + $0x68] sm:$0xff]
  %v44 = vld [vmem:[%s0 + $0x70] sm:$0xff]
  %v45 = vld [vmem:[%s0 + $0x78] sm:$0xff]
  %v46 = vld [vmem:[%s0 + $0x80] sm:$0xff]
  %v47 = vld [vmem:[%s0 + $0x88] sm:$0xff]
  %v48 = vld [vmem:[%s0 + $0x90] sm:$0xff]
  %v49 = vld [vmem:[%s0 + $0x98] sm:$0xff]
  %v50 = vld [vmem:[%s0 + $0xa0] sm:$0xff]
  %v51 = vld [vmem:[%s0 + $0xa8] sm:$0xff]
  %v52 = vld [vmem:[%s0 + $0xb0] sm:$0xff]
  %v53 = vld [vmem:[%s0 + $0xb8] sm:$0xff]
  %v54 = vld [vmem:[%s0 + $0xc0] sm:$0xff]
  %v55 = vld [vmem:[%s0 + $0xc8] sm:$0xff]
  %v56 = vld [vmem:[%s0 + $0xd0] sm:$0xff]
  %v57 = vld [vmem:[%s0 + $0xd8] sm:$0xff]
  %v58 = vld [vmem:[%s0 + $0xe0] sm:$0xff]
  %v59 = vld [vmem:[%s0 + $0xe8] sm:$0xff]
  %v60 = vld [vmem:[%s0 + $0xf0] sm:$0xff]
  %v61 = vld [vmem:[%s0 + $0xf8] sm:$0xff]
  %v62 = vld [vmem:[%s0 + $0x100] sm:$0xff]
  %v63 = vld [vmem:[%s0 + $0x108] sm:$0xff]
  %v64 = vld [vmem:[%s0 + $0x110] sm:$0xff]
  %v65 = vld [vmem:[%s0 + $0x118] sm:$0xff]
  %v66 = vld [vmem:[%s0 + $0x120] sm:$0xff]
  %v67 = vld [vmem:[%s0 + $0x128] sm:$0xff]
  %v68 = vld [vmem:[%s0 + $0x130] sm:$0xff]
  %v69 = vld [vmem:[%s0 + $0x138] sm:$0xff]
  %v70 = vld [vmem:[%s0 + $0x140] sm:$0xff]
  %v71 = vld [vmem:[%s0 + $0x148] sm:$0xff]
  %v72 = vld [vmem:[%s0 + $0x150] sm:$0xff]
  %v73 = vld [vmem:[%s0 + $0x158] sm:$0xff]
  %v74 = vld [vmem:[%s0 + $0x160] sm:$0xff]
  %v75 = vld [vmem:[%s0 + $0x168] sm:$0xff]
  %v76 = vld [vmem:[%s0 + $0x170] sm:$0xff]
  %v77 = vld [vmem:[%s0 + $0x178] sm:$0xff]
  %v78 = vld [vmem:[%s0 + $0x180] sm:$0xff]
  %v79 = vld [vmem:[%s0 + $0x188] sm:$0xff]
  %v80 = vld [vmem:[%s0 + $0x190] sm:$0xff]
  %v81 = vld [vmem:[%s0 + $0x198] sm:$0xff]
  %v82 = vld [vmem:[%s0 + $0x1a0] sm:$0xff]
  %v83 = vld [vmem:[%s0 + $0x1a8] sm:$0xff]
  %v84 = vld [vmem:[%s0 + $0x1b0] sm:$0xff]
  %v85 = vld [vmem:[%s0 + $0x1b8] sm:$0xff]
  %v86 = vld [vmem:[%s0 + $0x1c0] sm:$0xff]
  %v87 = vld [vmem:[%s0 + $0x1c8] sm:$0xff]
  %v88 = vld [vmem:[%s0 + $0x1d0] sm:$0xff]
  %v89 = vld [vmem:[%s0 + $0x1d8] sm:$0xff]
  %v90 = vld [vmem:[%s0 + $0x1e0] sm:$0xff]
  %v91 = vld [vmem:[%s0 + $0x1e8] sm:$0xff]
  %v92 = vld [vmem:[%s0 + $0x1f0] sm:$0xff]
  %v93 = vld [vmem:[%s0 + $0x1f8] sm:$0xff]
  %v94 = vld [vmem:[%s2] sm:$0x1]
  %v95 = vld [vmem:[%s3] sm:$0x1]
  %vm96 = vcmask 130048
  %v97 = vsel %vm96, %v30, 0.0
  %98 = vadd.xlane.f32.xlu0 %v97
  %v99 = vpop.xlane.xlu0 %98
  %v100 = vsel %vm96, %v31, 0.0
  %101 = vadd.xlane.f32.xlu0 %v100
  %v102 = vpop.xlane.xlu0 %101
  %v103 = vsel %vm96, %v32, 0.0
  %104 = vadd.xlane.f32.xlu0 %v103
  %v105 = vpop.xlane.xlu0 %104
  %v106 = vsel %vm96, %v33, 0.0
  %107 = vadd.xlane.f32.xlu0 %v106
  %v108 = vpop.xlane.xlu0 %107
  %v109 = vsel %vm96, %v34, 0.0
  %110 = vadd.xlane.f32.xlu0 %v109
  %v111 = vpop.xlane.xlu0 %110
  %v112 = vsel %vm96, %v35, 0.0
  %113 = vadd.xlane.f32.xlu0 %v112
  %v114 = vpop.xlane.xlu0 %113
  %v115 = vsel %vm96, %v36, 0.0
  %116 = vadd.xlane.f32.xlu0 %v115
  %v117 = vpop.xlane.xlu0 %116
  %v118 = vsel %vm96, %v37, 0.0
  %119 = vadd.xlane.f32.xlu0 %v118
  %v120 = vpop.xlane.xlu0 %119
  %v121 = vsel %vm96, %v38, 0.0
  %122 = vadd.xlane.f32.xlu0 %v121
  %v123 = vpop.xlane.xlu0 %122
  %v124 = vsel %vm96, %v39, 0.0
  %125 = vadd.xlane.f32.xlu0 %v124
  %v126 = vpop.xlane.xlu0 %125
  %v127 = vsel %vm96, %v40, 0.0
  %128 = vadd.xlane.f32.xlu0 %v127
  %v129 = vpop.xlane.xlu0 %128
  %v130 = vsel %vm96, %v41, 0.0
  %131 = vadd.xlane.f32.xlu0 %v130
  %v132 = vpop.xlane.xlu0 %131
  %v133 = vsel %vm96, %v42, 0.0
  %134 = vadd.xlane.f32.xlu0 %v133
  %v135 = vpop.xlane.xlu0 %134
  %v136 = vsel %vm96, %v43, 0.0
  %137 = vadd.xlane.f32.xlu0 %v136
  %v138 = vpop.xlane.xlu0 %137
  %v139 = vsel %vm96, %v44, 0.0
  %140 = vadd.xlane.f32.xlu0 %v139
  %v141 = vpop.xlane.xlu0 %140
  %v142 = vsel %vm96, %v45, 0.0
  %143 = vadd.xlane.f32.xlu0 %v142
  %v144 = vpop.xlane.xlu0 %143
  %v145 = vsel %vm96, %v46, 0.0
  %146 = vadd.xlane.f32.xlu0 %v145
  %v147 = vpop.xlane.xlu0 %146
  %v148 = vsel %vm96, %v47, 0.0
  %149 = vadd.xlane.f32.xlu0 %v148
  %v150 = vpop.xlane.xlu0 %149
  %v151 = vsel %vm96, %v48, 0.0
  %152 = vadd.xlane.f32.xlu0 %v151
  %v153 = vpop.xlane.xlu0 %152
  %v154 = vsel %vm96, %v49, 0.0
  %155 = vadd.xlane.f32.xlu0 %v154
  %v156 = vpop.xlane.xlu0 %155
  %v157 = vsel %vm96, %v50, 0.0
  %158 = vadd.xlane.f32.xlu0 %v157
  %v159 = vpop.xlane.xlu0 %158
  %v160 = vsel %vm96, %v51, 0.0
  %161 = vadd.xlane.f32.xlu0 %v160
  %v162 = vpop.xlane.xlu0 %161
  %v163 = vsel %vm96, %v52, 0.0
  %164 = vadd.xlane.f32.xlu0 %v163
  %v165 = vpop.xlane.xlu0 %164
  %v166 = vsel %vm96, %v53, 0.0
  %167 = vadd.xlane.f32.xlu0 %v166
  %v168 = vpop.xlane.xlu0 %167
  %v169 = vsel %vm96, %v54, 0.0
  %170 = vadd.xlane.f32.xlu0 %v169
  %v171 = vpop.xlane.xlu0 %170
  %v172 = vsel %vm96, %v55, 0.0
  %173 = vadd.xlane.f32.xlu0 %v172
  %v174 = vpop.xlane.xlu0 %173
  %v175 = vsel %vm96, %v56, 0.0
  %176 = vadd.xlane.f32.xlu0 %v175
  %v177 = vpop.xlane.xlu0 %176
  %v178 = vsel %vm96, %v57, 0.0
  %179 = vadd.xlane.f32.xlu0 %v178
  %v180 = vpop.xlane.xlu0 %179
  %v181 = vsel %vm96, %v58, 0.0
  %182 = vadd.xlane.f32.xlu0 %v181
  %v183 = vpop.xlane.xlu0 %182
  %v184 = vsel %vm96, %v59, 0.0
  %185 = vadd.xlane.f32.xlu0 %v184
  %v186 = vpop.xlane.xlu0 %185
  %v187 = vsel %vm96, %v60, 0.0
  %188 = vadd.xlane.f32.xlu0 %v187
  %v189 = vpop.xlane.xlu0 %188
  %v190 = vsel %vm96, %v61, 0.0
  %191 = vadd.xlane.f32.xlu0 %v190
  %v192 = vpop.xlane.xlu0 %191
  %v193 = vsel %vm96, %v62, 0.0
  %194 = vadd.xlane.f32.xlu0 %v193
  %v195 = vpop.xlane.xlu0 %194
  %v196 = vsel %vm96, %v63, 0.0
  %197 = vadd.xlane.f32.xlu0 %v196
  %v198 = vpop.xlane.xlu0 %197
  %v199 = vsel %vm96, %v64, 0.0
  %200 = vadd.xlane.f32.xlu0 %v199
  %v201 = vpop.xlane.xlu0 %200
  %v202 = vsel %vm96, %v65, 0.0
  %203 = vadd.xlane.f32.xlu0 %v202
  %v204 = vpop.xlane.xlu0 %203
  %v205 = vsel %vm96, %v66, 0.0
  %206 = vadd.xlane.f32.xlu0 %v205
  %v207 = vpop.xlane.xlu0 %206
  %v208 = vsel %vm96, %v67, 0.0
  %209 = vadd.xlane.f32.xlu0 %v208
  %v210 = vpop.xlane.xlu0 %209
  %v211 = vsel %vm96, %v68, 0.0
  %212 = vadd.xlane.f32.xlu0 %v211
  %v213 = vpop.xlane.xlu0 %212
  %v214 = vsel %vm96, %v69, 0.0
  %215 = vadd.xlane.f32.xlu0 %v214
  %v216 = vpop.xlane.xlu0 %215
  %v217 = vsel %vm96, %v70, 0.0
  %218 = vadd.xlane.f32.xlu0 %v217
  %v219 = vpop.xlane.xlu0 %218
  %v220 = vsel %vm96, %v71, 0.0
  %221 = vadd.xlane.f32.xlu0 %v220
  %v222 = vpop.xlane.xlu0 %221
  %v223 = vsel %vm96, %v72, 0.0
  %224 = vadd.xlane.f32.xlu0 %v223
  %v225 = vpop.xlane.xlu0 %224
  %v226 = vsel %vm96, %v73, 0.0
  %227 = vadd.xlane.f32.xlu0 %v226
  %v228 = vpop.xlane.xlu0 %227
  %v229 = vsel %vm96, %v74, 0.0
  %230 = vadd.xlane.f32.xlu0 %v229
  %v231 = vpop.xlane.xlu0 %230
  %v232 = vsel %vm96, %v75, 0.0
  %233 = vadd.xlane.f32.xlu0 %v232
  %v234 = vpop.xlane.xlu0 %233
  %v235 = vsel %vm96, %v76, 0.0
  %236 = vadd.xlane.f32.xlu0 %v235
  %v237 = vpop.xlane.xlu0 %236
  %v238 = vsel %vm96, %v77, 0.0
  %239 = vadd.xlane.f32.xlu0 %v238
  %v240 = vpop.xlane.xlu0 %239
  %v241 = vsel %vm96, %v78, 0.0
  %242 = vadd.xlane.f32.xlu0 %v241
  %v243 = vpop.xlane.xlu0 %242
  %v244 = vsel %vm96, %v79, 0.0
  %245 = vadd.xlane.f32.xlu0 %v244
  %v246 = vpop.xlane.xlu0 %245
  %v247 = vsel %vm96, %v80, 0.0
  %248 = vadd.xlane.f32.xlu0 %v247
  %v249 = vpop.xlane.xlu0 %248
  %v250 = vsel %vm96, %v81, 0.0
  %251 = vadd.xlane.f32.xlu0 %v250
  %v252 = vpop.xlane.xlu0 %251
  %v253 = vsel %vm96, %v82, 0.0
  %254 = vadd.xlane.f32.xlu0 %v253
  %v255 = vpop.xlane.xlu0 %254
  %v256 = vsel %vm96, %v83, 0.0
  %257 = vadd.xlane.f32.xlu0 %v256
  %v258 = vpop.xlane.xlu0 %257
  %v259 = vsel %vm96, %v84, 0.0
  %260 = vadd.xlane.f32.xlu0 %v259
  %v261 = vpop.xlane.xlu0 %260
  %v262 = vsel %vm96, %v85, 0.0
  %263 = vadd.xlane.f32.xlu0 %v262
  %v264 = vpop.xlane.xlu0 %263
  %v265 = vsel %vm96, %v86, 0.0
  %266 = vadd.xlane.f32.xlu0 %v265
  %v267 = vpop.xlane.xlu0 %266
  %v268 = vsel %vm96, %v87, 0.0
  %269 = vadd.xlane.f32.xlu0 %v268
  %v270 = vpop.xlane.xlu0 %269
  %v271 = vsel %vm96, %v88, 0.0
  %272 = vadd.xlane.f32.xlu0 %v271
  %v273 = vpop.xlane.xlu0 %272
  %v274 = vsel %vm96, %v89, 0.0
  %275 = vadd.xlane.f32.xlu0 %v274
  %v276 = vpop.xlane.xlu0 %275
  %v277 = vsel %vm96, %v90, 0.0
  %278 = vadd.xlane.f32.xlu0 %v277
  %v279 = vpop.xlane.xlu0 %278
  %v280 = vsel %vm96, %v91, 0.0
  %281 = vadd.xlane.f32.xlu0 %v280
  %v282 = vpop.xlane.xlu0 %281
  %v283 = vsel %vm96, %v92, 0.0
  %284 = vadd.xlane.f32.xlu0 %v283
  %v285 = vpop.xlane.xlu0 %284
  %v286 = vsel %vm96, %v93, 0.0
  %287 = vadd.xlane.f32.xlu0 %v286
  %v288 = vpop.xlane.xlu0 %287
  %v289 = vrcp.pop 16.0
  %v290 = vmul.f32 %v99, %v289
  %v291 = vmul.f32 %v102, %v289
  %v292 = vmul.f32 %v105, %v289
  %v293 = vmul.f32 %v108, %v289
  %v294 = vmul.f32 %v111, %v289
  %v295 = vmul.f32 %v114, %v289
  %v296 = vmul.f32 %v117, %v289
  %v297 = vmul.f32 %v120, %v289
  %v298 = vmul.f32 %v123, %v289
  %v299 = vmul.f32 %v126, %v289
  %v300 = vmul.f32 %v129, %v289
  %v301 = vmul.f32 %v132, %v289
  %v302 = vmul.f32 %v135, %v289
  %v303 = vmul.f32 %v138, %v289
  %v304 = vmul.f32 %v141, %v289
  %v305 = vmul.f32 %v144, %v289
  %v306 = vmul.f32 %v147, %v289
  %v307 = vmul.f32 %v150, %v289
  %v308 = vmul.f32 %v153, %v289
  %v309 = vmul.f32 %v156, %v289
  %v310 = vmul.f32 %v159, %v289
  %v311 = vmul.f32 %v162, %v289
  %v312 = vmul.f32 %v165, %v289
  %v313 = vmul.f32 %v168, %v289
  %v314 = vmul.f32 %v171, %v289
  %v315 = vmul.f32 %v174, %v289
  %v316 = vmul.f32 %v177, %v289
  %v317 = vmul.f32 %v180, %v289
  %v318 = vmul.f32 %v183, %v289
  %v319 = vmul.f32 %v186, %v289
  %v320 = vmul.f32 %v189, %v289
  %v321 = vmul.f32 %v192, %v289
  %v322 = vmul.f32 %v195, %v289
  %v323 = vmul.f32 %v198, %v289
  %v324 = vmul.f32 %v201, %v289
  %v325 = vmul.f32 %v204, %v289
  %v326 = vmul.f32 %v207, %v289
  %v327 = vmul.f32 %v210, %v289
  %v328 = vmul.f32 %v213, %v289
  %v329 = vmul.f32 %v216, %v289
  %v330 = vmul.f32 %v219, %v289
  %v331 = vmul.f32 %v222, %v289
  %v332 = vmul.f32 %v225, %v289
  %v333 = vmul.f32 %v228, %v289
  %v334 = vmul.f32 %v231, %v289
  %v335 = vmul.f32 %v234, %v289
  %v336 = vmul.f32 %v237, %v289
  %v337 = vmul.f32 %v240, %v289
  %v338 = vmul.f32 %v243, %v289
  %v339 = vmul.f32 %v246, %v289
  %v340 = vmul.f32 %v249, %v289
  %v341 = vmul.f32 %v252, %v289
  %v342 = vmul.f32 %v255, %v289
  %v343 = vmul.f32 %v258, %v289
  %v344 = vmul.f32 %v261, %v289
  %v345 = vmul.f32 %v264, %v289
  %v346 = vmul.f32 %v267, %v289
  %v347 = vmul.f32 %v270, %v289
  %v348 = vmul.f32 %v273, %v289
  %v349 = vmul.f32 %v276, %v289
  %v350 = vmul.f32 %v279, %v289
  %v351 = vmul.f32 %v282, %v289
  %v352 = vmul.f32 %v285, %v289
  %v353 = vmul.f32 %v288, %v289
  %v354 = vsub.f32 %v30, %v290
  %v355 = vsub.f32 %v31, %v291
  %v356 = vsub.f32 %v32, %v292
  %v357 = vsub.f32 %v33, %v293
  %v358 = vsub.f32 %v34, %v294
  %v359 = vsub.f32 %v35, %v295
  %v360 = vsub.f32 %v36, %v296
  %v361 = vsub.f32 %v37, %v297
  %v362 = vsub.f32 %v38, %v298
  %v363 = vsub.f32 %v39, %v299
  %v364 = vsub.f32 %v40, %v300
  %v365 = vsub.f32 %v41, %v301
  %v366 = vsub.f32 %v42, %v302
  %v367 = vsub.f32 %v43, %v303
  %v368 = vsub.f32 %v44, %v304
  %v369 = vsub.f32 %v45, %v305
  %v370 = vsub.f32 %v46, %v306
  %v371 = vsub.f32 %v47, %v307
  %v372 = vsub.f32 %v48, %v308
  %v373 = vsub.f32 %v49, %v309
  %v374 = vsub.f32 %v50, %v310
  %v375 = vsub.f32 %v51, %v311
  %v376 = vsub.f32 %v52, %v312
  %v377 = vsub.f32 %v53, %v313
  %v378 = vsub.f32 %v54, %v314
  %v379 = vsub.f32 %v55, %v315
  %v380 = vsub.f32 %v56, %v316
  %v381 = vsub.f32 %v57, %v317
  %v382 = vsub.f32 %v58, %v318
  %v383 = vsub.f32 %v59, %v319
  %v384 = vsub.f32 %v60, %v320
  %v385 = vsub.f32 %v61, %v321
  %v386 = vsub.f32 %v62, %v322
  %v387 = vsub.f32 %v63, %v323
  %v388 = vsub.f32 %v64, %v324
  %v389 = vsub.f32 %v65, %v325
  %v390 = vsub.f32 %v66, %v326
  %v391 = vsub.f32 %v67, %v327
  %v392 = vsub.f32 %v68, %v328
  %v393 = vsub.f32 %v69, %v329
  %v394 = vsub.f32 %v70, %v330
  %v395 = vsub.f32 %v71, %v331
  %v396 = vsub.f32 %v72, %v332
  %v397 = vsub.f32 %v73, %v333
  %v398 = vsub.f32 %v74, %v334
  %v399 = vsub.f32 %v75, %v335
  %v400 = vsub.f32 %v76, %v336
  %v401 = vsub.f32 %v77, %v337
  %v402 = vsub.f32 %v78, %v338
  %v403 = vsub.f32 %v79, %v339
  %v404 = vsub.f32 %v80, %v340
  %v405 = vsub.f32 %v81, %v341
  %v406 = vsub.f32 %v82, %v342
  %v407 = vsub.f32 %v83, %v343
  %v408 = vsub.f32 %v84, %v344
  %v409 = vsub.f32 %v85, %v345
  %v410 = vsub.f32 %v86, %v346
  %v411 = vsub.f32 %v87, %v347
  %v412 = vsub.f32 %v88, %v348
  %v413 = vsub.f32 %v89, %v349
  %v414 = vsub.f32 %v90, %v350
  %v415 = vsub.f32 %v91, %v351
  %v416 = vsub.f32 %v92, %v352
  %v417 = vsub.f32 %v93, %v353
  %v418 = vmul.f32 %v354, %v354
  %v419 = vmul.f32 %v355, %v355
  %v420 = vmul.f32 %v356, %v356
  %v421 = vmul.f32 %v357, %v357
  %v422 = vmul.f32 %v358, %v358
  %v423 = vmul.f32 %v359, %v359
  %v424 = vmul.f32 %v360, %v360
  %v425 = vmul.f32 %v361, %v361
  %v426 = vmul.f32 %v362, %v362
  %v427 = vmul.f32 %v363, %v363
  %v428 = vmul.f32 %v364, %v364
  %v429 = vmul.f32 %v365, %v365
  %v430 = vmul.f32 %v366, %v366
  %v431 = vmul.f32 %v367, %v367
  %v432 = vmul.f32 %v368, %v368
  %v433 = vmul.f32 %v369, %v369
  %v434 = vmul.f32 %v370, %v370
  %v435 = vmul.f32 %v371, %v371
  %v436 = vmul.f32 %v372, %v372
  %v437 = vmul.f32 %v373, %v373
  %v438 = vmul.f32 %v374, %v374
  %v439 = vmul.f32 %v375, %v375
  %v440 = vmul.f32 %v376, %v376
  %v441 = vmul.f32 %v377, %v377
  %v442 = vmul.f32 %v378, %v378
  %v443 = vmul.f32 %v379, %v379
  %v444 = vmul.f32 %v380, %v380
  %v445 = vmul.f32 %v381, %v381
  %v446 = vmul.f32 %v382, %v382
  %v447 = vmul.f32 %v383, %v383
  %v448 = vmul.f32 %v384, %v384
  %v449 = vmul.f32 %v385, %v385
  %v450 = vmul.f32 %v386, %v386
  %v451 = vmul.f32 %v387, %v387
  %v452 = vmul.f32 %v388, %v388
  %v453 = vmul.f32 %v389, %v389
  %v454 = vmul.f32 %v390, %v390
  %v455 = vmul.f32 %v391, %v391
  %v456 = vmul.f32 %v392, %v392
  %v457 = vmul.f32 %v393, %v393
  %v458 = vmul.f32 %v394, %v394
  %v459 = vmul.f32 %v395, %v395
  %v460 = vmul.f32 %v396, %v396
  %v461 = vmul.f32 %v397, %v397
  %v462 = vmul.f32 %v398, %v398
  %v463 = vmul.f32 %v399, %v399
  %v464 = vmul.f32 %v400, %v400
  %v465 = vmul.f32 %v401, %v401
  %v466 = vmul.f32 %v402, %v402
  %v467 = vmul.f32 %v403, %v403
  %v468 = vmul.f32 %v404, %v404
  %v469 = vmul.f32 %v405, %v405
  %v470 = vmul.f32 %v406, %v406
  %v471 = vmul.f32 %v407, %v407
  %v472 = vmul.f32 %v408, %v408
  %v473 = vmul.f32 %v409, %v409
  %v474 = vmul.f32 %v410, %v410
  %v475 = vmul.f32 %v411, %v411
  %v476 = vmul.f32 %v412, %v412
  %v477 = vmul.f32 %v413, %v413
  %v478 = vmul.f32 %v414, %v414
  %v479 = vmul.f32 %v415, %v415
  %v480 = vmul.f32 %v416, %v416
  %v481 = vmul.f32 %v417, %v417
  %v482 = vsel %vm96, %v418, 0.0
  %483 = vadd.xlane.f32.xlu0 %v482
  %v484 = vpop.xlane.xlu0 %483
  %v485 = vsel %vm96, %v419, 0.0
  %486 = vadd.xlane.f32.xlu0 %v485
  %v487 = vpop.xlane.xlu0 %486
  %v488 = vsel %vm96, %v420, 0.0
  %489 = vadd.xlane.f32.xlu0 %v488
  %v490 = vpop.xlane.xlu0 %489
  %v491 = vsel %vm96, %v421, 0.0
  %492 = vadd.xlane.f32.xlu0 %v491
  %v493 = vpop.xlane.xlu0 %492
  %v494 = vsel %vm96, %v422, 0.0
  %495 = vadd.xlane.f32.xlu0 %v494
  %v496 = vpop.xlane.xlu0 %495
  %v497 = vsel %vm96, %v423, 0.0
  %498 = vadd.xlane.f32.xlu0 %v497
  %v499 = vpop.xlane.xlu0 %498
  %v500 = vsel %vm96, %v424, 0.0
  %501 = vadd.xlane.f32.xlu0 %v500
  %v502 = vpop.xlane.xlu0 %501
  %v503 = vsel %vm96, %v425, 0.0
  %504 = vadd.xlane.f32.xlu0 %v503
  %v505 = vpop.xlane.xlu0 %504
  %v506 = vsel %vm96, %v426, 0.0
  %507 = vadd.xlane.f32.xlu0 %v506
  %v508 = vpop.xlane.xlu0 %507
  %v509 = vsel %vm96, %v427, 0.0
  %510 = vadd.xlane.f32.xlu0 %v509
  %v511 = vpop.xlane.xlu0 %510
  %v512 = vsel %vm96, %v428, 0.0
  %513 = vadd.xlane.f32.xlu0 %v512
  %v514 = vpop.xlane.xlu0 %513
  %v515 = vsel %vm96, %v429, 0.0
  %516 = vadd.xlane.f32.xlu0 %v515
  %v517 = vpop.xlane.xlu0 %516
  %v518 = vsel %vm96, %v430, 0.0
  %519 = vadd.xlane.f32.xlu0 %v518
  %v520 = vpop.xlane.xlu0 %519
  %v521 = vsel %vm96, %v431, 0.0
  %522 = vadd.xlane.f32.xlu0 %v521
  %v523 = vpop.xlane.xlu0 %522
  %v524 = vsel %vm96, %v432, 0.0
  %525 = vadd.xlane.f32.xlu0 %v524
  %v526 = vpop.xlane.xlu0 %525
  %v527 = vsel %vm96, %v433, 0.0
  %528 = vadd.xlane.f32.xlu0 %v527
  %v529 = vpop.xlane.xlu0 %528
  %v530 = vsel %vm96, %v434, 0.0
  %531 = vadd.xlane.f32.xlu0 %v530
  %v532 = vpop.xlane.xlu0 %531
  %v533 = vsel %vm96, %v435, 0.0
  %534 = vadd.xlane.f32.xlu0 %v533
  %v535 = vpop.xlane.xlu0 %534
  %v536 = vsel %vm96, %v436, 0.0
  %537 = vadd.xlane.f32.xlu0 %v536
  %v538 = vpop.xlane.xlu0 %537
  %v539 = vsel %vm96, %v437, 0.0
  %540 = vadd.xlane.f32.xlu0 %v539
  %v541 = vpop.xlane.xlu0 %540
  %v542 = vsel %vm96, %v438, 0.0
  %543 = vadd.xlane.f32.xlu0 %v542
  %v544 = vpop.xlane.xlu0 %543
  %v545 = vsel %vm96, %v439, 0.0
  %546 = vadd.xlane.f32.xlu0 %v545
  %v547 = vpop.xlane.xlu0 %546
  %v548 = vsel %vm96, %v440, 0.0
  %549 = vadd.xlane.f32.xlu0 %v548
  %v550 = vpop.xlane.xlu0 %549
  %v551 = vsel %vm96, %v441, 0.0
  %552 = vadd.xlane.f32.xlu0 %v551
  %v553 = vpop.xlane.xlu0 %552
  %v554 = vsel %vm96, %v442, 0.0
  %555 = vadd.xlane.f32.xlu0 %v554
  %v556 = vpop.xlane.xlu0 %555
  %v557 = vsel %vm96, %v443, 0.0
  %558 = vadd.xlane.f32.xlu0 %v557
  %v559 = vpop.xlane.xlu0 %558
  %v560 = vsel %vm96, %v444, 0.0
  %561 = vadd.xlane.f32.xlu0 %v560
  %v562 = vpop.xlane.xlu0 %561
  %v563 = vsel %vm96, %v445, 0.0
  %564 = vadd.xlane.f32.xlu0 %v563
  %v565 = vpop.xlane.xlu0 %564
  %v566 = vsel %vm96, %v446, 0.0
  %567 = vadd.xlane.f32.xlu0 %v566
  %v568 = vpop.xlane.xlu0 %567
  %v569 = vsel %vm96, %v447, 0.0
  %570 = vadd.xlane.f32.xlu0 %v569
  %v571 = vpop.xlane.xlu0 %570
  %v572 = vsel %vm96, %v448, 0.0
  %573 = vadd.xlane.f32.xlu0 %v572
  %v574 = vpop.xlane.xlu0 %573
  %v575 = vsel %vm96, %v449, 0.0
  %576 = vadd.xlane.f32.xlu0 %v575
  %v577 = vpop.xlane.xlu0 %576
  %v578 = vsel %vm96, %v450, 0.0
  %579 = vadd.xlane.f32.xlu0 %v578
  %v580 = vpop.xlane.xlu0 %579
  %v581 = vsel %vm96, %v451, 0.0
  %582 = vadd.xlane.f32.xlu0 %v581
  %v583 = vpop.xlane.xlu0 %582
  %v584 = vsel %vm96, %v452, 0.0
  %585 = vadd.xlane.f32.xlu0 %v584
  %v586 = vpop.xlane.xlu0 %585
  %v587 = vsel %vm96, %v453, 0.0
  %588 = vadd.xlane.f32.xlu0 %v587
  %v589 = vpop.xlane.xlu0 %588
  %v590 = vsel %vm96, %v454, 0.0
  %591 = vadd.xlane.f32.xlu0 %v590
  %v592 = vpop.xlane.xlu0 %591
  %v593 = vsel %vm96, %v455, 0.0
  %594 = vadd.xlane.f32.xlu0 %v593
  %v595 = vpop.xlane.xlu0 %594
  %v596 = vsel %vm96, %v456, 0.0
  %597 = vadd.xlane.f32.xlu0 %v596
  %v598 = vpop.xlane.xlu0 %597
  %v599 = vsel %vm96, %v457, 0.0
  %600 = vadd.xlane.f32.xlu0 %v599
  %v601 = vpop.xlane.xlu0 %600
  %v602 = vsel %vm96, %v458, 0.0
  %603 = vadd.xlane.f32.xlu0 %v602
  %v604 = vpop.xlane.xlu0 %603
  %v605 = vsel %vm96, %v459, 0.0
  %606 = vadd.xlane.f32.xlu0 %v605
  %v607 = vpop.xlane.xlu0 %606
  %v608 = vsel %vm96, %v460, 0.0
  %609 = vadd.xlane.f32.xlu0 %v608
  %v610 = vpop.xlane.xlu0 %609
  %v611 = vsel %vm96, %v461, 0.0
  %612 = vadd.xlane.f32.xlu0 %v611
  %v613 = vpop.xlane.xlu0 %612
  %v614 = vsel %vm96, %v462, 0.0
  %615 = vadd.xlane.f32.xlu0 %v614
  %v616 = vpop.xlane.xlu0 %615
  %v617 = vsel %vm96, %v463, 0.0
  %618 = vadd.xlane.f32.xlu0 %v617
  %v619 = vpop.xlane.xlu0 %618
  %v620 = vsel %vm96, %v464, 0.0
  %621 = vadd.xlane.f32.xlu0 %v620
  %v622 = vpop.xlane.xlu0 %621
  %v623 = vsel %vm96, %v465, 0.0
  %624 = vadd.xlane.f32.xlu0 %v623
  %v625 = vpop.xlane.xlu0 %624
  %v626 = vsel %vm96, %v466, 0.0
  %627 = vadd.xlane.f32.xlu0 %v626
  %v628 = vpop.xlane.xlu0 %627
  %v629 = vsel %vm96, %v467, 0.0
  %630 = vadd.xlane.f32.xlu0 %v629
  %v631 = vpop.xlane.xlu0 %630
  %v632 = vsel %vm96, %v468, 0.0
  %633 = vadd.xlane.f32.xlu0 %v632
  %v634 = vpop.xlane.xlu0 %633
  %v635 = vsel %vm96, %v469, 0.0
  %636 = vadd.xlane.f32.xlu0 %v635
  %v637 = vpop.xlane.xlu0 %636
  %v638 = vsel %vm96, %v470, 0.0
  %639 = vadd.xlane.f32.xlu0 %v638
  %v640 = vpop.xlane.xlu0 %639
  %v641 = vsel %vm96, %v471, 0.0
  %642 = vadd.xlane.f32.xlu0 %v641
  %v643 = vpop.xlane.xlu0 %642
  %v644 = vsel %vm96, %v472, 0.0
  %645 = vadd.xlane.f32.xlu0 %v644
  %v646 = vpop.xlane.xlu0 %645
  %v647 = vsel %vm96, %v473, 0.0
  %648 = vadd.xlane.f32.xlu0 %v647
  %v649 = vpop.xlane.xlu0 %648
  %v650 = vsel %vm96, %v474, 0.0
  %651 = vadd.xlane.f32.xlu0 %v650
  %v652 = vpop.xlane.xlu0 %651
  %v653 = vsel %vm96, %v475, 0.0
  %654 = vadd.xlane.f32.xlu0 %v653
  %v655 = vpop.xlane.xlu0 %654
  %v656 = vsel %vm96, %v476, 0.0
  %657 = vadd.xlane.f32.xlu0 %v656
  %v658 = vpop.xlane.xlu0 %657
  %v659 = vsel %vm96, %v477, 0.0
  %660 = vadd.xlane.f32.xlu0 %v659
  %v661 = vpop.xlane.xlu0 %660
  %v662 = vsel %vm96, %v478, 0.0
  %663 = vadd.xlane.f32.xlu0 %v662
  %v664 = vpop.xlane.xlu0 %663
  %v665 = vsel %vm96, %v479, 0.0
  %666 = vadd.xlane.f32.xlu0 %v665
  %v667 = vpop.xlane.xlu0 %666
  %v668 = vsel %vm96, %v480, 0.0
  %669 = vadd.xlane.f32.xlu0 %v668
  %v670 = vpop.xlane.xlu0 %669
  %v671 = vsel %vm96, %v481, 0.0
  %672 = vadd.xlane.f32.xlu0 %v671
  %v673 = vpop.xlane.xlu0 %672
  %v674 = vmul.f32 %v484, %v289
  %v675 = vmul.f32 %v487, %v289
  %v676 = vmul.f32 %v490, %v289
  %v677 = vmul.f32 %v493, %v289
  %v678 = vmul.f32 %v496, %v289
  %v679 = vmul.f32 %v499, %v289
  %v680 = vmul.f32 %v502, %v289
  %v681 = vmul.f32 %v505, %v289
  %v682 = vmul.f32 %v508, %v289
  %v683 = vmul.f32 %v511, %v289
  %v684 = vmul.f32 %v514, %v289
  %v685 = vmul.f32 %v517, %v289
  %v686 = vmul.f32 %v520, %v289
  %v687 = vmul.f32 %v523, %v289
  %v688 = vmul.f32 %v526, %v289
  %v689 = vmul.f32 %v529, %v289
  %v690 = vmul.f32 %v532, %v289
  %v691 = vmul.f32 %v535, %v289
  %v692 = vmul.f32 %v538, %v289
  %v693 = vmul.f32 %v541, %v289
  %v694 = vmul.f32 %v544, %v289
  %v695 = vmul.f32 %v547, %v289
  %v696 = vmul.f32 %v550, %v289
  %v697 = vmul.f32 %v553, %v289
  %v698 = vmul.f32 %v556, %v289
  %v699 = vmul.f32 %v559, %v289
  %v700 = vmul.f32 %v562, %v289
  %v701 = vmul.f32 %v565, %v289
  %v702 = vmul.f32 %v568, %v289
  %v703 = vmul.f32 %v571, %v289
  %v704 = vmul.f32 %v574, %v289
  %v705 = vmul.f32 %v577, %v289
  %v706 = vmul.f32 %v580, %v289
  %v707 = vmul.f32 %v583, %v289
  %v708 = vmul.f32 %v586, %v289
  %v709 = vmul.f32 %v589, %v289
  %v710 = vmul.f32 %v592, %v289
  %v711 = vmul.f32 %v595, %v289
  %v712 = vmul.f32 %v598, %v289
  %v713 = vmul.f32 %v601, %v289
  %v714 = vmul.f32 %v604, %v289
  %v715 = vmul.f32 %v607, %v289
  %v716 = vmul.f32 %v610, %v289
  %v717 = vmul.f32 %v613, %v289
  %v718 = vmul.f32 %v616, %v289
  %v719 = vmul.f32 %v619, %v289
  %v720 = vmul.f32 %v622, %v289
  %v721 = vmul.f32 %v625, %v289
  %v722 = vmul.f32 %v628, %v289
  %v723 = vmul.f32 %v631, %v289
  %v724 = vmul.f32 %v634, %v289
  %v725 = vmul.f32 %v637, %v289
  %v726 = vmul.f32 %v640, %v289
  %v727 = vmul.f32 %v643, %v289
  %v728 = vmul.f32 %v646, %v289
  %v729 = vmul.f32 %v649, %v289
  %v730 = vmul.f32 %v652, %v289
  %v731 = vmul.f32 %v655, %v289
  %v732 = vmul.f32 %v658, %v289
  %v733 = vmul.f32 %v661, %v289
  %v734 = vmul.f32 %v664, %v289
  %v735 = vmul.f32 %v667, %v289
  %v736 = vmul.f32 %v670, %v289
  %v737 = vmul.f32 %v673, %v289
  %v738 = vadd.f32 %v674, 1e-05
  %v739 = vadd.f32 %v675, 1e-05
  %v740 = vadd.f32 %v676, 1e-05
  %v741 = vadd.f32 %v677, 1e-05
  %v742 = vadd.f32 %v678, 1e-05
  %v743 = vadd.f32 %v679, 1e-05
  %v744 = vadd.f32 %v680, 1e-05
  %v745 = vadd.f32 %v681, 1e-05
  %v746 = vadd.f32 %v682, 1e-05
  %v747 = vadd.f32 %v683, 1e-05
  %v748 = vadd.f32 %v684, 1e-05
  %v749 = vadd.f32 %v685, 1e-05
  %v750 = vadd.f32 %v686, 1e-05
  %v751 = vadd.f32 %v687, 1e-05
  %v752 = vadd.f32 %v688, 1e-05
  %v753 = vadd.f32 %v689, 1e-05
  %v754 = vadd.f32 %v690, 1e-05
  %v755 = vadd.f32 %v691, 1e-05
  %v756 = vadd.f32 %v692, 1e-05
  %v757 = vadd.f32 %v693, 1e-05
  %v758 = vadd.f32 %v694, 1e-05
  %v759 = vadd.f32 %v695, 1e-05
  %v760 = vadd.f32 %v696, 1e-05
  %v761 = vadd.f32 %v697, 1e-05
  %v762 = vadd.f32 %v698, 1e-05
  %v763 = vadd.f32 %v699, 1e-05
  %v764 = vadd.f32 %v700, 1e-05
  %v765 = vadd.f32 %v701, 1e-05
  %v766 = vadd.f32 %v702, 1e-05
  %v767 = vadd.f32 %v703, 1e-05
  %v768 = vadd.f32 %v704, 1e-05
  %v769 = vadd.f32 %v705, 1e-05
  %v770 = vadd.f32 %v706, 1e-05
  %v771 = vadd.f32 %v707, 1e-05
  %v772 = vadd.f32 %v708, 1e-05
  %v773 = vadd.f32 %v709, 1e-05
  %v774 = vadd.f32 %v710, 1e-05
  %v775 = vadd.f32 %v711, 1e-05
  %v776 = vadd.f32 %v712, 1e-05
  %v777 = vadd.f32 %v713, 1e-05
  %v778 = vadd.f32 %v714, 1e-05
  %v779 = vadd.f32 %v715, 1e-05
  %v780 = vadd.f32 %v716, 1e-05
  %v781 = vadd.f32 %v717, 1e-05
  %v782 = vadd.f32 %v718, 1e-05
  %v783 = vadd.f32 %v719, 1e-05
  %v784 = vadd.f32 %v720, 1e-05
  %v785 = vadd.f32 %v721, 1e-05
  %v786 = vadd.f32 %v722, 1e-05
  %v787 = vadd.f32 %v723, 1e-05
  %v788 = vadd.f32 %v724, 1e-05
  %v789 = vadd.f32 %v725, 1e-05
  %v790 = vadd.f32 %v726, 1e-05
  %v791 = vadd.f32 %v727, 1e-05
  %v792 = vadd.f32 %v728, 1e-05
  %v793 = vadd.f32 %v729, 1e-05
  %v794 = vadd.f32 %v730, 1e-05
  %v795 = vadd.f32 %v731, 1e-05
  %v796 = vadd.f32 %v732, 1e-05
  %v797 = vadd.f32 %v733, 1e-05
  %v798 = vadd.f32 %v734, 1e-05
  %v799 = vadd.f32 %v735, 1e-05
  %v800 = vadd.f32 %v736, 1e-05
  %v801 = vadd.f32 %v737, 1e-05
  %v802 = vrsqrt.pop %v738
  %v803 = vrsqrt.pop %v739
  %v804 = vrsqrt.pop %v740
  %v805 = vrsqrt.pop %v741
  %v806 = vrsqrt.pop %v742
  %v807 = vrsqrt.pop %v743
  %v808 = vrsqrt.pop %v744
  %v809 = vrsqrt.pop %v745
  %v810 = vrsqrt.pop %v746
  %v811 = vrsqrt.pop %v747
  %v812 = vrsqrt.pop %v748
  %v813 = vrsqrt.pop %v749
  %v814 = vrsqrt.pop %v750
  %v815 = vrsqrt.pop %v751
  %v816 = vrsqrt.pop %v752
  %v817 = vrsqrt.pop %v753
  %v818 = vrsqrt.pop %v754
  %v819 = vrsqrt.pop %v755
  %v820 = vrsqrt.pop %v756
  %v821 = vrsqrt.pop %v757
  %v822 = vrsqrt.pop %v758
  %v823 = vrsqrt.pop %v759
  %v824 = vrsqrt.pop %v760
  %v825 = vrsqrt.pop %v761
  %v826 = vrsqrt.pop %v762
  %v827 = vrsqrt.pop %v763
  %v828 = vrsqrt.pop %v764
  %v829 = vrsqrt.pop %v765
  %v830 = vrsqrt.pop %v766
  %v831 = vrsqrt.pop %v767
  %v832 = vrsqrt.pop %v768
  %v833 = vrsqrt.pop %v769
  %v834 = vrsqrt.pop %v770
  %v835 = vrsqrt.pop %v771
  %v836 = vrsqrt.pop %v772
  %v837 = vrsqrt.pop %v773
  %v838 = vrsqrt.pop %v774
  %v839 = vrsqrt.pop %v775
  %v840 = vrsqrt.pop %v776
  %v841 = vrsqrt.pop %v777
  %v842 = vrsqrt.pop %v778
  %v843 = vrsqrt.pop %v779
  %v844 = vrsqrt.pop %v780
  %v845 = vrsqrt.pop %v781
  %v846 = vrsqrt.pop %v782
  %v847 = vrsqrt.pop %v783
  %v848 = vrsqrt.pop %v784
  %v849 = vrsqrt.pop %v785
  %v850 = vrsqrt.pop %v786
  %v851 = vrsqrt.pop %v787
  %v852 = vrsqrt.pop %v788
  %v853 = vrsqrt.pop %v789
  %v854 = vrsqrt.pop %v790
  %v855 = vrsqrt.pop %v791
  %v856 = vrsqrt.pop %v792
  %v857 = vrsqrt.pop %v793
  %v858 = vrsqrt.pop %v794
  %v859 = vrsqrt.pop %v795
  %v860 = vrsqrt.pop %v796
  %v861 = vrsqrt.pop %v797
  %v862 = vrsqrt.pop %v798
  %v863 = vrsqrt.pop %v799
  %v864 = vrsqrt.pop %v800
  %v865 = vrsqrt.pop %v801
  %v866 = vmul.f32 %v354, %v802
  %v867 = vmul.f32 %v355, %v803
  %v868 = vmul.f32 %v356, %v804
  %v869 = vmul.f32 %v357, %v805
  %v870 = vmul.f32 %v358, %v806
  %v871 = vmul.f32 %v359, %v807
  %v872 = vmul.f32 %v360, %v808
  %v873 = vmul.f32 %v361, %v809
  %v874 = vmul.f32 %v362, %v810
  %v875 = vmul.f32 %v363, %v811
  %v876 = vmul.f32 %v364, %v812
  %v877 = vmul.f32 %v365, %v813
  %v878 = vmul.f32 %v366, %v814
  %v879 = vmul.f32 %v367, %v815
  %v880 = vmul.f32 %v368, %v816
  %v881 = vmul.f32 %v369, %v817
  %v882 = vmul.f32 %v370, %v818
  %v883 = vmul.f32 %v371, %v819
  %v884 = vmul.f32 %v372, %v820
  %v885 = vmul.f32 %v373, %v821
  %v886 = vmul.f32 %v374, %v822
  %v887 = vmul.f32 %v375, %v823
  %v888 = vmul.f32 %v376, %v824
  %v889 = vmul.f32 %v377, %v825
  %v890 = vmul.f32 %v378, %v826
  %v891 = vmul.f32 %v379, %v827
  %v892 = vmul.f32 %v380, %v828
  %v893 = vmul.f32 %v381, %v829
  %v894 = vmul.f32 %v382, %v830
  %v895 = vmul.f32 %v383, %v831
  %v896 = vmul.f32 %v384, %v832
  %v897 = vmul.f32 %v385, %v833
  %v898 = vmul.f32 %v386, %v834
  %v899 = vmul.f32 %v387, %v835
  %v900 = vmul.f32 %v388, %v836
  %v901 = vmul.f32 %v389, %v837
  %v902 = vmul.f32 %v390, %v838
  %v903 = vmul.f32 %v391, %v839
  %v904 = vmul.f32 %v392, %v840
  %v905 = vmul.f32 %v393, %v841
  %v906 = vmul.f32 %v394, %v842
  %v907 = vmul.f32 %v395, %v843
  %v908 = vmul.f32 %v396, %v844
  %v909 = vmul.f32 %v397, %v845
  %v910 = vmul.f32 %v398, %v846
  %v911 = vmul.f32 %v399, %v847
  %v912 = vmul.f32 %v400, %v848
  %v913 = vmul.f32 %v401, %v849
  %v914 = vmul.f32 %v402, %v850
  %v915 = vmul.f32 %v403, %v851
  %v916 = vmul.f32 %v404, %v852
  %v917 = vmul.f32 %v405, %v853
  %v918 = vmul.f32 %v406, %v854
  %v919 = vmul.f32 %v407, %v855
  %v920 = vmul.f32 %v408, %v856
  %v921 = vmul.f32 %v409, %v857
  %v922 = vmul.f32 %v410, %v858
  %v923 = vmul.f32 %v411, %v859
  %v924 = vmul.f32 %v412, %v860
  %v925 = vmul.f32 %v413, %v861
  %v926 = vmul.f32 %v414, %v862
  %v927 = vmul.f32 %v415, %v863
  %v928 = vmul.f32 %v416, %v864
  %v929 = vmul.f32 %v417, %v865
  %v931 = vlaneseq
  %v932 = vshrl.u32 %v931, 7
  %v933 = vsub.s32 0, %v932
  %v934 = vrot.slane %v94, %v933
  %v936 = vmul.f32 %v866, %v934
  %v937 = vmul.f32 %v867, %v934
  %v938 = vmul.f32 %v868, %v934
  %v939 = vmul.f32 %v869, %v934
  %v940 = vmul.f32 %v870, %v934
  %v941 = vmul.f32 %v871, %v934
  %v942 = vmul.f32 %v872, %v934
  %v943 = vmul.f32 %v873, %v934
  %v944 = vmul.f32 %v874, %v934
  %v945 = vmul.f32 %v875, %v934
  %v946 = vmul.f32 %v876, %v934
  %v947 = vmul.f32 %v877, %v934
  %v948 = vmul.f32 %v878, %v934
  %v949 = vmul.f32 %v879, %v934
  %v950 = vmul.f32 %v880, %v934
  %v951 = vmul.f32 %v881, %v934
  %v952 = vmul.f32 %v882, %v934
  %v953 = vmul.f32 %v883, %v934
  %v954 = vmul.f32 %v884, %v934
  %v955 = vmul.f32 %v885, %v934
  %v956 = vmul.f32 %v886, %v934
  %v957 = vmul.f32 %v887, %v934
  %v958 = vmul.f32 %v888, %v934
  %v959 = vmul.f32 %v889, %v934
  %v960 = vmul.f32 %v890, %v934
  %v961 = vmul.f32 %v891, %v934
  %v962 = vmul.f32 %v892, %v934
  %v963 = vmul.f32 %v893, %v934
  %v964 = vmul.f32 %v894, %v934
  %v965 = vmul.f32 %v895, %v934
  %v966 = vmul.f32 %v896, %v934
  %v967 = vmul.f32 %v897, %v934
  %v968 = vmul.f32 %v898, %v934
  %v969 = vmul.f32 %v899, %v934
  %v970 = vmul.f32 %v900, %v934
  %v971 = vmul.f32 %v901, %v934
  %v972 = vmul.f32 %v902, %v934
  %v973 = vmul.f32 %v903, %v934
  %v974 = vmul.f32 %v904, %v934
  %v975 = vmul.f32 %v905, %v934
  %v976 = vmul.f32 %v906, %v934
  %v977 = vmul.f32 %v907, %v934
  %v978 = vmul.f32 %v908, %v934
  %v979 = vmul.f32 %v909, %v934
  %v980 = vmul.f32 %v910, %v934
  %v981 = vmul.f32 %v911, %v934
  %v982 = vmul.f32 %v912, %v934
  %v983 = vmul.f32 %v913, %v934
  %v984 = vmul.f32 %v914, %v934
  %v985 = vmul.f32 %v915, %v934
  %v986 = vmul.f32 %v916, %v934
  %v987 = vmul.f32 %v917, %v934
  %v988 = vmul.f32 %v918, %v934
  %v989 = vmul.f32 %v919, %v934
  %v990 = vmul.f32 %v920, %v934
  %v991 = vmul.f32 %v921, %v934
  %v992 = vmul.f32 %v922, %v934
  %v993 = vmul.f32 %v923, %v934
  %v994 = vmul.f32 %v924, %v934
  %v995 = vmul.f32 %v925, %v934
  %v996 = vmul.f32 %v926, %v934
  %v997 = vmul.f32 %v927, %v934
  %v998 = vmul.f32 %v928, %v934
  %v999 = vmul.f32 %v929, %v934
  %v1001 = vlaneseq
  %v1002 = vshrl.u32 %v1001, 7
  %v1003 = vsub.s32 0, %v1002
  %v1004 = vrot.slane %v95, %v1003
  %v1006 = vadd.f32 %v936, %v1004
  %v1007 = vadd.f32 %v937, %v1004
  %v1008 = vadd.f32 %v938, %v1004
  %v1009 = vadd.f32 %v939, %v1004
  %v1010 = vadd.f32 %v940, %v1004
  %v1011 = vadd.f32 %v941, %v1004
  %v1012 = vadd.f32 %v942, %v1004
  %v1013 = vadd.f32 %v943, %v1004
  %v1014 = vadd.f32 %v944, %v1004
  %v1015 = vadd.f32 %v945, %v1004
  %v1016 = vadd.f32 %v946, %v1004
  %v1017 = vadd.f32 %v947, %v1004
  %v1018 = vadd.f32 %v948, %v1004
  %v1019 = vadd.f32 %v949, %v1004
  %v1020 = vadd.f32 %v950, %v1004
  %v1021 = vadd.f32 %v951, %v1004
  %v1022 = vadd.f32 %v952, %v1004
  %v1023 = vadd.f32 %v953, %v1004
  %v1024 = vadd.f32 %v954, %v1004
  %v1025 = vadd.f32 %v955, %v1004
  %v1026 = vadd.f32 %v956, %v1004
  %v1027 = vadd.f32 %v957, %v1004
  %v1028 = vadd.f32 %v958, %v1004
  %v1029 = vadd.f32 %v959, %v1004
  %v1030 = vadd.f32 %v960, %v1004
  %v1031 = vadd.f32 %v961, %v1004
  %v1032 = vadd.f32 %v962, %v1004
  %v1033 = vadd.f32 %v963, %v1004
  %v1034 = vadd.f32 %v964, %v1004
  %v1035 = vadd.f32 %v965, %v1004
  %v1036 = vadd.f32 %v966, %v1004
  %v1037 = vadd.f32 %v967, %v1004
  %v1038 = vadd.f32 %v968, %v1004
  %v1039 = vadd.f32 %v969, %v1004
  %v1040 = vadd.f32 %v970, %v1004
  %v1041 = vadd.f32 %v971, %v1004
  %v1042 = vadd.f32 %v972, %v1004
  %v1043 = vadd.f32 %v973, %v1004
  %v1044 = vadd.f32 %v974, %v1004
  %v1045 = vadd.f32 %v975, %v1004
  %v1046 = vadd.f32 %v976, %v1004
  %v1047 = vadd.f32 %v977, %v1004
  %v1048 = vadd.f32 %v978, %v1004
  %v1049 = vadd.f32 %v979, %v1004
  %v1050 = vadd.f32 %v980, %v1004
  %v1051 = vadd.f32 %v981, %v1004
  %v1052 = vadd.f32 %v982, %v1004
  %v1053 = vadd.f32 %v983, %v1004
  %v1054 = vadd.f32 %v984, %v1004
  %v1055 = vadd.f32 %v985, %v1004
  %v1056 = vadd.f32 %v986, %v1004
  %v1057 = vadd.f32 %v987, %v1004
  %v1058 = vadd.f32 %v988, %v1004
  %v1059 = vadd.f32 %v989, %v1004
  %v1060 = vadd.f32 %v990, %v1004
  %v1061 = vadd.f32 %v991, %v1004
  %v1062 = vadd.f32 %v992, %v1004
  %v1063 = vadd.f32 %v993, %v1004
  %v1064 = vadd.f32 %v994, %v1004
  %v1065 = vadd.f32 %v995, %v1004
  %v1066 = vadd.f32 %v996, %v1004
  %v1067 = vadd.f32 %v997, %v1004
  %v1068 = vadd.f32 %v998, %v1004
  %v1069 = vadd.f32 %v999, %v1004
  %v1070 = vmul.f32 %v1006, 0.5
  %v1071 = vmul.f32 %v1007, 0.5
  %v1072 = vmul.f32 %v1008, 0.5
  %v1073 = vmul.f32 %v1009, 0.5
  %v1074 = vmul.f32 %v1010, 0.5
  %v1075 = vmul.f32 %v1011, 0.5
  %v1076 = vmul.f32 %v1012, 0.5
  %v1077 = vmul.f32 %v1013, 0.5
  %v1078 = vmul.f32 %v1014, 0.5
  %v1079 = vmul.f32 %v1015, 0.5
  %v1080 = vmul.f32 %v1016, 0.5
  %v1081 = vmul.f32 %v1017, 0.5
  %v1082 = vmul.f32 %v1018, 0.5
  %v1083 = vmul.f32 %v1019, 0.5
  %v1084 = vmul.f32 %v1020, 0.5
  %v1085 = vmul.f32 %v1021, 0.5
  %v1086 = vmul.f32 %v1022, 0.5
  %v1087 = vmul.f32 %v1023, 0.5
  %v1088 = vmul.f32 %v1024, 0.5
  %v1089 = vmul.f32 %v1025, 0.5
  %v1090 = vmul.f32 %v1026, 0.5
  %v1091 = vmul.f32 %v1027, 0.5
  %v1092 = vmul.f32 %v1028, 0.5
  %v1093 = vmul.f32 %v1029, 0.5
  %v1094 = vmul.f32 %v1030, 0.5
  %v1095 = vmul.f32 %v1031, 0.5
  %v1096 = vmul.f32 %v1032, 0.5
  %v1097 = vmul.f32 %v1033, 0.5
  %v1098 = vmul.f32 %v1034, 0.5
  %v1099 = vmul.f32 %v1035, 0.5
  %v1100 = vmul.f32 %v1036, 0.5
  %v1101 = vmul.f32 %v1037, 0.5
  %v1102 = vmul.f32 %v1038, 0.5
  %v1103 = vmul.f32 %v1039, 0.5
  %v1104 = vmul.f32 %v1040, 0.5
  %v1105 = vmul.f32 %v1041, 0.5
  %v1106 = vmul.f32 %v1042, 0.5
  %v1107 = vmul.f32 %v1043, 0.5
  %v1108 = vmul.f32 %v1044, 0.5
  %v1109 = vmul.f32 %v1045, 0.5
  %v1110 = vmul.f32 %v1046, 0.5
  %v1111 = vmul.f32 %v1047, 0.5
  %v1112 = vmul.f32 %v1048, 0.5
  %v1113 = vmul.f32 %v1049, 0.5
  %v1114 = vmul.f32 %v1050, 0.5
  %v1115 = vmul.f32 %v1051, 0.5
  %v1116 = vmul.f32 %v1052, 0.5
  %v1117 = vmul.f32 %v1053, 0.5
  %v1118 = vmul.f32 %v1054, 0.5
  %v1119 = vmul.f32 %v1055, 0.5
  %v1120 = vmul.f32 %v1056, 0.5
  %v1121 = vmul.f32 %v1057, 0.5
  %v1122 = vmul.f32 %v1058, 0.5
  %v1123 = vmul.f32 %v1059, 0.5
  %v1124 = vmul.f32 %v1060, 0.5
  %v1125 = vmul.f32 %v1061, 0.5
  %v1126 = vmul.f32 %v1062, 0.5
  %v1127 = vmul.f32 %v1063, 0.5
  %v1128 = vmul.f32 %v1064, 0.5
  %v1129 = vmul.f32 %v1065, 0.5
  %v1130 = vmul.f32 %v1066, 0.5
  %v1131 = vmul.f32 %v1067, 0.5
  %v1132 = vmul.f32 %v1068, 0.5
  %v1133 = vmul.f32 %v1069, 0.5
  %v1134 = vrcp.pop 1.4142135
  %v1135 = vmul.f32 %v1006, %v1134
  %v1136 = vmul.f32 %v1007, %v1134
  %v1137 = vmul.f32 %v1008, %v1134
  %v1138 = vmul.f32 %v1009, %v1134
  %v1139 = vmul.f32 %v1010, %v1134
  %v1140 = vmul.f32 %v1011, %v1134
  %v1141 = vmul.f32 %v1012, %v1134
  %v1142 = vmul.f32 %v1013, %v1134
  %v1143 = vmul.f32 %v1014, %v1134
  %v1144 = vmul.f32 %v1015, %v1134
  %v1145 = vmul.f32 %v1016, %v1134
  %v1146 = vmul.f32 %v1017, %v1134
  %v1147 = vmul.f32 %v1018, %v1134
  %v1148 = vmul.f32 %v1019, %v1134
  %v1149 = vmul.f32 %v1020, %v1134
  %v1150 = vmul.f32 %v1021, %v1134
  %v1151 = vmul.f32 %v1022, %v1134
  %v1152 = vmul.f32 %v1023, %v1134
  %v1153 = vmul.f32 %v1024, %v1134
  %v1154 = vmul.f32 %v1025, %v1134
  %v1155 = vmul.f32 %v1026, %v1134
  %v1156 = vmul.f32 %v1027, %v1134
  %v1157 = vmul.f32 %v1028, %v1134
  %v1158 = vmul.f32 %v1029, %v1134
  %v1159 = vmul.f32 %v1030, %v1134
  %v1160 = vmul.f32 %v1031, %v1134
  %v1161 = vmul.f32 %v1032, %v1134
  %v1162 = vmul.f32 %v1033, %v1134
  %v1163 = vmul.f32 %v1034, %v1134
  %v1164 = vmul.f32 %v1035, %v1134
  %v1165 = vmul.f32 %v1036, %v1134
  %v1166 = vmul.f32 %v1037, %v1134
  %v1167 = vmul.f32 %v1038, %v1134
  %v1168 = vmul.f32 %v1039, %v1134
  %v1169 = vmul.f32 %v1040, %v1134
  %v1170 = vmul.f32 %v1041, %v1134
  %v1171 = vmul.f32 %v1042, %v1134
  %v1172 = vmul.f32 %v1043, %v1134
  %v1173 = vmul.f32 %v1044, %v1134
  %v1174 = vmul.f32 %v1045, %v1134
  %v1175 = vmul.f32 %v1046, %v1134
  %v1176 = vmul.f32 %v1047, %v1134
  %v1177 = vmul.f32 %v1048, %v1134
  %v1178 = vmul.f32 %v1049, %v1134
  %v1179 = vmul.f32 %v1050, %v1134
  %v1180 = vmul.f32 %v1051, %v1134
  %v1181 = vmul.f32 %v1052, %v1134
  %v1182 = vmul.f32 %v1053, %v1134
  %v1183 = vmul.f32 %v1054, %v1134
  %v1184 = vmul.f32 %v1055, %v1134
  %v1185 = vmul.f32 %v1056, %v1134
  %v1186 = vmul.f32 %v1057, %v1134
  %v1187 = vmul.f32 %v1058, %v1134
  %v1188 = vmul.f32 %v1059, %v1134
  %v1189 = vmul.f32 %v1060, %v1134
  %v1190 = vmul.f32 %v1061, %v1134
  %v1191 = vmul.f32 %v1062, %v1134
  %v1192 = vmul.f32 %v1063, %v1134
  %v1193 = vmul.f32 %v1064, %v1134
  %v1194 = vmul.f32 %v1065, %v1134
  %v1195 = vmul.f32 %v1066, %v1134
  %v1196 = vmul.f32 %v1067, %v1134
  %v1197 = vmul.f32 %v1068, %v1134
  %v1198 = vmul.f32 %v1069, %v1134
  %v1199 = verf.f32.pop %v1135
  %v1200 = verf.f32.pop %v1136
  %v1201 = verf.f32.pop %v1137
  %v1202 = verf.f32.pop %v1138
  %v1203 = verf.f32.pop %v1139
  %v1204 = verf.f32.pop %v1140
  %v1205 = verf.f32.pop %v1141
  %v1206 = verf.f32.pop %v1142
  %v1207 = verf.f32.pop %v1143
  %v1208 = verf.f32.pop %v1144
  %v1209 = verf.f32.pop %v1145
  %v1210 = verf.f32.pop %v1146
  %v1211 = verf.f32.pop %v1147
  %v1212 = verf.f32.pop %v1148
  %v1213 = verf.f32.pop %v1149
  %v1214 = verf.f32.pop %v1150
  %v1215 = verf.f32.pop %v1151
  %v1216 = verf.f32.pop %v1152
  %v1217 = verf.f32.pop %v1153
  %v1218 = verf.f32.pop %v1154
  %v1219 = verf.f32.pop %v1155
  %v1220 = verf.f32.pop %v1156
  %v1221 = verf.f32.pop %v1157
  %v1222 = verf.f32.pop %v1158
  %v1223 = verf.f32.pop %v1159
  %v1224 = verf.f32.pop %v1160
  %v1225 = verf.f32.pop %v1161
  %v1226 = verf.f32.pop %v1162
  %v1227 = verf.f32.pop %v1163
  %v1228 = verf.f32.pop %v1164
  %v1229 = verf.f32.pop %v1165
  %v1230 = verf.f32.pop %v1166
  %v1231 = verf.f32.pop %v1167
  %v1232 = verf.f32.pop %v1168
  %v1233 = verf.f32.pop %v1169
  %v1234 = verf.f32.pop %v1170
  %v1235 = verf.f32.pop %v1171
  %v1236 = verf.f32.pop %v1172
  %v1237 = verf.f32.pop %v1173
  %v1238 = verf.f32.pop %v1174
  %v1239 = verf.f32.pop %v1175
  %v1240 = verf.f32.pop %v1176
  %v1241 = verf.f32.pop %v1177
  %v1242 = verf.f32.pop %v1178
  %v1243 = verf.f32.pop %v1179
  %v1244 = verf.f32.pop %v1180
  %v1245 = verf.f32.pop %v1181
  %v1246 = verf.f32.pop %v1182
  %v1247 = verf.f32.pop %v1183
  %v1248 = verf.f32.pop %v1184
  %v1249 = verf.f32.pop %v1185
  %v1250 = verf.f32.pop %v1186
  %v1251 = verf.f32.pop %v1187
  %v1252 = verf.f32.pop %v1188
  %v1253 = verf.f32.pop %v1189
  %v1254 = verf.f32.pop %v1190
  %v1255 = verf.f32.pop %v1191
  %v1256 = verf.f32.pop %v1192
  %v1257 = verf.f32.pop %v1193
  %v1258 = verf.f32.pop %v1194
  %v1259 = verf.f32.pop %v1195
  %v1260 = verf.f32.pop %v1196
  %v1261 = verf.f32.pop %v1197
  %v1262 = verf.f32.pop %v1198
  %v1263 = vadd.f32 %v1199, 1.0
  %v1264 = vadd.f32 %v1200, 1.0
  %v1265 = vadd.f32 %v1201, 1.0
  %v1266 = vadd.f32 %v1202, 1.0
  %v1267 = vadd.f32 %v1203, 1.0
  %v1268 = vadd.f32 %v1204, 1.0
  %v1269 = vadd.f32 %v1205, 1.0
  %v1270 = vadd.f32 %v1206, 1.0
  %v1271 = vadd.f32 %v1207, 1.0
  %v1272 = vadd.f32 %v1208, 1.0
  %v1273 = vadd.f32 %v1209, 1.0
  %v1274 = vadd.f32 %v1210, 1.0
  %v1275 = vadd.f32 %v1211, 1.0
  %v1276 = vadd.f32 %v1212, 1.0
  %v1277 = vadd.f32 %v1213, 1.0
  %v1278 = vadd.f32 %v1214, 1.0
  %v1279 = vadd.f32 %v1215, 1.0
  %v1280 = vadd.f32 %v1216, 1.0
  %v1281 = vadd.f32 %v1217, 1.0
  %v1282 = vadd.f32 %v1218, 1.0
  %v1283 = vadd.f32 %v1219, 1.0
  %v1284 = vadd.f32 %v1220, 1.0
  %v1285 = vadd.f32 %v1221, 1.0
  %v1286 = vadd.f32 %v1222, 1.0
  %v1287 = vadd.f32 %v1223, 1.0
  %v1288 = vadd.f32 %v1224, 1.0
  %v1289 = vadd.f32 %v1225, 1.0
  %v1290 = vadd.f32 %v1226, 1.0
  %v1291 = vadd.f32 %v1227, 1.0
  %v1292 = vadd.f32 %v1228, 1.0
  %v1293 = vadd.f32 %v1229, 1.0
  %v1294 = vadd.f32 %v1230, 1.0
  %v1295 = vadd.f32 %v1231, 1.0
  %v1296 = vadd.f32 %v1232, 1.0
  %v1297 = vadd.f32 %v1233, 1.0
  %v1298 = vadd.f32 %v1234, 1.0
  %v1299 = vadd.f32 %v1235, 1.0
  %v1300 = vadd.f32 %v1236, 1.0
  %v1301 = vadd.f32 %v1237, 1.0
  %v1302 = vadd.f32 %v1238, 1.0
  %v1303 = vadd.f32 %v1239, 1.0
  %v1304 = vadd.f32 %v1240, 1.0
  %v1305 = vadd.f32 %v1241, 1.0
  %v1306 = vadd.f32 %v1242, 1.0
  %v1307 = vadd.f32 %v1243, 1.0
  %v1308 = vadd.f32 %v1244, 1.0
  %v1309 = vadd.f32 %v1245, 1.0
  %v1310 = vadd.f32 %v1246, 1.0
  %v1311 = vadd.f32 %v1247, 1.0
  %v1312 = vadd.f32 %v1248, 1.0
  %v1313 = vadd.f32 %v1249, 1.0
  %v1314 = vadd.f32 %v1250, 1.0
  %v1315 = vadd.f32 %v1251, 1.0
  %v1316 = vadd.f32 %v1252, 1.0
  %v1317 = vadd.f32 %v1253, 1.0
  %v1318 = vadd.f32 %v1254, 1.0
  %v1319 = vadd.f32 %v1255, 1.0
  %v1320 = vadd.f32 %v1256, 1.0
  %v1321 = vadd.f32 %v1257, 1.0
  %v1322 = vadd.f32 %v1258, 1.0
  %v1323 = vadd.f32 %v1259, 1.0
  %v1324 = vadd.f32 %v1260, 1.0
  %v1325 = vadd.f32 %v1261, 1.0
  %v1326 = vadd.f32 %v1262, 1.0
  %v1327 = vmul.f32 %v1070, %v1263
  %v1328 = vmul.f32 %v1071, %v1264
  %v1329 = vmul.f32 %v1072, %v1265
  %v1330 = vmul.f32 %v1073, %v1266
  %v1331 = vmul.f32 %v1074, %v1267
  %v1332 = vmul.f32 %v1075, %v1268
  %v1333 = vmul.f32 %v1076, %v1269
  %v1334 = vmul.f32 %v1077, %v1270
  %v1335 = vmul.f32 %v1078, %v1271
  %v1336 = vmul.f32 %v1079, %v1272
  %v1337 = vmul.f32 %v1080, %v1273
  %v1338 = vmul.f32 %v1081, %v1274
  %v1339 = vmul.f32 %v1082, %v1275
  %v1340 = vmul.f32 %v1083, %v1276
  %v1341 = vmul.f32 %v1084, %v1277
  %v1342 = vmul.f32 %v1085, %v1278
  %v1343 = vmul.f32 %v1086, %v1279
  %v1344 = vmul.f32 %v1087, %v1280
  %v1345 = vmul.f32 %v1088, %v1281
  %v1346 = vmul.f32 %v1089, %v1282
  %v1347 = vmul.f32 %v1090, %v1283
  %v1348 = vmul.f32 %v1091, %v1284
  %v1349 = vmul.f32 %v1092, %v1285
  %v1350 = vmul.f32 %v1093, %v1286
  %v1351 = vmul.f32 %v1094, %v1287
  %v1352 = vmul.f32 %v1095, %v1288
  %v1353 = vmul.f32 %v1096, %v1289
  %v1354 = vmul.f32 %v1097, %v1290
  %v1355 = vmul.f32 %v1098, %v1291
  %v1356 = vmul.f32 %v1099, %v1292
  %v1357 = vmul.f32 %v1100, %v1293
  %v1358 = vmul.f32 %v1101, %v1294
  %v1359 = vmul.f32 %v1102, %v1295
  %v1360 = vmul.f32 %v1103, %v1296
  %v1361 = vmul.f32 %v1104, %v1297
  %v1362 = vmul.f32 %v1105, %v1298
  %v1363 = vmul.f32 %v1106, %v1299
  %v1364 = vmul.f32 %v1107, %v1300
  %v1365 = vmul.f32 %v1108, %v1301
  %v1366 = vmul.f32 %v1109, %v1302
  %v1367 = vmul.f32 %v1110, %v1303
  %v1368 = vmul.f32 %v1111, %v1304
  %v1369 = vmul.f32 %v1112, %v1305
  %v1370 = vmul.f32 %v1113, %v1306
  %v1371 = vmul.f32 %v1114, %v1307
  %v1372 = vmul.f32 %v1115, %v1308
  %v1373 = vmul.f32 %v1116, %v1309
  %v1374 = vmul.f32 %v1117, %v1310
  %v1375 = vmul.f32 %v1118, %v1311
  %v1376 = vmul.f32 %v1119, %v1312
  %v1377 = vmul.f32 %v1120, %v1313
  %v1378 = vmul.f32 %v1121, %v1314
  %v1379 = vmul.f32 %v1122, %v1315
  %v1380 = vmul.f32 %v1123, %v1316
  %v1381 = vmul.f32 %v1124, %v1317
  %v1382 = vmul.f32 %v1125, %v1318
  %v1383 = vmul.f32 %v1126, %v1319
  %v1384 = vmul.f32 %v1127, %v1320
  %v1385 = vmul.f32 %v1128, %v1321
  %v1386 = vmul.f32 %v1129, %v1322
  %v1387 = vmul.f32 %v1130, %v1323
  %v1388 = vmul.f32 %v1131, %v1324
  %v1389 = vmul.f32 %v1132, %v1325
  %v1390 = vmul.f32 %v1133, %v1326
  %v1391 = vpack.c.bf16 %v1328, %v1327
  %v1392 = vpack.c.bf16 %v1330, %v1329
  %v1393 = vpack.c.bf16 %v1332, %v1331
  %v1394 = vpack.c.bf16 %v1334, %v1333
  %v1395 = vpack.c.bf16 %v1336, %v1335
  %v1396 = vpack.c.bf16 %v1338, %v1337
  %v1397 = vpack.c.bf16 %v1340, %v1339
  %v1398 = vpack.c.bf16 %v1342, %v1341
  %v1399 = vpack.c.bf16 %v1344, %v1343
  %v1400 = vpack.c.bf16 %v1346, %v1345
  %v1401 = vpack.c.bf16 %v1348, %v1347
  %v1402 = vpack.c.bf16 %v1350, %v1349
  %v1403 = vpack.c.bf16 %v1352, %v1351
  %v1404 = vpack.c.bf16 %v1354, %v1353
  %v1405 = vpack.c.bf16 %v1356, %v1355
  %v1406 = vpack.c.bf16 %v1358, %v1357
  %v1407 = vpack.c.bf16 %v1360, %v1359
  %v1408 = vpack.c.bf16 %v1362, %v1361
  %v1409 = vpack.c.bf16 %v1364, %v1363
  %v1410 = vpack.c.bf16 %v1366, %v1365
  %v1411 = vpack.c.bf16 %v1368, %v1367
  %v1412 = vpack.c.bf16 %v1370, %v1369
  %v1413 = vpack.c.bf16 %v1372, %v1371
  %v1414 = vpack.c.bf16 %v1374, %v1373
  %v1415 = vpack.c.bf16 %v1376, %v1375
  %v1416 = vpack.c.bf16 %v1378, %v1377
  %v1417 = vpack.c.bf16 %v1380, %v1379
  %v1418 = vpack.c.bf16 %v1382, %v1381
  %v1419 = vpack.c.bf16 %v1384, %v1383
  %v1420 = vpack.c.bf16 %v1386, %v1385
  %v1421 = vpack.c.bf16 %v1388, %v1387
  %v1422 = vpack.c.bf16 %v1390, %v1389
  %v1423 = vld [vmem:[%s4] sm:$0xf]
  %v1424 = vld [vmem:[%s4 + $0x4] sm:$0xf]
  %v1425 = vld [vmem:[%s5] sm:$0x1]
  %v1427 = vlaneseq
  %v1428 = vshrl.u32 %v1427, 7
  %v1429 = vsub.s32 0, %v1428
  %v1430 = vrot.slane %v1425, %v1429
  %v1434 = vunpack.c.l.b16 %v1423
  %v1435 = vunpack.c.l.b16 %v1424
  %v1436 = vpack.c.b16 %v1435, %v1434
  %v1439 = vsel %vm96, %v1391, 0
  %v1442 = vsel %vm96, %v1392, 0
  %v1445 = vsel %vm96, %v1393, 0
  %v1448 = vsel %vm96, %v1394, 0
  %v1451 = vsel %vm96, %v1395, 0
  %v1454 = vsel %vm96, %v1396, 0
  %v1457 = vsel %vm96, %v1397, 0
  %v1460 = vsel %vm96, %v1398, 0
  %v1463 = vsel %vm96, %v1399, 0
  %v1466 = vsel %vm96, %v1400, 0
  %v1469 = vsel %vm96, %v1401, 0
  %v1472 = vsel %vm96, %v1402, 0
  %v1475 = vsel %vm96, %v1403, 0
  %v1478 = vsel %vm96, %v1404, 0
  %v1481 = vsel %vm96, %v1405, 0
  %v1484 = vsel %vm96, %v1406, 0
  %v1487 = vsel %vm96, %v1407, 0
  %v1490 = vsel %vm96, %v1408, 0
  %v1493 = vsel %vm96, %v1409, 0
  %v1496 = vsel %vm96, %v1410, 0
  %v1499 = vsel %vm96, %v1411, 0
  %v1502 = vsel %vm96, %v1412, 0
  %v1505 = vsel %vm96, %v1413, 0
  %v1508 = vsel %vm96, %v1414, 0
  %v1511 = vsel %vm96, %v1415, 0
  %v1514 = vsel %vm96, %v1416, 0
  %v1517 = vsel %vm96, %v1417, 0
  %v1520 = vsel %vm96, %v1418, 0
  %v1523 = vsel %vm96, %v1419, 0
  %v1526 = vsel %vm96, %v1420, 0
  %v1529 = vsel %vm96, %v1421, 0
  %v1532 = vsel %vm96, %v1422, 0
  %1534 = vmatprep.subr.bf16.mxu0 0
  %1535 = vmatpush1.bf16.msra.mxu0 %v1436
  %1536 = vmatprep.subr.bf16.mxu0 0
  %1537 = vmatpush1.bf16.msra.mxu0 0
  %1538 = vmatprep.subr.bf16.mxu0 0
  %1539 = vmatpush1.bf16.msra.mxu0 0
  %1540 = vmatprep.subr.bf16.mxu0 0
  %1541 = vmatpush1.bf16.msra.mxu0 0
  %1542 = vmatprep.subr.bf16.mxu0 0
  %1543 = vmatpush1.bf16.msra.mxu0 0
  %1544 = vmatprep.subr.bf16.mxu0 0
  %1545 = vmatpush1.bf16.msra.mxu0 0
  %1546 = vmatprep.subr.bf16.mxu0 0
  %1547 = vmatpush1.bf16.msra.mxu0 0
  %1548 = vmatprep.subr.bf16.mxu0 0
  %1549 = vmatpush1.bf16.msra.mxu0 0
  %1550 = vmatprep.subr.bf16.mxu0 0
  %1551 = vmatpush1.bf16.msra.mxu0 0
  %1552 = vmatprep.subr.bf16.mxu0 0
  %1553 = vmatpush1.bf16.msra.mxu0 0
  %1554 = vmatprep.subr.bf16.mxu0 0
  %1555 = vmatpush1.bf16.msra.mxu0 0
  %1556 = vmatprep.subr.bf16.mxu0 0
  %1557 = vmatpush1.bf16.msra.mxu0 0
  %1558 = vmatprep.subr.bf16.mxu0 0
  %1559 = vmatpush1.bf16.msra.mxu0 0
  %1560 = vmatprep.subr.bf16.mxu0 0
  %1561 = vmatpush1.bf16.msra.mxu0 0
  %1562 = vmatprep.subr.bf16.mxu0 0
  %1563 = vmatpush1.bf16.msra.mxu0 0
  %1564 = vmatprep.subr.bf16.mxu0 0
  %1565 = vmatpush1.bf16.msra.mxu0 0
  %1566 = vmatprep.mubr.bf16.mxu0 0
  %1567 = vmatmul.mubr.bf16.gmra.mrb[0].mxu0 %v1439
  %v1568 = vpop.f32.mrb[0].mxu0
  %v1569 = vadd.f32 %v1430, %v1568
  %v1570 = vpop.f32.mrb[0].mxu0
  %v1571 = vpop.f32.mrb[0].mxu0
  %v1572 = vadd.f32 %v1430, %v1571
  %v1573 = vpop.f32.mrb[0].mxu0
  %1574 = vmatprep.mubr.bf16.mxu0 0
  %1575 = vmatmul.mubr.bf16.gmra.mrb[0].mxu0 %v1442
  %v1576 = vpop.f32.mrb[0].mxu0
  %v1577 = vadd.f32 %v1430, %v1576
  %v1578 = vpop.f32.mrb[0].mxu0
  %v1579 = vpop.f32.mrb[0].mxu0
  %v1580 = vadd.f32 %v1430, %v1579
  %v1581 = vpop.f32.mrb[0].mxu0
  %1582 = vmatprep.mubr.bf16.mxu0 0
  %1583 = vmatmul.mubr.bf16.gmra.mrb[0].mxu0 %v1445
  %v1584 = vpop.f32.mrb[0].mxu0
  %v1585 = vadd.f32 %v1430, %v1584
  %v1586 = vpop.f32.mrb[0].mxu0
  %v1587 = vpop.f32.mrb[0].mxu0
  %v1588 = vadd.f32 %v1430, %v1587
  %v1589 = vpop.f32.mrb[0].mxu0
  %1590 = vmatprep.mubr.bf16.mxu0 0
  %1591 = vmatmul.mubr.bf16.gmra.mrb[0].mxu0 %v1448
  %v1592 = vpop.f32.mrb[0].mxu0
  %v1593 = vadd.f32 %v1430, %v1592
  %v1594 = vpop.f32.mrb[0].mxu0
  %v1595 = vpop.f32.mrb[0].mxu0
  %v1596 = vadd.f32 %v1430, %v1595
  %v1597 = vpop.f32.mrb[0].mxu0
  %1598 = vmatprep.mubr.bf16.mxu0 0
  %1599 = vmatmul.mubr.bf16.gmra.mrb[0].mxu0 %v1451
  %v1600 = vpop.f32.mrb[0].mxu0
  %v1601 = vadd.f32 %v1430, %v1600
  %v1602 = vpop.f32.mrb[0].mxu0
  %v1603 = vpop.f32.mrb[0].mxu0
  %v1604 = vadd.f32 %v1430, %v1603
  %v1605 = vpop.f32.mrb[0].mxu0
  %1606 = vmatprep.mubr.bf16.mxu0 0
  %1607 = vmatmul.mubr.bf16.gmra.mrb[0].mxu0 %v1454
  %v1608 = vpop.f32.mrb[0].mxu0
  %v1609 = vadd.f32 %v1430, %v1608
  %v1610 = vpop.f32.mrb[0].mxu0
  %v1611 = vpop.f32.mrb[0].mxu0
  %v1612 = vadd.f32 %v1430, %v1611
  %v1613 = vpop.f32.mrb[0].mxu0
  %1614 = vmatprep.mubr.bf16.mxu0 0
  %1615 = vmatmul.mubr.bf16.gmra.mrb[0].mxu0 %v1457
  %v1616 = vpop.f32.mrb[0].mxu0
  %v1617 = vadd.f32 %v1430, %v1616
  %v1618 = vpop.f32.mrb[0].mxu0
  %v1619 = vpop.f32.mrb[0].mxu0
  %v1620 = vadd.f32 %v1430, %v1619
  %v1621 = vpop.f32.mrb[0].mxu0
  %1622 = vmatprep.mubr.bf16.mxu0 0
  %1623 = vmatmul.mubr.bf16.gmra.mrb[0].mxu0 %v1460
  %v1624 = vpop.f32.mrb[0].mxu0
  %v1625 = vadd.f32 %v1430, %v1624
  %v1626 = vpop.f32.mrb[0].mxu0
  %v1627 = vpop.f32.mrb[0].mxu0
  %v1628 = vadd.f32 %v1430, %v1627
  %v1629 = vpop.f32.mrb[0].mxu0
  %1630 = vmatprep.mubr.bf16.mxu0 0
  %1631 = vmatmul.mubr.bf16.gmra.mrb[0].mxu0 %v1463
  %v1632 = vpop.f32.mrb[0].mxu0
  %v1633 = vadd.f32 %v1430, %v1632
  %v1634 = vpop.f32.mrb[0].mxu0
  %v1635 = vpop.f32.mrb[0].mxu0
  %v1636 = vadd.f32 %v1430, %v1635
  %v1637 = vpop.f32.mrb[0].mxu0
  %1638 = vmatprep.mubr.bf16.mxu0 0
  %1639 = vmatmul.mubr.bf16.gmra.mrb[0].mxu0 %v1466
  %v1640 = vpop.f32.mrb[0].mxu0
  %v1641 = vadd.f32 %v1430, %v1640
  %v1642 = vpop.f32.mrb[0].mxu0
  %v1643 = vpop.f32.mrb[0].mxu0
  %v1644 = vadd.f32 %v1430, %v1643
  %v1645 = vpop.f32.mrb[0].mxu0
  %1646 = vmatprep.mubr.bf16.mxu0 0
  %1647 = vmatmul.mubr.bf16.gmra.mrb[0].mxu0 %v1469
  %v1648 = vpop.f32.mrb[0].mxu0
  %v1649 = vadd.f32 %v1430, %v1648
  %v1650 = vpop.f32.mrb[0].mxu0
  %v1651 = vpop.f32.mrb[0].mxu0
  %v1652 = vadd.f32 %v1430, %v1651
  %v1653 = vpop.f32.mrb[0].mxu0
  %1654 = vmatprep.mubr.bf16.mxu0 0
  %1655 = vmatmul.mubr.bf16.gmra.mrb[0].mxu0 %v1472
  %v1656 = vpop.f32.mrb[0].mxu0
  %v1657 = vadd.f32 %v1430, %v1656
  %v1658 = vpop.f32.mrb[0].mxu0
  %v1659 = vpop.f32.mrb[0].mxu0
  %v1660 = vadd.f32 %v1430, %v1659
  %v1661 = vpop.f32.mrb[0].mxu0
  %1662 = vmatprep.mubr.bf16.mxu0 0
  %1663 = vmatmul.mubr.bf16.gmra.mrb[0].mxu0 %v1475
  %v1664 = vpop.f32.mrb[0].mxu0
  %v1665 = vadd.f32 %v1430, %v1664
  %v1666 = vpop.f32.mrb[0].mxu0
  %v1667 = vpop.f32.mrb[0].mxu0
  %v1668 = vadd.f32 %v1430, %v1667
  %v1669 = vpop.f32.mrb[0].mxu0
  %1670 = vmatprep.mubr.bf16.mxu0 0
  %1671 = vmatmul.mubr.bf16.gmra.mrb[0].mxu0 %v1478
  %v1672 = vpop.f32.mrb[0].mxu0
  %v1673 = vadd.f32 %v1430, %v1672
  %v1674 = vpop.f32.mrb[0].mxu0
  %v1675 = vpop.f32.mrb[0].mxu0
  %v1676 = vadd.f32 %v1430, %v1675
  %v1677 = vpop.f32.mrb[0].mxu0
  %1678 = vmatprep.mubr.bf16.mxu0 0
  %1679 = vmatmul.mubr.bf16.gmra.mrb[0].mxu0 %v1481
  %v1680 = vpop.f32.mrb[0].mxu0
  %v1681 = vadd.f32 %v1430, %v1680
  %v1682 = vpop.f32.mrb[0].mxu0
  %v1683 = vpop.f32.mrb[0].mxu0
  %v1684 = vadd.f32 %v1430, %v1683
  %v1685 = vpop.f32.mrb[0].mxu0
  %1686 = vmatprep.mubr.bf16.mxu0 0
  %1687 = vmatmul.mubr.bf16.gmra.mrb[0].mxu0 %v1484
  %v1688 = vpop.f32.mrb[0].mxu0
  %v1689 = vadd.f32 %v1430, %v1688
  %v1690 = vpop.f32.mrb[0].mxu0
  %v1691 = vpop.f32.mrb[0].mxu0
  %v1692 = vadd.f32 %v1430, %v1691
  %v1693 = vpop.f32.mrb[0].mxu0
  %1694 = vmatprep.mubr.bf16.mxu0 0
  %1695 = vmatmul.mubr.bf16.gmra.mrb[0].mxu0 %v1487
  %v1696 = vpop.f32.mrb[0].mxu0
  %v1697 = vadd.f32 %v1430, %v1696
  %v1698 = vpop.f32.mrb[0].mxu0
  %v1699 = vpop.f32.mrb[0].mxu0
  %v1700 = vadd.f32 %v1430, %v1699
  %v1701 = vpop.f32.mrb[0].mxu0
  %1702 = vmatprep.mubr.bf16.mxu0 0
  %1703 = vmatmul.mubr.bf16.gmra.mrb[0].mxu0 %v1490
  %v1704 = vpop.f32.mrb[0].mxu0
  %v1705 = vadd.f32 %v1430, %v1704
  %v1706 = vpop.f32.mrb[0].mxu0
  %v1707 = vpop.f32.mrb[0].mxu0
  %v1708 = vadd.f32 %v1430, %v1707
  %v1709 = vpop.f32.mrb[0].mxu0
  %1710 = vmatprep.mubr.bf16.mxu0 0
  %1711 = vmatmul.mubr.bf16.gmra.mrb[0].mxu0 %v1493
  %v1712 = vpop.f32.mrb[0].mxu0
  %v1713 = vadd.f32 %v1430, %v1712
  %v1714 = vpop.f32.mrb[0].mxu0
  %v1715 = vpop.f32.mrb[0].mxu0
  %v1716 = vadd.f32 %v1430, %v1715
  %v1717 = vpop.f32.mrb[0].mxu0
  %1718 = vmatprep.mubr.bf16.mxu0 0
  %1719 = vmatmul.mubr.bf16.gmra.mrb[0].mxu0 %v1496
  %v1720 = vpop.f32.mrb[0].mxu0
  %v1721 = vadd.f32 %v1430, %v1720
  %v1722 = vpop.f32.mrb[0].mxu0
  %v1723 = vpop.f32.mrb[0].mxu0
  %v1724 = vadd.f32 %v1430, %v1723
  %v1725 = vpop.f32.mrb[0].mxu0
  %1726 = vmatprep.mubr.bf16.mxu0 0
  %1727 = vmatmul.mubr.bf16.gmra.mrb[0].mxu0 %v1499
  %v1728 = vpop.f32.mrb[0].mxu0
  %v1729 = vadd.f32 %v1430, %v1728
  %v1730 = vpop.f32.mrb[0].mxu0
  %v1731 = vpop.f32.mrb[0].mxu0
  %v1732 = vadd.f32 %v1430, %v1731
  %v1733 = vpop.f32.mrb[0].mxu0
  %1734 = vmatprep.mubr.bf16.mxu0 0
  %1735 = vmatmul.mubr.bf16.gmra.mrb[0].mxu0 %v1502
  %v1736 = vpop.f32.mrb[0].mxu0
  %v1737 = vadd.f32 %v1430, %v1736
  %v1738 = vpop.f32.mrb[0].mxu0
  %v1739 = vpop.f32.mrb[0].mxu0
  %v1740 = vadd.f32 %v1430, %v1739
  %v1741 = vpop.f32.mrb[0].mxu0
  %1742 = vmatprep.mubr.bf16.mxu0 0
  %1743 = vmatmul.mubr.bf16.gmra.mrb[0].mxu0 %v1505
  %v1744 = vpop.f32.mrb[0].mxu0
  %v1745 = vadd.f32 %v1430, %v1744
  %v1746 = vpop.f32.mrb[0].mxu0
  %v1747 = vpop.f32.mrb[0].mxu0
  %v1748 = vadd.f32 %v1430, %v1747
  %v1749 = vpop.f32.mrb[0].mxu0
  %1750 = vmatprep.mubr.bf16.mxu0 0
  %1751 = vmatmul.mubr.bf16.gmra.mrb[0].mxu0 %v1508
  %v1752 = vpop.f32.mrb[0].mxu0
  %v1753 = vadd.f32 %v1430, %v1752
  %v1754 = vpop.f32.mrb[0].mxu0
  %v1755 = vpop.f32.mrb[0].mxu0
  %v1756 = vadd.f32 %v1430, %v1755
  %v1757 = vpop.f32.mrb[0].mxu0
  %1758 = vmatprep.mubr.bf16.mxu0 0
  %1759 = vmatmul.mubr.bf16.gmra.mrb[0].mxu0 %v1511
  %v1760 = vpop.f32.mrb[0].mxu0
  %v1761 = vadd.f32 %v1430, %v1760
  %v1762 = vpop.f32.mrb[0].mxu0
  %v1763 = vpop.f32.mrb[0].mxu0
  %v1764 = vadd.f32 %v1430, %v1763
  %v1765 = vpop.f32.mrb[0].mxu0
  %1766 = vmatprep.mubr.bf16.mxu0 0
  %1767 = vmatmul.mubr.bf16.gmra.mrb[0].mxu0 %v1514
  %v1768 = vpop.f32.mrb[0].mxu0
  %v1769 = vadd.f32 %v1430, %v1768
  %v1770 = vpop.f32.mrb[0].mxu0
  %v1771 = vpop.f32.mrb[0].mxu0
  %v1772 = vadd.f32 %v1430, %v1771
  %v1773 = vpop.f32.mrb[0].mxu0
  %1774 = vmatprep.mubr.bf16.mxu0 0
  %1775 = vmatmul.mubr.bf16.gmra.mrb[0].mxu0 %v1517
  %v1776 = vpop.f32.mrb[0].mxu0
  %v1777 = vadd.f32 %v1430, %v1776
  %v1778 = vpop.f32.mrb[0].mxu0
  %v1779 = vpop.f32.mrb[0].mxu0
  %v1780 = vadd.f32 %v1430, %v1779
  %v1781 = vpop.f32.mrb[0].mxu0
  %1782 = vmatprep.mubr.bf16.mxu0 0
  %1783 = vmatmul.mubr.bf16.gmra.mrb[0].mxu0 %v1520
  %v1784 = vpop.f32.mrb[0].mxu0
  %v1785 = vadd.f32 %v1430, %v1784
  %v1786 = vpop.f32.mrb[0].mxu0
  %v1787 = vpop.f32.mrb[0].mxu0
  %v1788 = vadd.f32 %v1430, %v1787
  %v1789 = vpop.f32.mrb[0].mxu0
  %1790 = vmatprep.mubr.bf16.mxu0 0
  %1791 = vmatmul.mubr.bf16.gmra.mrb[0].mxu0 %v1523
  %v1792 = vpop.f32.mrb[0].mxu0
  %v1793 = vadd.f32 %v1430, %v1792
  %v1794 = vpop.f32.mrb[0].mxu0
  %v1795 = vpop.f32.mrb[0].mxu0
  %v1796 = vadd.f32 %v1430, %v1795
  %v1797 = vpop.f32.mrb[0].mxu0
  %1798 = vmatprep.mubr.bf16.mxu0 0
  %1799 = vmatmul.mubr.bf16.gmra.mrb[0].mxu0 %v1526
  %v1800 = vpop.f32.mrb[0].mxu0
  %v1801 = vadd.f32 %v1430, %v1800
  %v1802 = vpop.f32.mrb[0].mxu0
  %v1803 = vpop.f32.mrb[0].mxu0
  %v1804 = vadd.f32 %v1430, %v1803
  %v1805 = vpop.f32.mrb[0].mxu0
  %1806 = vmatprep.mubr.bf16.mxu0 0
  %1807 = vmatmul.mubr.bf16.gmra.mrb[0].mxu0 %v1529
  %v1808 = vpop.f32.mrb[0].mxu0
  %v1809 = vadd.f32 %v1430, %v1808
  %v1810 = vpop.f32.mrb[0].mxu0
  %v1811 = vpop.f32.mrb[0].mxu0
  %v1812 = vadd.f32 %v1430, %v1811
  %v1813 = vpop.f32.mrb[0].mxu0
  %1814 = vmatprep.mubr.bf16.mxu0 0
  %1815 = vmatmul.mubr.bf16.gmra.mrb[0].mxu0 %v1532
  %v1816 = vpop.f32.mrb[0].mxu0
  %v1817 = vadd.f32 %v1430, %v1816
  %v1818 = vpop.f32.mrb[0].mxu0
  %v1819 = vpop.f32.mrb[0].mxu0
  %v1820 = vadd.f32 %v1430, %v1819
  %v1821 = vpop.f32.mrb[0].mxu0
  %1822 = vdwg.mxu0
  %v1823 = vld [vmem:[%s6] sm:$0x1]
  %v1824 = vld [vmem:[%s7] sm:$0x1]
  %vm1825 = vcmask 261120
  %v1826 = vsel %vm1825, %v1569, 0.0
  %1827 = vadd.xlane.f32.xlu0 %v1826
  %v1828 = vpop.xlane.xlu0 %1827
  %v1829 = vsel %vm1825, %v1572, 0.0
  %1830 = vadd.xlane.f32.xlu0 %v1829
  %v1831 = vpop.xlane.xlu0 %1830
  %v1832 = vsel %vm1825, %v1577, 0.0
  %1833 = vadd.xlane.f32.xlu0 %v1832
  %v1834 = vpop.xlane.xlu0 %1833
  %v1835 = vsel %vm1825, %v1580, 0.0
  %1836 = vadd.xlane.f32.xlu0 %v1835
  %v1837 = vpop.xlane.xlu0 %1836
  %v1838 = vsel %vm1825, %v1585, 0.0
  %1839 = vadd.xlane.f32.xlu0 %v1838
  %v1840 = vpop.xlane.xlu0 %1839
  %v1841 = vsel %vm1825, %v1588, 0.0
  %1842 = vadd.xlane.f32.xlu0 %v1841
  %v1843 = vpop.xlane.xlu0 %1842
  %v1844 = vsel %vm1825, %v1593, 0.0
  %1845 = vadd.xlane.f32.xlu0 %v1844
  %v1846 = vpop.xlane.xlu0 %1845
  %v1847 = vsel %vm1825, %v1596, 0.0
  %1848 = vadd.xlane.f32.xlu0 %v1847
  %v1849 = vpop.xlane.xlu0 %1848
  %v1850 = vsel %vm1825, %v1601, 0.0
  %1851 = vadd.xlane.f32.xlu0 %v1850
  %v1852 = vpop.xlane.xlu0 %1851
  %v1853 = vsel %vm1825, %v1604, 0.0
  %1854 = vadd.xlane.f32.xlu0 %v1853
  %v1855 = vpop.xlane.xlu0 %1854
  %v1856 = vsel %vm1825, %v1609, 0.0
  %1857 = vadd.xlane.f32.xlu0 %v1856
  %v1858 = vpop.xlane.xlu0 %1857
  %v1859 = vsel %vm1825, %v1612, 0.0
  %1860 = vadd.xlane.f32.xlu0 %v1859
  %v1861 = vpop.xlane.xlu0 %1860
  %v1862 = vsel %vm1825, %v1617, 0.0
  %1863 = vadd.xlane.f32.xlu0 %v1862
  %v1864 = vpop.xlane.xlu0 %1863
  %v1865 = vsel %vm1825, %v1620, 0.0
  %1866 = vadd.xlane.f32.xlu0 %v1865
  %v1867 = vpop.xlane.xlu0 %1866
  %v1868 = vsel %vm1825, %v1625, 0.0
  %1869 = vadd.xlane.f32.xlu0 %v1868
  %v1870 = vpop.xlane.xlu0 %1869
  %v1871 = vsel %vm1825, %v1628, 0.0
  %1872 = vadd.xlane.f32.xlu0 %v1871
  %v1873 = vpop.xlane.xlu0 %1872
  %v1874 = vsel %vm1825, %v1633, 0.0
  %1875 = vadd.xlane.f32.xlu0 %v1874
  %v1876 = vpop.xlane.xlu0 %1875
  %v1877 = vsel %vm1825, %v1636, 0.0
  %1878 = vadd.xlane.f32.xlu0 %v1877
  %v1879 = vpop.xlane.xlu0 %1878
  %v1880 = vsel %vm1825, %v1641, 0.0
  %1881 = vadd.xlane.f32.xlu0 %v1880
  %v1882 = vpop.xlane.xlu0 %1881
  %v1883 = vsel %vm1825, %v1644, 0.0
  %1884 = vadd.xlane.f32.xlu0 %v1883
  %v1885 = vpop.xlane.xlu0 %1884
  %v1886 = vsel %vm1825, %v1649, 0.0
  %1887 = vadd.xlane.f32.xlu0 %v1886
  %v1888 = vpop.xlane.xlu0 %1887
  %v1889 = vsel %vm1825, %v1652, 0.0
  %1890 = vadd.xlane.f32.xlu0 %v1889
  %v1891 = vpop.xlane.xlu0 %1890
  %v1892 = vsel %vm1825, %v1657, 0.0
  %1893 = vadd.xlane.f32.xlu0 %v1892
  %v1894 = vpop.xlane.xlu0 %1893
  %v1895 = vsel %vm1825, %v1660, 0.0
  %1896 = vadd.xlane.f32.xlu0 %v1895
  %v1897 = vpop.xlane.xlu0 %1896
  %v1898 = vsel %vm1825, %v1665, 0.0
  %1899 = vadd.xlane.f32.xlu0 %v1898
  %v1900 = vpop.xlane.xlu0 %1899
  %v1901 = vsel %vm1825, %v1668, 0.0
  %1902 = vadd.xlane.f32.xlu0 %v1901
  %v1903 = vpop.xlane.xlu0 %1902
  %v1904 = vsel %vm1825, %v1673, 0.0
  %1905 = vadd.xlane.f32.xlu0 %v1904
  %v1906 = vpop.xlane.xlu0 %1905
  %v1907 = vsel %vm1825, %v1676, 0.0
  %1908 = vadd.xlane.f32.xlu0 %v1907
  %v1909 = vpop.xlane.xlu0 %1908
  %v1910 = vsel %vm1825, %v1681, 0.0
  %1911 = vadd.xlane.f32.xlu0 %v1910
  %v1912 = vpop.xlane.xlu0 %1911
  %v1913 = vsel %vm1825, %v1684, 0.0
  %1914 = vadd.xlane.f32.xlu0 %v1913
  %v1915 = vpop.xlane.xlu0 %1914
  %v1916 = vsel %vm1825, %v1689, 0.0
  %1917 = vadd.xlane.f32.xlu0 %v1916
  %v1918 = vpop.xlane.xlu0 %1917
  %v1919 = vsel %vm1825, %v1692, 0.0
  %1920 = vadd.xlane.f32.xlu0 %v1919
  %v1921 = vpop.xlane.xlu0 %1920
  %v1922 = vsel %vm1825, %v1697, 0.0
  %1923 = vadd.xlane.f32.xlu0 %v1922
  %v1924 = vpop.xlane.xlu0 %1923
  %v1925 = vsel %vm1825, %v1700, 0.0
  %1926 = vadd.xlane.f32.xlu0 %v1925
  %v1927 = vpop.xlane.xlu0 %1926
  %v1928 = vsel %vm1825, %v1705, 0.0
  %1929 = vadd.xlane.f32.xlu0 %v1928
  %v1930 = vpop.xlane.xlu0 %1929
  %v1931 = vsel %vm1825, %v1708, 0.0
  %1932 = vadd.xlane.f32.xlu0 %v1931
  %v1933 = vpop.xlane.xlu0 %1932
  %v1934 = vsel %vm1825, %v1713, 0.0
  %1935 = vadd.xlane.f32.xlu0 %v1934
  %v1936 = vpop.xlane.xlu0 %1935
  %v1937 = vsel %vm1825, %v1716, 0.0
  %1938 = vadd.xlane.f32.xlu0 %v1937
  %v1939 = vpop.xlane.xlu0 %1938
  %v1940 = vsel %vm1825, %v1721, 0.0
  %1941 = vadd.xlane.f32.xlu0 %v1940
  %v1942 = vpop.xlane.xlu0 %1941
  %v1943 = vsel %vm1825, %v1724, 0.0
  %1944 = vadd.xlane.f32.xlu0 %v1943
  %v1945 = vpop.xlane.xlu0 %1944
  %v1946 = vsel %vm1825, %v1729, 0.0
  %1947 = vadd.xlane.f32.xlu0 %v1946
  %v1948 = vpop.xlane.xlu0 %1947
  %v1949 = vsel %vm1825, %v1732, 0.0
  %1950 = vadd.xlane.f32.xlu0 %v1949
  %v1951 = vpop.xlane.xlu0 %1950
  %v1952 = vsel %vm1825, %v1737, 0.0
  %1953 = vadd.xlane.f32.xlu0 %v1952
  %v1954 = vpop.xlane.xlu0 %1953
  %v1955 = vsel %vm1825, %v1740, 0.0
  %1956 = vadd.xlane.f32.xlu0 %v1955
  %v1957 = vpop.xlane.xlu0 %1956
  %v1958 = vsel %vm1825, %v1745, 0.0
  %1959 = vadd.xlane.f32.xlu0 %v1958
  %v1960 = vpop.xlane.xlu0 %1959
  %v1961 = vsel %vm1825, %v1748, 0.0
  %1962 = vadd.xlane.f32.xlu0 %v1961
  %v1963 = vpop.xlane.xlu0 %1962
  %v1964 = vsel %vm1825, %v1753, 0.0
  %1965 = vadd.xlane.f32.xlu0 %v1964
  %v1966 = vpop.xlane.xlu0 %1965
  %v1967 = vsel %vm1825, %v1756, 0.0
  %1968 = vadd.xlane.f32.xlu0 %v1967
  %v1969 = vpop.xlane.xlu0 %1968
  %v1970 = vsel %vm1825, %v1761, 0.0
  %1971 = vadd.xlane.f32.xlu0 %v1970
  %v1972 = vpop.xlane.xlu0 %1971
  %v1973 = vsel %vm1825, %v1764, 0.0
  %1974 = vadd.xlane.f32.xlu0 %v1973
  %v1975 = vpop.xlane.xlu0 %1974
  %v1976 = vsel %vm1825, %v1769, 0.0
  %1977 = vadd.xlane.f32.xlu0 %v1976
  %v1978 = vpop.xlane.xlu0 %1977
  %v1979 = vsel %vm1825, %v1772, 0.0
  %1980 = vadd.xlane.f32.xlu0 %v1979
  %v1981 = vpop.xlane.xlu0 %1980
  %v1982 = vsel %vm1825, %v1777, 0.0
  %1983 = vadd.xlane.f32.xlu0 %v1982
  %v1984 = vpop.xlane.xlu0 %1983
  %v1985 = vsel %vm1825, %v1780, 0.0
  %1986 = vadd.xlane.f32.xlu0 %v1985
  %v1987 = vpop.xlane.xlu0 %1986
  %v1988 = vsel %vm1825, %v1785, 0.0
  %1989 = vadd.xlane.f32.xlu0 %v1988
  %v1990 = vpop.xlane.xlu0 %1989
  %v1991 = vsel %vm1825, %v1788, 0.0
  %1992 = vadd.xlane.f32.xlu0 %v1991
  %v1993 = vpop.xlane.xlu0 %1992
  %v1994 = vsel %vm1825, %v1793, 0.0
  %1995 = vadd.xlane.f32.xlu0 %v1994
  %v1996 = vpop.xlane.xlu0 %1995
  %v1997 = vsel %vm1825, %v1796, 0.0
  %1998 = vadd.xlane.f32.xlu0 %v1997
  %v1999 = vpop.xlane.xlu0 %1998
  %v2000 = vsel %vm1825, %v1801, 0.0
  %2001 = vadd.xlane.f32.xlu0 %v2000
  %v2002 = vpop.xlane.xlu0 %2001
  %v2003 = vsel %vm1825, %v1804, 0.0
  %2004 = vadd.xlane.f32.xlu0 %v2003
  %v2005 = vpop.xlane.xlu0 %2004
  %v2006 = vsel %vm1825, %v1809, 0.0
  %2007 = vadd.xlane.f32.xlu0 %v2006
  %v2008 = vpop.xlane.xlu0 %2007
  %v2009 = vsel %vm1825, %v1812, 0.0
  %2010 = vadd.xlane.f32.xlu0 %v2009
  %v2011 = vpop.xlane.xlu0 %2010
  %v2012 = vsel %vm1825, %v1817, 0.0
  %2013 = vadd.xlane.f32.xlu0 %v2012
  %v2014 = vpop.xlane.xlu0 %2013
  %v2015 = vsel %vm1825, %v1820, 0.0
  %2016 = vadd.xlane.f32.xlu0 %v2015
  %v2017 = vpop.xlane.xlu0 %2016
  %v2018 = vrcp.pop 32.0
  %v2019 = vmul.f32 %v1828, %v2018
  %v2020 = vmul.f32 %v1831, %v2018
  %v2021 = vmul.f32 %v1834, %v2018
  %v2022 = vmul.f32 %v1837, %v2018
  %v2023 = vmul.f32 %v1840, %v2018
  %v2024 = vmul.f32 %v1843, %v2018
  %v2025 = vmul.f32 %v1846, %v2018
  %v2026 = vmul.f32 %v1849, %v2018
  %v2027 = vmul.f32 %v1852, %v2018
  %v2028 = vmul.f32 %v1855, %v2018
  %v2029 = vmul.f32 %v1858, %v2018
  %v2030 = vmul.f32 %v1861, %v2018
  %v2031 = vmul.f32 %v1864, %v2018
  %v2032 = vmul.f32 %v1867, %v2018
  %v2033 = vmul.f32 %v1870, %v2018
  %v2034 = vmul.f32 %v1873, %v2018
  %v2035 = vmul.f32 %v1876, %v2018
  %v2036 = vmul.f32 %v1879, %v2018
  %v2037 = vmul.f32 %v1882, %v2018
  %v2038 = vmul.f32 %v1885, %v2018
  %v2039 = vmul.f32 %v1888, %v2018
  %v2040 = vmul.f32 %v1891, %v2018
  %v2041 = vmul.f32 %v1894, %v2018
  %v2042 = vmul.f32 %v1897, %v2018
  %v2043 = vmul.f32 %v1900, %v2018
  %v2044 = vmul.f32 %v1903, %v2018
  %v2045 = vmul.f32 %v1906, %v2018
  %v2046 = vmul.f32 %v1909, %v2018
  %v2047 = vmul.f32 %v1912, %v2018
  %v2048 = vmul.f32 %v1915, %v2018
  %v2049 = vmul.f32 %v1918, %v2018
  %v2050 = vmul.f32 %v1921, %v2018
  %v2051 = vmul.f32 %v1924, %v2018
  %v2052 = vmul.f32 %v1927, %v2018
  %v2053 = vmul.f32 %v1930, %v2018
  %v2054 = vmul.f32 %v1933, %v2018
  %v2055 = vmul.f32 %v1936, %v2018
  %v2056 = vmul.f32 %v1939, %v2018
  %v2057 = vmul.f32 %v1942, %v2018
  %v2058 = vmul.f32 %v1945, %v2018
  %v2059 = vmul.f32 %v1948, %v2018
  %v2060 = vmul.f32 %v1951, %v2018
  %v2061 = vmul.f32 %v1954, %v2018
  %v2062 = vmul.f32 %v1957, %v2018
  %v2063 = vmul.f32 %v1960, %v2018
  %v2064 = vmul.f32 %v1963, %v2018
  %v2065 = vmul.f32 %v1966, %v2018
  %v2066 = vmul.f32 %v1969, %v2018
  %v2067 = vmul.f32 %v1972, %v2018
  %v2068 = vmul.f32 %v1975, %v2018
  %v2069 = vmul.f32 %v1978, %v2018
  %v2070 = vmul.f32 %v1981, %v2018
  %v2071 = vmul.f32 %v1984, %v2018
  %v2072 = vmul.f32 %v1987, %v2018
  %v2073 = vmul.f32 %v1990, %v2018
  %v2074 = vmul.f32 %v1993, %v2018
  %v2075 = vmul.f32 %v1996, %v2018
  %v2076 = vmul.f32 %v1999, %v2018
  %v2077 = vmul.f32 %v2002, %v2018
  %v2078 = vmul.f32 %v2005, %v2018
  %v2079 = vmul.f32 %v2008, %v2018
  %v2080 = vmul.f32 %v2011, %v2018
  %v2081 = vmul.f32 %v2014, %v2018
  %v2082 = vmul.f32 %v2017, %v2018
  %v2083 = vsub.f32 %v1569, %v2019
  %v2084 = vsub.f32 %v1572, %v2020
  %v2085 = vsub.f32 %v1577, %v2021
  %v2086 = vsub.f32 %v1580, %v2022
  %v2087 = vsub.f32 %v1585, %v2023
  %v2088 = vsub.f32 %v1588, %v2024
  %v2089 = vsub.f32 %v1593, %v2025
  %v2090 = vsub.f32 %v1596, %v2026
  %v2091 = vsub.f32 %v1601, %v2027
  %v2092 = vsub.f32 %v1604, %v2028
  %v2093 = vsub.f32 %v1609, %v2029
  %v2094 = vsub.f32 %v1612, %v2030
  %v2095 = vsub.f32 %v1617, %v2031
  %v2096 = vsub.f32 %v1620, %v2032
  %v2097 = vsub.f32 %v1625, %v2033
  %v2098 = vsub.f32 %v1628, %v2034
  %v2099 = vsub.f32 %v1633, %v2035
  %v2100 = vsub.f32 %v1636, %v2036
  %v2101 = vsub.f32 %v1641, %v2037
  %v2102 = vsub.f32 %v1644, %v2038
  %v2103 = vsub.f32 %v1649, %v2039
  %v2104 = vsub.f32 %v1652, %v2040
  %v2105 = vsub.f32 %v1657, %v2041
  %v2106 = vsub.f32 %v1660, %v2042
  %v2107 = vsub.f32 %v1665, %v2043
  %v2108 = vsub.f32 %v1668, %v2044
  %v2109 = vsub.f32 %v1673, %v2045
  %v2110 = vsub.f32 %v1676, %v2046
  %v2111 = vsub.f32 %v1681, %v2047
  %v2112 = vsub.f32 %v1684, %v2048
  %v2113 = vsub.f32 %v1689, %v2049
  %v2114 = vsub.f32 %v1692, %v2050
  %v2115 = vsub.f32 %v1697, %v2051
  %v2116 = vsub.f32 %v1700, %v2052
  %v2117 = vsub.f32 %v1705, %v2053
  %v2118 = vsub.f32 %v1708, %v2054
  %v2119 = vsub.f32 %v1713, %v2055
  %v2120 = vsub.f32 %v1716, %v2056
  %v2121 = vsub.f32 %v1721, %v2057
  %v2122 = vsub.f32 %v1724, %v2058
  %v2123 = vsub.f32 %v1729, %v2059
  %v2124 = vsub.f32 %v1732, %v2060
  %v2125 = vsub.f32 %v1737, %v2061
  %v2126 = vsub.f32 %v1740, %v2062
  %v2127 = vsub.f32 %v1745, %v2063
  %v2128 = vsub.f32 %v1748, %v2064
  %v2129 = vsub.f32 %v1753, %v2065
  %v2130 = vsub.f32 %v1756, %v2066
  %v2131 = vsub.f32 %v1761, %v2067
  %v2132 = vsub.f32 %v1764, %v2068
  %v2133 = vsub.f32 %v1769, %v2069
  %v2134 = vsub.f32 %v1772, %v2070
  %v2135 = vsub.f32 %v1777, %v2071
  %v2136 = vsub.f32 %v1780, %v2072
  %v2137 = vsub.f32 %v1785, %v2073
  %v2138 = vsub.f32 %v1788, %v2074
  %v2139 = vsub.f32 %v1793, %v2075
  %v2140 = vsub.f32 %v1796, %v2076
  %v2141 = vsub.f32 %v1801, %v2077
  %v2142 = vsub.f32 %v1804, %v2078
  %v2143 = vsub.f32 %v1809, %v2079
  %v2144 = vsub.f32 %v1812, %v2080
  %v2145 = vsub.f32 %v1817, %v2081
  %v2146 = vsub.f32 %v1820, %v2082
  %v2147 = vmul.f32 %v2083, %v2083
  %v2148 = vmul.f32 %v2084, %v2084
  %v2149 = vmul.f32 %v2085, %v2085
  %v2150 = vmul.f32 %v2086, %v2086
  %v2151 = vmul.f32 %v2087, %v2087
  %v2152 = vmul.f32 %v2088, %v2088
  %v2153 = vmul.f32 %v2089, %v2089
  %v2154 = vmul.f32 %v2090, %v2090
  %v2155 = vmul.f32 %v2091, %v2091
  %v2156 = vmul.f32 %v2092, %v2092
  %v2157 = vmul.f32 %v2093, %v2093
  %v2158 = vmul.f32 %v2094, %v2094
  %v2159 = vmul.f32 %v2095, %v2095
  %v2160 = vmul.f32 %v2096, %v2096
  %v2161 = vmul.f32 %v2097, %v2097
  %v2162 = vmul.f32 %v2098, %v2098
  %v2163 = vmul.f32 %v2099, %v2099
  %v2164 = vmul.f32 %v2100, %v2100
  %v2165 = vmul.f32 %v2101, %v2101
  %v2166 = vmul.f32 %v2102, %v2102
  %v2167 = vmul.f32 %v2103, %v2103
  %v2168 = vmul.f32 %v2104, %v2104
  %v2169 = vmul.f32 %v2105, %v2105
  %v2170 = vmul.f32 %v2106, %v2106
  %v2171 = vmul.f32 %v2107, %v2107
  %v2172 = vmul.f32 %v2108, %v2108
  %v2173 = vmul.f32 %v2109, %v2109
  %v2174 = vmul.f32 %v2110, %v2110
  %v2175 = vmul.f32 %v2111, %v2111
  %v2176 = vmul.f32 %v2112, %v2112
  %v2177 = vmul.f32 %v2113, %v2113
  %v2178 = vmul.f32 %v2114, %v2114
  %v2179 = vmul.f32 %v2115, %v2115
  %v2180 = vmul.f32 %v2116, %v2116
  %v2181 = vmul.f32 %v2117, %v2117
  %v2182 = vmul.f32 %v2118, %v2118
  %v2183 = vmul.f32 %v2119, %v2119
  %v2184 = vmul.f32 %v2120, %v2120
  %v2185 = vmul.f32 %v2121, %v2121
  %v2186 = vmul.f32 %v2122, %v2122
  %v2187 = vmul.f32 %v2123, %v2123
  %v2188 = vmul.f32 %v2124, %v2124
  %v2189 = vmul.f32 %v2125, %v2125
  %v2190 = vmul.f32 %v2126, %v2126
  %v2191 = vmul.f32 %v2127, %v2127
  %v2192 = vmul.f32 %v2128, %v2128
  %v2193 = vmul.f32 %v2129, %v2129
  %v2194 = vmul.f32 %v2130, %v2130
  %v2195 = vmul.f32 %v2131, %v2131
  %v2196 = vmul.f32 %v2132, %v2132
  %v2197 = vmul.f32 %v2133, %v2133
  %v2198 = vmul.f32 %v2134, %v2134
  %v2199 = vmul.f32 %v2135, %v2135
  %v2200 = vmul.f32 %v2136, %v2136
  %v2201 = vmul.f32 %v2137, %v2137
  %v2202 = vmul.f32 %v2138, %v2138
  %v2203 = vmul.f32 %v2139, %v2139
  %v2204 = vmul.f32 %v2140, %v2140
  %v2205 = vmul.f32 %v2141, %v2141
  %v2206 = vmul.f32 %v2142, %v2142
  %v2207 = vmul.f32 %v2143, %v2143
  %v2208 = vmul.f32 %v2144, %v2144
  %v2209 = vmul.f32 %v2145, %v2145
  %v2210 = vmul.f32 %v2146, %v2146
  %v2211 = vsel %vm1825, %v2147, 0.0
  %2212 = vadd.xlane.f32.xlu0 %v2211
  %v2213 = vpop.xlane.xlu0 %2212
  %v2214 = vsel %vm1825, %v2148, 0.0
  %2215 = vadd.xlane.f32.xlu0 %v2214
  %v2216 = vpop.xlane.xlu0 %2215
  %v2217 = vsel %vm1825, %v2149, 0.0
  %2218 = vadd.xlane.f32.xlu0 %v2217
  %v2219 = vpop.xlane.xlu0 %2218
  %v2220 = vsel %vm1825, %v2150, 0.0
  %2221 = vadd.xlane.f32.xlu0 %v2220
  %v2222 = vpop.xlane.xlu0 %2221
  %v2223 = vsel %vm1825, %v2151, 0.0
  %2224 = vadd.xlane.f32.xlu0 %v2223
  %v2225 = vpop.xlane.xlu0 %2224
  %v2226 = vsel %vm1825, %v2152, 0.0
  %2227 = vadd.xlane.f32.xlu0 %v2226
  %v2228 = vpop.xlane.xlu0 %2227
  %v2229 = vsel %vm1825, %v2153, 0.0
  %2230 = vadd.xlane.f32.xlu0 %v2229
  %v2231 = vpop.xlane.xlu0 %2230
  %v2232 = vsel %vm1825, %v2154, 0.0
  %2233 = vadd.xlane.f32.xlu0 %v2232
  %v2234 = vpop.xlane.xlu0 %2233
  %v2235 = vsel %vm1825, %v2155, 0.0
  %2236 = vadd.xlane.f32.xlu0 %v2235
  %v2237 = vpop.xlane.xlu0 %2236
  %v2238 = vsel %vm1825, %v2156, 0.0
  %2239 = vadd.xlane.f32.xlu0 %v2238
  %v2240 = vpop.xlane.xlu0 %2239
  %v2241 = vsel %vm1825, %v2157, 0.0
  %2242 = vadd.xlane.f32.xlu0 %v2241
  %v2243 = vpop.xlane.xlu0 %2242
  %v2244 = vsel %vm1825, %v2158, 0.0
  %2245 = vadd.xlane.f32.xlu0 %v2244
  %v2246 = vpop.xlane.xlu0 %2245
  %v2247 = vsel %vm1825, %v2159, 0.0
  %2248 = vadd.xlane.f32.xlu0 %v2247
  %v2249 = vpop.xlane.xlu0 %2248
  %v2250 = vsel %vm1825, %v2160, 0.0
  %2251 = vadd.xlane.f32.xlu0 %v2250
  %v2252 = vpop.xlane.xlu0 %2251
  %v2253 = vsel %vm1825, %v2161, 0.0
  %2254 = vadd.xlane.f32.xlu0 %v2253
  %v2255 = vpop.xlane.xlu0 %2254
  %v2256 = vsel %vm1825, %v2162, 0.0
  %2257 = vadd.xlane.f32.xlu0 %v2256
  %v2258 = vpop.xlane.xlu0 %2257
  %v2259 = vsel %vm1825, %v2163, 0.0
  %2260 = vadd.xlane.f32.xlu0 %v2259
  %v2261 = vpop.xlane.xlu0 %2260
  %v2262 = vsel %vm1825, %v2164, 0.0
  %2263 = vadd.xlane.f32.xlu0 %v2262
  %v2264 = vpop.xlane.xlu0 %2263
  %v2265 = vsel %vm1825, %v2165, 0.0
  %2266 = vadd.xlane.f32.xlu0 %v2265
  %v2267 = vpop.xlane.xlu0 %2266
  %v2268 = vsel %vm1825, %v2166, 0.0
  %2269 = vadd.xlane.f32.xlu0 %v2268
  %v2270 = vpop.xlane.xlu0 %2269
  %v2271 = vsel %vm1825, %v2167, 0.0
  %2272 = vadd.xlane.f32.xlu0 %v2271
  %v2273 = vpop.xlane.xlu0 %2272
  %v2274 = vsel %vm1825, %v2168, 0.0
  %2275 = vadd.xlane.f32.xlu0 %v2274
  %v2276 = vpop.xlane.xlu0 %2275
  %v2277 = vsel %vm1825, %v2169, 0.0
  %2278 = vadd.xlane.f32.xlu0 %v2277
  %v2279 = vpop.xlane.xlu0 %2278
  %v2280 = vsel %vm1825, %v2170, 0.0
  %2281 = vadd.xlane.f32.xlu0 %v2280
  %v2282 = vpop.xlane.xlu0 %2281
  %v2283 = vsel %vm1825, %v2171, 0.0
  %2284 = vadd.xlane.f32.xlu0 %v2283
  %v2285 = vpop.xlane.xlu0 %2284
  %v2286 = vsel %vm1825, %v2172, 0.0
  %2287 = vadd.xlane.f32.xlu0 %v2286
  %v2288 = vpop.xlane.xlu0 %2287
  %v2289 = vsel %vm1825, %v2173, 0.0
  %2290 = vadd.xlane.f32.xlu0 %v2289
  %v2291 = vpop.xlane.xlu0 %2290
  %v2292 = vsel %vm1825, %v2174, 0.0
  %2293 = vadd.xlane.f32.xlu0 %v2292
  %v2294 = vpop.xlane.xlu0 %2293
  %v2295 = vsel %vm1825, %v2175, 0.0
  %2296 = vadd.xlane.f32.xlu0 %v2295
  %v2297 = vpop.xlane.xlu0 %2296
  %v2298 = vsel %vm1825, %v2176, 0.0
  %2299 = vadd.xlane.f32.xlu0 %v2298
  %v2300 = vpop.xlane.xlu0 %2299
  %v2301 = vsel %vm1825, %v2177, 0.0
  %2302 = vadd.xlane.f32.xlu0 %v2301
  %v2303 = vpop.xlane.xlu0 %2302
  %v2304 = vsel %vm1825, %v2178, 0.0
  %2305 = vadd.xlane.f32.xlu0 %v2304
  %v2306 = vpop.xlane.xlu0 %2305
  %v2307 = vsel %vm1825, %v2179, 0.0
  %2308 = vadd.xlane.f32.xlu0 %v2307
  %v2309 = vpop.xlane.xlu0 %2308
  %v2310 = vsel %vm1825, %v2180, 0.0
  %2311 = vadd.xlane.f32.xlu0 %v2310
  %v2312 = vpop.xlane.xlu0 %2311
  %v2313 = vsel %vm1825, %v2181, 0.0
  %2314 = vadd.xlane.f32.xlu0 %v2313
  %v2315 = vpop.xlane.xlu0 %2314
  %v2316 = vsel %vm1825, %v2182, 0.0
  %2317 = vadd.xlane.f32.xlu0 %v2316
  %v2318 = vpop.xlane.xlu0 %2317
  %v2319 = vsel %vm1825, %v2183, 0.0
  %2320 = vadd.xlane.f32.xlu0 %v2319
  %v2321 = vpop.xlane.xlu0 %2320
  %v2322 = vsel %vm1825, %v2184, 0.0
  %2323 = vadd.xlane.f32.xlu0 %v2322
  %v2324 = vpop.xlane.xlu0 %2323
  %v2325 = vsel %vm1825, %v2185, 0.0
  %2326 = vadd.xlane.f32.xlu0 %v2325
  %v2327 = vpop.xlane.xlu0 %2326
  %v2328 = vsel %vm1825, %v2186, 0.0
  %2329 = vadd.xlane.f32.xlu0 %v2328
  %v2330 = vpop.xlane.xlu0 %2329
  %v2331 = vsel %vm1825, %v2187, 0.0
  %2332 = vadd.xlane.f32.xlu0 %v2331
  %v2333 = vpop.xlane.xlu0 %2332
  %v2334 = vsel %vm1825, %v2188, 0.0
  %2335 = vadd.xlane.f32.xlu0 %v2334
  %v2336 = vpop.xlane.xlu0 %2335
  %v2337 = vsel %vm1825, %v2189, 0.0
  %2338 = vadd.xlane.f32.xlu0 %v2337
  %v2339 = vpop.xlane.xlu0 %2338
  %v2340 = vsel %vm1825, %v2190, 0.0
  %2341 = vadd.xlane.f32.xlu0 %v2340
  %v2342 = vpop.xlane.xlu0 %2341
  %v2343 = vsel %vm1825, %v2191, 0.0
  %2344 = vadd.xlane.f32.xlu0 %v2343
  %v2345 = vpop.xlane.xlu0 %2344
  %v2346 = vsel %vm1825, %v2192, 0.0
  %2347 = vadd.xlane.f32.xlu0 %v2346
  %v2348 = vpop.xlane.xlu0 %2347
  %v2349 = vsel %vm1825, %v2193, 0.0
  %2350 = vadd.xlane.f32.xlu0 %v2349
  %v2351 = vpop.xlane.xlu0 %2350
  %v2352 = vsel %vm1825, %v2194, 0.0
  %2353 = vadd.xlane.f32.xlu0 %v2352
  %v2354 = vpop.xlane.xlu0 %2353
  %v2355 = vsel %vm1825, %v2195, 0.0
  %2356 = vadd.xlane.f32.xlu0 %v2355
  %v2357 = vpop.xlane.xlu0 %2356
  %v2358 = vsel %vm1825, %v2196, 0.0
  %2359 = vadd.xlane.f32.xlu0 %v2358
  %v2360 = vpop.xlane.xlu0 %2359
  %v2361 = vsel %vm1825, %v2197, 0.0
  %2362 = vadd.xlane.f32.xlu0 %v2361
  %v2363 = vpop.xlane.xlu0 %2362
  %v2364 = vsel %vm1825, %v2198, 0.0
  %2365 = vadd.xlane.f32.xlu0 %v2364
  %v2366 = vpop.xlane.xlu0 %2365
  %v2367 = vsel %vm1825, %v2199, 0.0
  %2368 = vadd.xlane.f32.xlu0 %v2367
  %v2369 = vpop.xlane.xlu0 %2368
  %v2370 = vsel %vm1825, %v2200, 0.0
  %2371 = vadd.xlane.f32.xlu0 %v2370
  %v2372 = vpop.xlane.xlu0 %2371
  %v2373 = vsel %vm1825, %v2201, 0.0
  %2374 = vadd.xlane.f32.xlu0 %v2373
  %v2375 = vpop.xlane.xlu0 %2374
  %v2376 = vsel %vm1825, %v2202, 0.0
  %2377 = vadd.xlane.f32.xlu0 %v2376
  %v2378 = vpop.xlane.xlu0 %2377
  %v2379 = vsel %vm1825, %v2203, 0.0
  %2380 = vadd.xlane.f32.xlu0 %v2379
  %v2381 = vpop.xlane.xlu0 %2380
  %v2382 = vsel %vm1825, %v2204, 0.0
  %2383 = vadd.xlane.f32.xlu0 %v2382
  %v2384 = vpop.xlane.xlu0 %2383
  %v2385 = vsel %vm1825, %v2205, 0.0
  %2386 = vadd.xlane.f32.xlu0 %v2385
  %v2387 = vpop.xlane.xlu0 %2386
  %v2388 = vsel %vm1825, %v2206, 0.0
  %2389 = vadd.xlane.f32.xlu0 %v2388
  %v2390 = vpop.xlane.xlu0 %2389
  %v2391 = vsel %vm1825, %v2207, 0.0
  %2392 = vadd.xlane.f32.xlu0 %v2391
  %v2393 = vpop.xlane.xlu0 %2392
  %v2394 = vsel %vm1825, %v2208, 0.0
  %2395 = vadd.xlane.f32.xlu0 %v2394
  %v2396 = vpop.xlane.xlu0 %2395
  %v2397 = vsel %vm1825, %v2209, 0.0
  %2398 = vadd.xlane.f32.xlu0 %v2397
  %v2399 = vpop.xlane.xlu0 %2398
  %v2400 = vsel %vm1825, %v2210, 0.0
  %2401 = vadd.xlane.f32.xlu0 %v2400
  %v2402 = vpop.xlane.xlu0 %2401
  %v2403 = vmul.f32 %v2213, %v2018
  %v2404 = vmul.f32 %v2216, %v2018
  %v2405 = vmul.f32 %v2219, %v2018
  %v2406 = vmul.f32 %v2222, %v2018
  %v2407 = vmul.f32 %v2225, %v2018
  %v2408 = vmul.f32 %v2228, %v2018
  %v2409 = vmul.f32 %v2231, %v2018
  %v2410 = vmul.f32 %v2234, %v2018
  %v2411 = vmul.f32 %v2237, %v2018
  %v2412 = vmul.f32 %v2240, %v2018
  %v2413 = vmul.f32 %v2243, %v2018
  %v2414 = vmul.f32 %v2246, %v2018
  %v2415 = vmul.f32 %v2249, %v2018
  %v2416 = vmul.f32 %v2252, %v2018
  %v2417 = vmul.f32 %v2255, %v2018
  %v2418 = vmul.f32 %v2258, %v2018
  %v2419 = vmul.f32 %v2261, %v2018
  %v2420 = vmul.f32 %v2264, %v2018
  %v2421 = vmul.f32 %v2267, %v2018
  %v2422 = vmul.f32 %v2270, %v2018
  %v2423 = vmul.f32 %v2273, %v2018
  %v2424 = vmul.f32 %v2276, %v2018
  %v2425 = vmul.f32 %v2279, %v2018
  %v2426 = vmul.f32 %v2282, %v2018
  %v2427 = vmul.f32 %v2285, %v2018
  %v2428 = vmul.f32 %v2288, %v2018
  %v2429 = vmul.f32 %v2291, %v2018
  %v2430 = vmul.f32 %v2294, %v2018
  %v2431 = vmul.f32 %v2297, %v2018
  %v2432 = vmul.f32 %v2300, %v2018
  %v2433 = vmul.f32 %v2303, %v2018
  %v2434 = vmul.f32 %v2306, %v2018
  %v2435 = vmul.f32 %v2309, %v2018
  %v2436 = vmul.f32 %v2312, %v2018
  %v2437 = vmul.f32 %v2315, %v2018
  %v2438 = vmul.f32 %v2318, %v2018
  %v2439 = vmul.f32 %v2321, %v2018
  %v2440 = vmul.f32 %v2324, %v2018
  %v2441 = vmul.f32 %v2327, %v2018
  %v2442 = vmul.f32 %v2330, %v2018
  %v2443 = vmul.f32 %v2333, %v2018
  %v2444 = vmul.f32 %v2336, %v2018
  %v2445 = vmul.f32 %v2339, %v2018
  %v2446 = vmul.f32 %v2342, %v2018
  %v2447 = vmul.f32 %v2345, %v2018
  %v2448 = vmul.f32 %v2348, %v2018
  %v2449 = vmul.f32 %v2351, %v2018
  %v2450 = vmul.f32 %v2354, %v2018
  %v2451 = vmul.f32 %v2357, %v2018
  %v2452 = vmul.f32 %v2360, %v2018
  %v2453 = vmul.f32 %v2363, %v2018
  %v2454 = vmul.f32 %v2366, %v2018
  %v2455 = vmul.f32 %v2369, %v2018
  %v2456 = vmul.f32 %v2372, %v2018
  %v2457 = vmul.f32 %v2375, %v2018
  %v2458 = vmul.f32 %v2378, %v2018
  %v2459 = vmul.f32 %v2381, %v2018
  %v2460 = vmul.f32 %v2384, %v2018
  %v2461 = vmul.f32 %v2387, %v2018
  %v2462 = vmul.f32 %v2390, %v2018
  %v2463 = vmul.f32 %v2393, %v2018
  %v2464 = vmul.f32 %v2396, %v2018
  %v2465 = vmul.f32 %v2399, %v2018
  %v2466 = vmul.f32 %v2402, %v2018
  %v2467 = vadd.f32 %v2403, 1e-05
  %v2468 = vadd.f32 %v2404, 1e-05
  %v2469 = vadd.f32 %v2405, 1e-05
  %v2470 = vadd.f32 %v2406, 1e-05
  %v2471 = vadd.f32 %v2407, 1e-05
  %v2472 = vadd.f32 %v2408, 1e-05
  %v2473 = vadd.f32 %v2409, 1e-05
  %v2474 = vadd.f32 %v2410, 1e-05
  %v2475 = vadd.f32 %v2411, 1e-05
  %v2476 = vadd.f32 %v2412, 1e-05
  %v2477 = vadd.f32 %v2413, 1e-05
  %v2478 = vadd.f32 %v2414, 1e-05
  %v2479 = vadd.f32 %v2415, 1e-05
  %v2480 = vadd.f32 %v2416, 1e-05
  %v2481 = vadd.f32 %v2417, 1e-05
  %v2482 = vadd.f32 %v2418, 1e-05
  %v2483 = vadd.f32 %v2419, 1e-05
  %v2484 = vadd.f32 %v2420, 1e-05
  %v2485 = vadd.f32 %v2421, 1e-05
  %v2486 = vadd.f32 %v2422, 1e-05
  %v2487 = vadd.f32 %v2423, 1e-05
  %v2488 = vadd.f32 %v2424, 1e-05
  %v2489 = vadd.f32 %v2425, 1e-05
  %v2490 = vadd.f32 %v2426, 1e-05
  %v2491 = vadd.f32 %v2427, 1e-05
  %v2492 = vadd.f32 %v2428, 1e-05
  %v2493 = vadd.f32 %v2429, 1e-05
  %v2494 = vadd.f32 %v2430, 1e-05
  %v2495 = vadd.f32 %v2431, 1e-05
  %v2496 = vadd.f32 %v2432, 1e-05
  %v2497 = vadd.f32 %v2433, 1e-05
  %v2498 = vadd.f32 %v2434, 1e-05
  %v2499 = vadd.f32 %v2435, 1e-05
  %v2500 = vadd.f32 %v2436, 1e-05
  %v2501 = vadd.f32 %v2437, 1e-05
  %v2502 = vadd.f32 %v2438, 1e-05
  %v2503 = vadd.f32 %v2439, 1e-05
  %v2504 = vadd.f32 %v2440, 1e-05
  %v2505 = vadd.f32 %v2441, 1e-05
  %v2506 = vadd.f32 %v2442, 1e-05
  %v2507 = vadd.f32 %v2443, 1e-05
  %v2508 = vadd.f32 %v2444, 1e-05
  %v2509 = vadd.f32 %v2445, 1e-05
  %v2510 = vadd.f32 %v2446, 1e-05
  %v2511 = vadd.f32 %v2447, 1e-05
  %v2512 = vadd.f32 %v2448, 1e-05
  %v2513 = vadd.f32 %v2449, 1e-05
  %v2514 = vadd.f32 %v2450, 1e-05
  %v2515 = vadd.f32 %v2451, 1e-05
  %v2516 = vadd.f32 %v2452, 1e-05
  %v2517 = vadd.f32 %v2453, 1e-05
  %v2518 = vadd.f32 %v2454, 1e-05
  %v2519 = vadd.f32 %v2455, 1e-05
  %v2520 = vadd.f32 %v2456, 1e-05
  %v2521 = vadd.f32 %v2457, 1e-05
  %v2522 = vadd.f32 %v2458, 1e-05
  %v2523 = vadd.f32 %v2459, 1e-05
  %v2524 = vadd.f32 %v2460, 1e-05
  %v2525 = vadd.f32 %v2461, 1e-05
  %v2526 = vadd.f32 %v2462, 1e-05
  %v2527 = vadd.f32 %v2463, 1e-05
  %v2528 = vadd.f32 %v2464, 1e-05
  %v2529 = vadd.f32 %v2465, 1e-05
  %v2530 = vadd.f32 %v2466, 1e-05
  %v2531 = vrsqrt.pop %v2467
  %v2532 = vrsqrt.pop %v2468
  %v2533 = vrsqrt.pop %v2469
  %v2534 = vrsqrt.pop %v2470
  %v2535 = vrsqrt.pop %v2471
  %v2536 = vrsqrt.pop %v2472
  %v2537 = vrsqrt.pop %v2473
  %v2538 = vrsqrt.pop %v2474
  %v2539 = vrsqrt.pop %v2475
  %v2540 = vrsqrt.pop %v2476
  %v2541 = vrsqrt.pop %v2477
  %v2542 = vrsqrt.pop %v2478
  %v2543 = vrsqrt.pop %v2479
  %v2544 = vrsqrt.pop %v2480
  %v2545 = vrsqrt.pop %v2481
  %v2546 = vrsqrt.pop %v2482
  %v2547 = vrsqrt.pop %v2483
  %v2548 = vrsqrt.pop %v2484
  %v2549 = vrsqrt.pop %v2485
  %v2550 = vrsqrt.pop %v2486
  %v2551 = vrsqrt.pop %v2487
  %v2552 = vrsqrt.pop %v2488
  %v2553 = vrsqrt.pop %v2489
  %v2554 = vrsqrt.pop %v2490
  %v2555 = vrsqrt.pop %v2491
  %v2556 = vrsqrt.pop %v2492
  %v2557 = vrsqrt.pop %v2493
  %v2558 = vrsqrt.pop %v2494
  %v2559 = vrsqrt.pop %v2495
  %v2560 = vrsqrt.pop %v2496
  %v2561 = vrsqrt.pop %v2497
  %v2562 = vrsqrt.pop %v2498
  %v2563 = vrsqrt.pop %v2499
  %v2564 = vrsqrt.pop %v2500
  %v2565 = vrsqrt.pop %v2501
  %v2566 = vrsqrt.pop %v2502
  %v2567 = vrsqrt.pop %v2503
  %v2568 = vrsqrt.pop %v2504
  %v2569 = vrsqrt.pop %v2505
  %v2570 = vrsqrt.pop %v2506
  %v2571 = vrsqrt.pop %v2507
  %v2572 = vrsqrt.pop %v2508
  %v2573 = vrsqrt.pop %v2509
  %v2574 = vrsqrt.pop %v2510
  %v2575 = vrsqrt.pop %v2511
  %v2576 = vrsqrt.pop %v2512
  %v2577 = vrsqrt.pop %v2513
  %v2578 = vrsqrt.pop %v2514
  %v2579 = vrsqrt.pop %v2515
  %v2580 = vrsqrt.pop %v2516
  %v2581 = vrsqrt.pop %v2517
  %v2582 = vrsqrt.pop %v2518
  %v2583 = vrsqrt.pop %v2519
  %v2584 = vrsqrt.pop %v2520
  %v2585 = vrsqrt.pop %v2521
  %v2586 = vrsqrt.pop %v2522
  %v2587 = vrsqrt.pop %v2523
  %v2588 = vrsqrt.pop %v2524
  %v2589 = vrsqrt.pop %v2525
  %v2590 = vrsqrt.pop %v2526
  %v2591 = vrsqrt.pop %v2527
  %v2592 = vrsqrt.pop %v2528
  %v2593 = vrsqrt.pop %v2529
  %v2594 = vrsqrt.pop %v2530
  %v2595 = vmul.f32 %v2083, %v2531
  %v2596 = vmul.f32 %v2084, %v2532
  %v2597 = vmul.f32 %v2085, %v2533
  %v2598 = vmul.f32 %v2086, %v2534
  %v2599 = vmul.f32 %v2087, %v2535
  %v2600 = vmul.f32 %v2088, %v2536
  %v2601 = vmul.f32 %v2089, %v2537
  %v2602 = vmul.f32 %v2090, %v2538
  %v2603 = vmul.f32 %v2091, %v2539
  %v2604 = vmul.f32 %v2092, %v2540
  %v2605 = vmul.f32 %v2093, %v2541
  %v2606 = vmul.f32 %v2094, %v2542
  %v2607 = vmul.f32 %v2095, %v2543
  %v2608 = vmul.f32 %v2096, %v2544
  %v2609 = vmul.f32 %v2097, %v2545
  %v2610 = vmul.f32 %v2098, %v2546
  %v2611 = vmul.f32 %v2099, %v2547
  %v2612 = vmul.f32 %v2100, %v2548
  %v2613 = vmul.f32 %v2101, %v2549
  %v2614 = vmul.f32 %v2102, %v2550
  %v2615 = vmul.f32 %v2103, %v2551
  %v2616 = vmul.f32 %v2104, %v2552
  %v2617 = vmul.f32 %v2105, %v2553
  %v2618 = vmul.f32 %v2106, %v2554
  %v2619 = vmul.f32 %v2107, %v2555
  %v2620 = vmul.f32 %v2108, %v2556
  %v2621 = vmul.f32 %v2109, %v2557
  %v2622 = vmul.f32 %v2110, %v2558
  %v2623 = vmul.f32 %v2111, %v2559
  %v2624 = vmul.f32 %v2112, %v2560
  %v2625 = vmul.f32 %v2113, %v2561
  %v2626 = vmul.f32 %v2114, %v2562
  %v2627 = vmul.f32 %v2115, %v2563
  %v2628 = vmul.f32 %v2116, %v2564
  %v2629 = vmul.f32 %v2117, %v2565
  %v2630 = vmul.f32 %v2118, %v2566
  %v2631 = vmul.f32 %v2119, %v2567
  %v2632 = vmul.f32 %v2120, %v2568
  %v2633 = vmul.f32 %v2121, %v2569
  %v2634 = vmul.f32 %v2122, %v2570
  %v2635 = vmul.f32 %v2123, %v2571
  %v2636 = vmul.f32 %v2124, %v2572
  %v2637 = vmul.f32 %v2125, %v2573
  %v2638 = vmul.f32 %v2126, %v2574
  %v2639 = vmul.f32 %v2127, %v2575
  %v2640 = vmul.f32 %v2128, %v2576
  %v2641 = vmul.f32 %v2129, %v2577
  %v2642 = vmul.f32 %v2130, %v2578
  %v2643 = vmul.f32 %v2131, %v2579
  %v2644 = vmul.f32 %v2132, %v2580
  %v2645 = vmul.f32 %v2133, %v2581
  %v2646 = vmul.f32 %v2134, %v2582
  %v2647 = vmul.f32 %v2135, %v2583
  %v2648 = vmul.f32 %v2136, %v2584
  %v2649 = vmul.f32 %v2137, %v2585
  %v2650 = vmul.f32 %v2138, %v2586
  %v2651 = vmul.f32 %v2139, %v2587
  %v2652 = vmul.f32 %v2140, %v2588
  %v2653 = vmul.f32 %v2141, %v2589
  %v2654 = vmul.f32 %v2142, %v2590
  %v2655 = vmul.f32 %v2143, %v2591
  %v2656 = vmul.f32 %v2144, %v2592
  %v2657 = vmul.f32 %v2145, %v2593
  %v2658 = vmul.f32 %v2146, %v2594
  %v2660 = vlaneseq
  %v2661 = vshrl.u32 %v2660, 7
  %v2662 = vsub.s32 0, %v2661
  %v2663 = vrot.slane %v1823, %v2662
  %v2665 = vmul.f32 %v2595, %v2663
  %v2666 = vmul.f32 %v2596, %v2663
  %v2667 = vmul.f32 %v2597, %v2663
  %v2668 = vmul.f32 %v2598, %v2663
  %v2669 = vmul.f32 %v2599, %v2663
  %v2670 = vmul.f32 %v2600, %v2663
  %v2671 = vmul.f32 %v2601, %v2663
  %v2672 = vmul.f32 %v2602, %v2663
  %v2673 = vmul.f32 %v2603, %v2663
  %v2674 = vmul.f32 %v2604, %v2663
  %v2675 = vmul.f32 %v2605, %v2663
  %v2676 = vmul.f32 %v2606, %v2663
  %v2677 = vmul.f32 %v2607, %v2663
  %v2678 = vmul.f32 %v2608, %v2663
  %v2679 = vmul.f32 %v2609, %v2663
  %v2680 = vmul.f32 %v2610, %v2663
  %v2681 = vmul.f32 %v2611, %v2663
  %v2682 = vmul.f32 %v2612, %v2663
  %v2683 = vmul.f32 %v2613, %v2663
  %v2684 = vmul.f32 %v2614, %v2663
  %v2685 = vmul.f32 %v2615, %v2663
  %v2686 = vmul.f32 %v2616, %v2663
  %v2687 = vmul.f32 %v2617, %v2663
  %v2688 = vmul.f32 %v2618, %v2663
  %v2689 = vmul.f32 %v2619, %v2663
  %v2690 = vmul.f32 %v2620, %v2663
  %v2691 = vmul.f32 %v2621, %v2663
  %v2692 = vmul.f32 %v2622, %v2663
  %v2693 = vmul.f32 %v2623, %v2663
  %v2694 = vmul.f32 %v2624, %v2663
  %v2695 = vmul.f32 %v2625, %v2663
  %v2696 = vmul.f32 %v2626, %v2663
  %v2697 = vmul.f32 %v2627, %v2663
  %v2698 = vmul.f32 %v2628, %v2663
  %v2699 = vmul.f32 %v2629, %v2663
  %v2700 = vmul.f32 %v2630, %v2663
  %v2701 = vmul.f32 %v2631, %v2663
  %v2702 = vmul.f32 %v2632, %v2663
  %v2703 = vmul.f32 %v2633, %v2663
  %v2704 = vmul.f32 %v2634, %v2663
  %v2705 = vmul.f32 %v2635, %v2663
  %v2706 = vmul.f32 %v2636, %v2663
  %v2707 = vmul.f32 %v2637, %v2663
  %v2708 = vmul.f32 %v2638, %v2663
  %v2709 = vmul.f32 %v2639, %v2663
  %v2710 = vmul.f32 %v2640, %v2663
  %v2711 = vmul.f32 %v2641, %v2663
  %v2712 = vmul.f32 %v2642, %v2663
  %v2713 = vmul.f32 %v2643, %v2663
  %v2714 = vmul.f32 %v2644, %v2663
  %v2715 = vmul.f32 %v2645, %v2663
  %v2716 = vmul.f32 %v2646, %v2663
  %v2717 = vmul.f32 %v2647, %v2663
  %v2718 = vmul.f32 %v2648, %v2663
  %v2719 = vmul.f32 %v2649, %v2663
  %v2720 = vmul.f32 %v2650, %v2663
  %v2721 = vmul.f32 %v2651, %v2663
  %v2722 = vmul.f32 %v2652, %v2663
  %v2723 = vmul.f32 %v2653, %v2663
  %v2724 = vmul.f32 %v2654, %v2663
  %v2725 = vmul.f32 %v2655, %v2663
  %v2726 = vmul.f32 %v2656, %v2663
  %v2727 = vmul.f32 %v2657, %v2663
  %v2728 = vmul.f32 %v2658, %v2663
  %v2730 = vlaneseq
  %v2731 = vshrl.u32 %v2730, 7
  %v2732 = vsub.s32 0, %v2731
  %v2733 = vrot.slane %v1824, %v2732
  %v2735 = vadd.f32 %v2665, %v2733
  %v2736 = vadd.f32 %v2666, %v2733
  %v2737 = vadd.f32 %v2667, %v2733
  %v2738 = vadd.f32 %v2668, %v2733
  %v2739 = vadd.f32 %v2669, %v2733
  %v2740 = vadd.f32 %v2670, %v2733
  %v2741 = vadd.f32 %v2671, %v2733
  %v2742 = vadd.f32 %v2672, %v2733
  %v2743 = vadd.f32 %v2673, %v2733
  %v2744 = vadd.f32 %v2674, %v2733
  %v2745 = vadd.f32 %v2675, %v2733
  %v2746 = vadd.f32 %v2676, %v2733
  %v2747 = vadd.f32 %v2677, %v2733
  %v2748 = vadd.f32 %v2678, %v2733
  %v2749 = vadd.f32 %v2679, %v2733
  %v2750 = vadd.f32 %v2680, %v2733
  %v2751 = vadd.f32 %v2681, %v2733
  %v2752 = vadd.f32 %v2682, %v2733
  %v2753 = vadd.f32 %v2683, %v2733
  %v2754 = vadd.f32 %v2684, %v2733
  %v2755 = vadd.f32 %v2685, %v2733
  %v2756 = vadd.f32 %v2686, %v2733
  %v2757 = vadd.f32 %v2687, %v2733
  %v2758 = vadd.f32 %v2688, %v2733
  %v2759 = vadd.f32 %v2689, %v2733
  %v2760 = vadd.f32 %v2690, %v2733
  %v2761 = vadd.f32 %v2691, %v2733
  %v2762 = vadd.f32 %v2692, %v2733
  %v2763 = vadd.f32 %v2693, %v2733
  %v2764 = vadd.f32 %v2694, %v2733
  %v2765 = vadd.f32 %v2695, %v2733
  %v2766 = vadd.f32 %v2696, %v2733
  %v2767 = vadd.f32 %v2697, %v2733
  %v2768 = vadd.f32 %v2698, %v2733
  %v2769 = vadd.f32 %v2699, %v2733
  %v2770 = vadd.f32 %v2700, %v2733
  %v2771 = vadd.f32 %v2701, %v2733
  %v2772 = vadd.f32 %v2702, %v2733
  %v2773 = vadd.f32 %v2703, %v2733
  %v2774 = vadd.f32 %v2704, %v2733
  %v2775 = vadd.f32 %v2705, %v2733
  %v2776 = vadd.f32 %v2706, %v2733
  %v2777 = vadd.f32 %v2707, %v2733
  %v2778 = vadd.f32 %v2708, %v2733
  %v2779 = vadd.f32 %v2709, %v2733
  %v2780 = vadd.f32 %v2710, %v2733
  %v2781 = vadd.f32 %v2711, %v2733
  %v2782 = vadd.f32 %v2712, %v2733
  %v2783 = vadd.f32 %v2713, %v2733
  %v2784 = vadd.f32 %v2714, %v2733
  %v2785 = vadd.f32 %v2715, %v2733
  %v2786 = vadd.f32 %v2716, %v2733
  %v2787 = vadd.f32 %v2717, %v2733
  %v2788 = vadd.f32 %v2718, %v2733
  %v2789 = vadd.f32 %v2719, %v2733
  %v2790 = vadd.f32 %v2720, %v2733
  %v2791 = vadd.f32 %v2721, %v2733
  %v2792 = vadd.f32 %v2722, %v2733
  %v2793 = vadd.f32 %v2723, %v2733
  %v2794 = vadd.f32 %v2724, %v2733
  %v2795 = vadd.f32 %v2725, %v2733
  %v2796 = vadd.f32 %v2726, %v2733
  %v2797 = vadd.f32 %v2727, %v2733
  %v2798 = vadd.f32 %v2728, %v2733
  %v2799 = vmul.f32 %v2735, 0.5
  %v2800 = vmul.f32 %v2736, 0.5
  %v2801 = vmul.f32 %v2737, 0.5
  %v2802 = vmul.f32 %v2738, 0.5
  %v2803 = vmul.f32 %v2739, 0.5
  %v2804 = vmul.f32 %v2740, 0.5
  %v2805 = vmul.f32 %v2741, 0.5
  %v2806 = vmul.f32 %v2742, 0.5
  %v2807 = vmul.f32 %v2743, 0.5
  %v2808 = vmul.f32 %v2744, 0.5
  %v2809 = vmul.f32 %v2745, 0.5
  %v2810 = vmul.f32 %v2746, 0.5
  %v2811 = vmul.f32 %v2747, 0.5
  %v2812 = vmul.f32 %v2748, 0.5
  %v2813 = vmul.f32 %v2749, 0.5
  %v2814 = vmul.f32 %v2750, 0.5
  %v2815 = vmul.f32 %v2751, 0.5
  %v2816 = vmul.f32 %v2752, 0.5
  %v2817 = vmul.f32 %v2753, 0.5
  %v2818 = vmul.f32 %v2754, 0.5
  %v2819 = vmul.f32 %v2755, 0.5
  %v2820 = vmul.f32 %v2756, 0.5
  %v2821 = vmul.f32 %v2757, 0.5
  %v2822 = vmul.f32 %v2758, 0.5
  %v2823 = vmul.f32 %v2759, 0.5
  %v2824 = vmul.f32 %v2760, 0.5
  %v2825 = vmul.f32 %v2761, 0.5
  %v2826 = vmul.f32 %v2762, 0.5
  %v2827 = vmul.f32 %v2763, 0.5
  %v2828 = vmul.f32 %v2764, 0.5
  %v2829 = vmul.f32 %v2765, 0.5
  %v2830 = vmul.f32 %v2766, 0.5
  %v2831 = vmul.f32 %v2767, 0.5
  %v2832 = vmul.f32 %v2768, 0.5
  %v2833 = vmul.f32 %v2769, 0.5
  %v2834 = vmul.f32 %v2770, 0.5
  %v2835 = vmul.f32 %v2771, 0.5
  %v2836 = vmul.f32 %v2772, 0.5
  %v2837 = vmul.f32 %v2773, 0.5
  %v2838 = vmul.f32 %v2774, 0.5
  %v2839 = vmul.f32 %v2775, 0.5
  %v2840 = vmul.f32 %v2776, 0.5
  %v2841 = vmul.f32 %v2777, 0.5
  %v2842 = vmul.f32 %v2778, 0.5
  %v2843 = vmul.f32 %v2779, 0.5
  %v2844 = vmul.f32 %v2780, 0.5
  %v2845 = vmul.f32 %v2781, 0.5
  %v2846 = vmul.f32 %v2782, 0.5
  %v2847 = vmul.f32 %v2783, 0.5
  %v2848 = vmul.f32 %v2784, 0.5
  %v2849 = vmul.f32 %v2785, 0.5
  %v2850 = vmul.f32 %v2786, 0.5
  %v2851 = vmul.f32 %v2787, 0.5
  %v2852 = vmul.f32 %v2788, 0.5
  %v2853 = vmul.f32 %v2789, 0.5
  %v2854 = vmul.f32 %v2790, 0.5
  %v2855 = vmul.f32 %v2791, 0.5
  %v2856 = vmul.f32 %v2792, 0.5
  %v2857 = vmul.f32 %v2793, 0.5
  %v2858 = vmul.f32 %v2794, 0.5
  %v2859 = vmul.f32 %v2795, 0.5
  %v2860 = vmul.f32 %v2796, 0.5
  %v2861 = vmul.f32 %v2797, 0.5
  %v2862 = vmul.f32 %v2798, 0.5
  %v2863 = vmul.f32 %v2735, %v1134
  %v2864 = vmul.f32 %v2736, %v1134
  %v2865 = vmul.f32 %v2737, %v1134
  %v2866 = vmul.f32 %v2738, %v1134
  %v2867 = vmul.f32 %v2739, %v1134
  %v2868 = vmul.f32 %v2740, %v1134
  %v2869 = vmul.f32 %v2741, %v1134
  %v2870 = vmul.f32 %v2742, %v1134
  %v2871 = vmul.f32 %v2743, %v1134
  %v2872 = vmul.f32 %v2744, %v1134
  %v2873 = vmul.f32 %v2745, %v1134
  %v2874 = vmul.f32 %v2746, %v1134
  %v2875 = vmul.f32 %v2747, %v1134
  %v2876 = vmul.f32 %v2748, %v1134
  %v2877 = vmul.f32 %v2749, %v1134
  %v2878 = vmul.f32 %v2750, %v1134
  %v2879 = vmul.f32 %v2751, %v1134
  %v2880 = vmul.f32 %v2752, %v1134
  %v2881 = vmul.f32 %v2753, %v1134
  %v2882 = vmul.f32 %v2754, %v1134
  %v2883 = vmul.f32 %v2755, %v1134
  %v2884 = vmul.f32 %v2756, %v1134
  %v2885 = vmul.f32 %v2757, %v1134
  %v2886 = vmul.f32 %v2758, %v1134
  %v2887 = vmul.f32 %v2759, %v1134
  %v2888 = vmul.f32 %v2760, %v1134
  %v2889 = vmul.f32 %v2761, %v1134
  %v2890 = vmul.f32 %v2762, %v1134
  %v2891 = vmul.f32 %v2763, %v1134
  %v2892 = vmul.f32 %v2764, %v1134
  %v2893 = vmul.f32 %v2765, %v1134
  %v2894 = vmul.f32 %v2766, %v1134
  %v2895 = vmul.f32 %v2767, %v1134
  %v2896 = vmul.f32 %v2768, %v1134
  %v2897 = vmul.f32 %v2769, %v1134
  %v2898 = vmul.f32 %v2770, %v1134
  %v2899 = vmul.f32 %v2771, %v1134
  %v2900 = vmul.f32 %v2772, %v1134
  %v2901 = vmul.f32 %v2773, %v1134
  %v2902 = vmul.f32 %v2774, %v1134
  %v2903 = vmul.f32 %v2775, %v1134
  %v2904 = vmul.f32 %v2776, %v1134
  %v2905 = vmul.f32 %v2777, %v1134
  %v2906 = vmul.f32 %v2778, %v1134
  %v2907 = vmul.f32 %v2779, %v1134
  %v2908 = vmul.f32 %v2780, %v1134
  %v2909 = vmul.f32 %v2781, %v1134
  %v2910 = vmul.f32 %v2782, %v1134
  %v2911 = vmul.f32 %v2783, %v1134
  %v2912 = vmul.f32 %v2784, %v1134
  %v2913 = vmul.f32 %v2785, %v1134
  %v2914 = vmul.f32 %v2786, %v1134
  %v2915 = vmul.f32 %v2787, %v1134
  %v2916 = vmul.f32 %v2788, %v1134
  %v2917 = vmul.f32 %v2789, %v1134
  %v2918 = vmul.f32 %v2790, %v1134
  %v2919 = vmul.f32 %v2791, %v1134
  %v2920 = vmul.f32 %v2792, %v1134
  %v2921 = vmul.f32 %v2793, %v1134
  %v2922 = vmul.f32 %v2794, %v1134
  %v2923 = vmul.f32 %v2795, %v1134
  %v2924 = vmul.f32 %v2796, %v1134
  %v2925 = vmul.f32 %v2797, %v1134
  %v2926 = vmul.f32 %v2798, %v1134
  %v2927 = verf.f32.pop %v2863
  %v2928 = verf.f32.pop %v2864
  %v2929 = verf.f32.pop %v2865
  %v2930 = verf.f32.pop %v2866
  %v2931 = verf.f32.pop %v2867
  %v2932 = verf.f32.pop %v2868
  %v2933 = verf.f32.pop %v2869
  %v2934 = verf.f32.pop %v2870
  %v2935 = verf.f32.pop %v2871
  %v2936 = verf.f32.pop %v2872
  %v2937 = verf.f32.pop %v2873
  %v2938 = verf.f32.pop %v2874
  %v2939 = verf.f32.pop %v2875
  %v2940 = verf.f32.pop %v2876
  %v2941 = verf.f32.pop %v2877
  %v2942 = verf.f32.pop %v2878
  %v2943 = verf.f32.pop %v2879
  %v2944 = verf.f32.pop %v2880
  %v2945 = verf.f32.pop %v2881
  %v2946 = verf.f32.pop %v2882
  %v2947 = verf.f32.pop %v2883
  %v2948 = verf.f32.pop %v2884
  %v2949 = verf.f32.pop %v2885
  %v2950 = verf.f32.pop %v2886
  %v2951 = verf.f32.pop %v2887
  %v2952 = verf.f32.pop %v2888
  %v2953 = verf.f32.pop %v2889
  %v2954 = verf.f32.pop %v2890
  %v2955 = verf.f32.pop %v2891
  %v2956 = verf.f32.pop %v2892
  %v2957 = verf.f32.pop %v2893
  %v2958 = verf.f32.pop %v2894
  %v2959 = verf.f32.pop %v2895
  %v2960 = verf.f32.pop %v2896
  %v2961 = verf.f32.pop %v2897
  %v2962 = verf.f32.pop %v2898
  %v2963 = verf.f32.pop %v2899
  %v2964 = verf.f32.pop %v2900
  %v2965 = verf.f32.pop %v2901
  %v2966 = verf.f32.pop %v2902
  %v2967 = verf.f32.pop %v2903
  %v2968 = verf.f32.pop %v2904
  %v2969 = verf.f32.pop %v2905
  %v2970 = verf.f32.pop %v2906
  %v2971 = verf.f32.pop %v2907
  %v2972 = verf.f32.pop %v2908
  %v2973 = verf.f32.pop %v2909
  %v2974 = verf.f32.pop %v2910
  %v2975 = verf.f32.pop %v2911
  %v2976 = verf.f32.pop %v2912
  %v2977 = verf.f32.pop %v2913
  %v2978 = verf.f32.pop %v2914
  %v2979 = verf.f32.pop %v2915
  %v2980 = verf.f32.pop %v2916
  %v2981 = verf.f32.pop %v2917
  %v2982 = verf.f32.pop %v2918
  %v2983 = verf.f32.pop %v2919
  %v2984 = verf.f32.pop %v2920
  %v2985 = verf.f32.pop %v2921
  %v2986 = verf.f32.pop %v2922
  %v2987 = verf.f32.pop %v2923
  %v2988 = verf.f32.pop %v2924
  %v2989 = verf.f32.pop %v2925
  %v2990 = verf.f32.pop %v2926
  %v2991 = vadd.f32 %v2927, 1.0
  %v2992 = vadd.f32 %v2928, 1.0
  %v2993 = vadd.f32 %v2929, 1.0
  %v2994 = vadd.f32 %v2930, 1.0
  %v2995 = vadd.f32 %v2931, 1.0
  %v2996 = vadd.f32 %v2932, 1.0
  %v2997 = vadd.f32 %v2933, 1.0
  %v2998 = vadd.f32 %v2934, 1.0
  %v2999 = vadd.f32 %v2935, 1.0
  %v3000 = vadd.f32 %v2936, 1.0
  %v3001 = vadd.f32 %v2937, 1.0
  %v3002 = vadd.f32 %v2938, 1.0
  %v3003 = vadd.f32 %v2939, 1.0
  %v3004 = vadd.f32 %v2940, 1.0
  %v3005 = vadd.f32 %v2941, 1.0
  %v3006 = vadd.f32 %v2942, 1.0
  %v3007 = vadd.f32 %v2943, 1.0
  %v3008 = vadd.f32 %v2944, 1.0
  %v3009 = vadd.f32 %v2945, 1.0
  %v3010 = vadd.f32 %v2946, 1.0
  %v3011 = vadd.f32 %v2947, 1.0
  %v3012 = vadd.f32 %v2948, 1.0
  %v3013 = vadd.f32 %v2949, 1.0
  %v3014 = vadd.f32 %v2950, 1.0
  %v3015 = vadd.f32 %v2951, 1.0
  %v3016 = vadd.f32 %v2952, 1.0
  %v3017 = vadd.f32 %v2953, 1.0
  %v3018 = vadd.f32 %v2954, 1.0
  %v3019 = vadd.f32 %v2955, 1.0
  %v3020 = vadd.f32 %v2956, 1.0
  %v3021 = vadd.f32 %v2957, 1.0
  %v3022 = vadd.f32 %v2958, 1.0
  %v3023 = vadd.f32 %v2959, 1.0
  %v3024 = vadd.f32 %v2960, 1.0
  %v3025 = vadd.f32 %v2961, 1.0
  %v3026 = vadd.f32 %v2962, 1.0
  %v3027 = vadd.f32 %v2963, 1.0
  %v3028 = vadd.f32 %v2964, 1.0
  %v3029 = vadd.f32 %v2965, 1.0
  %v3030 = vadd.f32 %v2966, 1.0
  %v3031 = vadd.f32 %v2967, 1.0
  %v3032 = vadd.f32 %v2968, 1.0
  %v3033 = vadd.f32 %v2969, 1.0
  %v3034 = vadd.f32 %v2970, 1.0
  %v3035 = vadd.f32 %v2971, 1.0
  %v3036 = vadd.f32 %v2972, 1.0
  %v3037 = vadd.f32 %v2973, 1.0
  %v3038 = vadd.f32 %v2974, 1.0
  %v3039 = vadd.f32 %v2975, 1.0
  %v3040 = vadd.f32 %v2976, 1.0
  %v3041 = vadd.f32 %v2977, 1.0
  %v3042 = vadd.f32 %v2978, 1.0
  %v3043 = vadd.f32 %v2979, 1.0
  %v3044 = vadd.f32 %v2980, 1.0
  %v3045 = vadd.f32 %v2981, 1.0
  %v3046 = vadd.f32 %v2982, 1.0
  %v3047 = vadd.f32 %v2983, 1.0
  %v3048 = vadd.f32 %v2984, 1.0
  %v3049 = vadd.f32 %v2985, 1.0
  %v3050 = vadd.f32 %v2986, 1.0
  %v3051 = vadd.f32 %v2987, 1.0
  %v3052 = vadd.f32 %v2988, 1.0
  %v3053 = vadd.f32 %v2989, 1.0
  %v3054 = vadd.f32 %v2990, 1.0
  %v3055 = vmul.f32 %v2799, %v2991
  %v3056 = vmul.f32 %v2800, %v2992
  %v3057 = vmul.f32 %v2801, %v2993
  %v3058 = vmul.f32 %v2802, %v2994
  %v3059 = vmul.f32 %v2803, %v2995
  %v3060 = vmul.f32 %v2804, %v2996
  %v3061 = vmul.f32 %v2805, %v2997
  %v3062 = vmul.f32 %v2806, %v2998
  %v3063 = vmul.f32 %v2807, %v2999
  %v3064 = vmul.f32 %v2808, %v3000
  %v3065 = vmul.f32 %v2809, %v3001
  %v3066 = vmul.f32 %v2810, %v3002
  %v3067 = vmul.f32 %v2811, %v3003
  %v3068 = vmul.f32 %v2812, %v3004
  %v3069 = vmul.f32 %v2813, %v3005
  %v3070 = vmul.f32 %v2814, %v3006
  %v3071 = vmul.f32 %v2815, %v3007
  %v3072 = vmul.f32 %v2816, %v3008
  %v3073 = vmul.f32 %v2817, %v3009
  %v3074 = vmul.f32 %v2818, %v3010
  %v3075 = vmul.f32 %v2819, %v3011
  %v3076 = vmul.f32 %v2820, %v3012
  %v3077 = vmul.f32 %v2821, %v3013
  %v3078 = vmul.f32 %v2822, %v3014
  %v3079 = vmul.f32 %v2823, %v3015
  %v3080 = vmul.f32 %v2824, %v3016
  %v3081 = vmul.f32 %v2825, %v3017
  %v3082 = vmul.f32 %v2826, %v3018
  %v3083 = vmul.f32 %v2827, %v3019
  %v3084 = vmul.f32 %v2828, %v3020
  %v3085 = vmul.f32 %v2829, %v3021
  %v3086 = vmul.f32 %v2830, %v3022
  %v3087 = vmul.f32 %v2831, %v3023
  %v3088 = vmul.f32 %v2832, %v3024
  %v3089 = vmul.f32 %v2833, %v3025
  %v3090 = vmul.f32 %v2834, %v3026
  %v3091 = vmul.f32 %v2835, %v3027
  %v3092 = vmul.f32 %v2836, %v3028
  %v3093 = vmul.f32 %v2837, %v3029
  %v3094 = vmul.f32 %v2838, %v3030
  %v3095 = vmul.f32 %v2839, %v3031
  %v3096 = vmul.f32 %v2840, %v3032
  %v3097 = vmul.f32 %v2841, %v3033
  %v3098 = vmul.f32 %v2842, %v3034
  %v3099 = vmul.f32 %v2843, %v3035
  %v3100 = vmul.f32 %v2844, %v3036
  %v3101 = vmul.f32 %v2845, %v3037
  %v3102 = vmul.f32 %v2846, %v3038
  %v3103 = vmul.f32 %v2847, %v3039
  %v3104 = vmul.f32 %v2848, %v3040
  %v3105 = vmul.f32 %v2849, %v3041
  %v3106 = vmul.f32 %v2850, %v3042
  %v3107 = vmul.f32 %v2851, %v3043
  %v3108 = vmul.f32 %v2852, %v3044
  %v3109 = vmul.f32 %v2853, %v3045
  %v3110 = vmul.f32 %v2854, %v3046
  %v3111 = vmul.f32 %v2855, %v3047
  %v3112 = vmul.f32 %v2856, %v3048
  %v3113 = vmul.f32 %v2857, %v3049
  %v3114 = vmul.f32 %v2858, %v3050
  %v3115 = vmul.f32 %v2859, %v3051
  %v3116 = vmul.f32 %v2860, %v3052
  %v3117 = vmul.f32 %v2861, %v3053
  %v3118 = vmul.f32 %v2862, %v3054
  %v3119 = vld [vmem:[%s1] sm:$0xf]
  %v3120 = vld [vmem:[%s1 + $0x4] sm:$0xf]
  %v3121 = vld [vmem:[%s1 + $0x8] sm:$0xf]
  %v3122 = vld [vmem:[%s1 + $0xc] sm:$0xf]
  %v3123 = vld [vmem:[%s1 + $0x10] sm:$0xf]
  %v3124 = vld [vmem:[%s1 + $0x14] sm:$0xf]
  %v3125 = vld [vmem:[%s1 + $0x18] sm:$0xf]
  %v3126 = vld [vmem:[%s1 + $0x1c] sm:$0xf]
  %v3127 = vld [vmem:[%s1 + $0x20] sm:$0xf]
  %v3128 = vld [vmem:[%s1 + $0x24] sm:$0xf]
  %v3129 = vld [vmem:[%s1 + $0x28] sm:$0xf]
  %v3130 = vld [vmem:[%s1 + $0x2c] sm:$0xf]
  %v3131 = vld [vmem:[%s1 + $0x30] sm:$0xf]
  %v3132 = vld [vmem:[%s1 + $0x34] sm:$0xf]
  %v3133 = vld [vmem:[%s1 + $0x38] sm:$0xf]
  %v3134 = vld [vmem:[%s1 + $0x3c] sm:$0xf]
  %v3135 = vld [vmem:[%s1 + $0x40] sm:$0xf]
  %v3136 = vld [vmem:[%s1 + $0x44] sm:$0xf]
  %v3137 = vld [vmem:[%s1 + $0x48] sm:$0xf]
  %v3138 = vld [vmem:[%s1 + $0x4c] sm:$0xf]
  %v3139 = vld [vmem:[%s1 + $0x50] sm:$0xf]
  %v3140 = vld [vmem:[%s1 + $0x54] sm:$0xf]
  %v3141 = vld [vmem:[%s1 + $0x58] sm:$0xf]
  %v3142 = vld [vmem:[%s1 + $0x5c] sm:$0xf]
  %v3143 = vld [vmem:[%s1 + $0x60] sm:$0xf]
  %v3144 = vld [vmem:[%s1 + $0x64] sm:$0xf]
  %v3145 = vld [vmem:[%s1 + $0x68] sm:$0xf]
  %v3146 = vld [vmem:[%s1 + $0x6c] sm:$0xf]
  %v3147 = vld [vmem:[%s1 + $0x70] sm:$0xf]
  %v3148 = vld [vmem:[%s1 + $0x74] sm:$0xf]
  %v3149 = vld [vmem:[%s1 + $0x78] sm:$0xf]
  %v3150 = vld [vmem:[%s1 + $0x7c] sm:$0xf]
  %v3151 = vld [vmem:[%s1 + $0x80] sm:$0xf]
  %v3152 = vld [vmem:[%s1 + $0x84] sm:$0xf]
  %v3153 = vld [vmem:[%s1 + $0x88] sm:$0xf]
  %v3154 = vld [vmem:[%s1 + $0x8c] sm:$0xf]
  %v3155 = vld [vmem:[%s1 + $0x90] sm:$0xf]
  %v3156 = vld [vmem:[%s1 + $0x94] sm:$0xf]
  %v3157 = vld [vmem:[%s1 + $0x98] sm:$0xf]
  %v3158 = vld [vmem:[%s1 + $0x9c] sm:$0xf]
  %v3159 = vld [vmem:[%s1 + $0xa0] sm:$0xf]
  %v3160 = vld [vmem:[%s1 + $0xa4] sm:$0xf]
  %v3161 = vld [vmem:[%s1 + $0xa8] sm:$0xf]
  %v3162 = vld [vmem:[%s1 + $0xac] sm:$0xf]
  %v3163 = vld [vmem:[%s1 + $0xb0] sm:$0xf]
  %v3164 = vld [vmem:[%s1 + $0xb4] sm:$0xf]
  %v3165 = vld [vmem:[%s1 + $0xb8] sm:$0xf]
  %v3166 = vld [vmem:[%s1 + $0xbc] sm:$0xf]
  %v3167 = vld [vmem:[%s1 + $0xc0] sm:$0xf]
  %v3168 = vld [vmem:[%s1 + $0xc4] sm:$0xf]
  %v3169 = vld [vmem:[%s1 + $0xc8] sm:$0xf]
  %v3170 = vld [vmem:[%s1 + $0xcc] sm:$0xf]
  %v3171 = vld [vmem:[%s1 + $0xd0] sm:$0xf]
  %v3172 = vld [vmem:[%s1 + $0xd4] sm:$0xf]
  %v3173 = vld [vmem:[%s1 + $0xd8] sm:$0xf]
  %v3174 = vld [vmem:[%s1 + $0xdc] sm:$0xf]
  %v3175 = vld [vmem:[%s1 + $0xe0] sm:$0xf]
  %v3176 = vld [vmem:[%s1 + $0xe4] sm:$0xf]
  %v3177 = vld [vmem:[%s1 + $0xe8] sm:$0xf]
  %v3178 = vld [vmem:[%s1 + $0xec] sm:$0xf]
  %v3179 = vld [vmem:[%s1 + $0xf0] sm:$0xf]
  %v3180 = vld [vmem:[%s1 + $0xf4] sm:$0xf]
  %v3181 = vld [vmem:[%s1 + $0xf8] sm:$0xf]
  %v3182 = vld [vmem:[%s1 + $0xfc] sm:$0xf]
  %v3183 = vunpack.c.l.bf16 %v3119
  %v3184 = vunpack.c.l.bf16 %v3120
  %v3185 = vunpack.c.l.bf16 %v3121
  %v3186 = vunpack.c.l.bf16 %v3122
  %v3187 = vunpack.c.l.bf16 %v3123
  %v3188 = vunpack.c.l.bf16 %v3124
  %v3189 = vunpack.c.l.bf16 %v3125
  %v3190 = vunpack.c.l.bf16 %v3126
  %v3191 = vunpack.c.l.bf16 %v3127
  %v3192 = vunpack.c.l.bf16 %v3128
  %v3193 = vunpack.c.l.bf16 %v3129
  %v3194 = vunpack.c.l.bf16 %v3130
  %v3195 = vunpack.c.l.bf16 %v3131
  %v3196 = vunpack.c.l.bf16 %v3132
  %v3197 = vunpack.c.l.bf16 %v3133
  %v3198 = vunpack.c.l.bf16 %v3134
  %v3199 = vunpack.c.l.bf16 %v3135
  %v3200 = vunpack.c.l.bf16 %v3136
  %v3201 = vunpack.c.l.bf16 %v3137
  %v3202 = vunpack.c.l.bf16 %v3138
  %v3203 = vunpack.c.l.bf16 %v3139
  %v3204 = vunpack.c.l.bf16 %v3140
  %v3205 = vunpack.c.l.bf16 %v3141
  %v3206 = vunpack.c.l.bf16 %v3142
  %v3207 = vunpack.c.l.bf16 %v3143
  %v3208 = vunpack.c.l.bf16 %v3144
  %v3209 = vunpack.c.l.bf16 %v3145
  %v3210 = vunpack.c.l.bf16 %v3146
  %v3211 = vunpack.c.l.bf16 %v3147
  %v3212 = vunpack.c.l.bf16 %v3148
  %v3213 = vunpack.c.l.bf16 %v3149
  %v3214 = vunpack.c.l.bf16 %v3150
  %v3215 = vunpack.c.l.bf16 %v3151
  %v3216 = vunpack.c.l.bf16 %v3152
  %v3217 = vunpack.c.l.bf16 %v3153
  %v3218 = vunpack.c.l.bf16 %v3154
  %v3219 = vunpack.c.l.bf16 %v3155
  %v3220 = vunpack.c.l.bf16 %v3156
  %v3221 = vunpack.c.l.bf16 %v3157
  %v3222 = vunpack.c.l.bf16 %v3158
  %v3223 = vunpack.c.l.bf16 %v3159
  %v3224 = vunpack.c.l.bf16 %v3160
  %v3225 = vunpack.c.l.bf16 %v3161
  %v3226 = vunpack.c.l.bf16 %v3162
  %v3227 = vunpack.c.l.bf16 %v3163
  %v3228 = vunpack.c.l.bf16 %v3164
  %v3229 = vunpack.c.l.bf16 %v3165
  %v3230 = vunpack.c.l.bf16 %v3166
  %v3231 = vunpack.c.l.bf16 %v3167
  %v3232 = vunpack.c.l.bf16 %v3168
  %v3233 = vunpack.c.l.bf16 %v3169
  %v3234 = vunpack.c.l.bf16 %v3170
  %v3235 = vunpack.c.l.bf16 %v3171
  %v3236 = vunpack.c.l.bf16 %v3172
  %v3237 = vunpack.c.l.bf16 %v3173
  %v3238 = vunpack.c.l.bf16 %v3174
  %v3239 = vunpack.c.l.bf16 %v3175
  %v3240 = vunpack.c.l.bf16 %v3176
  %v3241 = vunpack.c.l.bf16 %v3177
  %v3242 = vunpack.c.l.bf16 %v3178
  %v3243 = vunpack.c.l.bf16 %v3179
  %v3244 = vunpack.c.l.bf16 %v3180
  %v3245 = vunpack.c.l.bf16 %v3181
  %v3246 = vunpack.c.l.bf16 %v3182
  %3248 = vset.pattern.permute.xlu0 0
  %3249 = vperm.xlu0 %3248, %v3183
  %v3250 = vpop.permute.xlu0 %3249
  %3253 = vset.pattern.permute.xlu0 0
  %3254 = vperm.xlu0 %3253, %v3184
  %v3255 = vpop.permute.xlu0 %3254
  %3258 = vset.pattern.permute.xlu0 0
  %3259 = vperm.xlu0 %3258, %v3185
  %v3260 = vpop.permute.xlu0 %3259
  %3263 = vset.pattern.permute.xlu0 0
  %3264 = vperm.xlu0 %3263, %v3186
  %v3265 = vpop.permute.xlu0 %3264
  %3268 = vset.pattern.permute.xlu0 0
  %3269 = vperm.xlu0 %3268, %v3187
  %v3270 = vpop.permute.xlu0 %3269
  %3273 = vset.pattern.permute.xlu0 0
  %3274 = vperm.xlu0 %3273, %v3188
  %v3275 = vpop.permute.xlu0 %3274
  %3278 = vset.pattern.permute.xlu0 0
  %3279 = vperm.xlu0 %3278, %v3189
  %v3280 = vpop.permute.xlu0 %3279
  %3283 = vset.pattern.permute.xlu0 0
  %3284 = vperm.xlu0 %3283, %v3190
  %v3285 = vpop.permute.xlu0 %3284
  %3288 = vset.pattern.permute.xlu0 0
  %3289 = vperm.xlu0 %3288, %v3191
  %v3290 = vpop.permute.xlu0 %3289
  %3293 = vset.pattern.permute.xlu0 0
  %3294 = vperm.xlu0 %3293, %v3192
  %v3295 = vpop.permute.xlu0 %3294
  %3298 = vset.pattern.permute.xlu0 0
  %3299 = vperm.xlu0 %3298, %v3193
  %v3300 = vpop.permute.xlu0 %3299
  %3303 = vset.pattern.permute.xlu0 0
  %3304 = vperm.xlu0 %3303, %v3194
  %v3305 = vpop.permute.xlu0 %3304
  %3308 = vset.pattern.permute.xlu0 0
  %3309 = vperm.xlu0 %3308, %v3195
  %v3310 = vpop.permute.xlu0 %3309
  %3313 = vset.pattern.permute.xlu0 0
  %3314 = vperm.xlu0 %3313, %v3196
  %v3315 = vpop.permute.xlu0 %3314
  %3318 = vset.pattern.permute.xlu0 0
  %3319 = vperm.xlu0 %3318, %v3197
  %v3320 = vpop.permute.xlu0 %3319
  %3323 = vset.pattern.permute.xlu0 0
  %3324 = vperm.xlu0 %3323, %v3198
  %v3325 = vpop.permute.xlu0 %3324
  %3328 = vset.pattern.permute.xlu0 0
  %3329 = vperm.xlu0 %3328, %v3199
  %v3330 = vpop.permute.xlu0 %3329
  %3333 = vset.pattern.permute.xlu0 0
  %3334 = vperm.xlu0 %3333, %v3200
  %v3335 = vpop.permute.xlu0 %3334
  %3338 = vset.pattern.permute.xlu0 0
  %3339 = vperm.xlu0 %3338, %v3201
  %v3340 = vpop.permute.xlu0 %3339
  %3343 = vset.pattern.permute.xlu0 0
  %3344 = vperm.xlu0 %3343, %v3202
  %v3345 = vpop.permute.xlu0 %3344
  %3348 = vset.pattern.permute.xlu0 0
  %3349 = vperm.xlu0 %3348, %v3203
  %v3350 = vpop.permute.xlu0 %3349
  %3353 = vset.pattern.permute.xlu0 0
  %3354 = vperm.xlu0 %3353, %v3204
  %v3355 = vpop.permute.xlu0 %3354
  %3358 = vset.pattern.permute.xlu0 0
  %3359 = vperm.xlu0 %3358, %v3205
  %v3360 = vpop.permute.xlu0 %3359
  %3363 = vset.pattern.permute.xlu0 0
  %3364 = vperm.xlu0 %3363, %v3206
  %v3365 = vpop.permute.xlu0 %3364
  %3368 = vset.pattern.permute.xlu0 0
  %3369 = vperm.xlu0 %3368, %v3207
  %v3370 = vpop.permute.xlu0 %3369
  %3373 = vset.pattern.permute.xlu0 0
  %3374 = vperm.xlu0 %3373, %v3208
  %v3375 = vpop.permute.xlu0 %3374
  %3378 = vset.pattern.permute.xlu0 0
  %3379 = vperm.xlu0 %3378, %v3209
  %v3380 = vpop.permute.xlu0 %3379
  %3383 = vset.pattern.permute.xlu0 0
  %3384 = vperm.xlu0 %3383, %v3210
  %v3385 = vpop.permute.xlu0 %3384
  %3388 = vset.pattern.permute.xlu0 0
  %3389 = vperm.xlu0 %3388, %v3211
  %v3390 = vpop.permute.xlu0 %3389
  %3393 = vset.pattern.permute.xlu0 0
  %3394 = vperm.xlu0 %3393, %v3212
  %v3395 = vpop.permute.xlu0 %3394
  %3398 = vset.pattern.permute.xlu0 0
  %3399 = vperm.xlu0 %3398, %v3213
  %v3400 = vpop.permute.xlu0 %3399
  %3403 = vset.pattern.permute.xlu0 0
  %3404 = vperm.xlu0 %3403, %v3214
  %v3405 = vpop.permute.xlu0 %3404
  %3408 = vset.pattern.permute.xlu0 0
  %3409 = vperm.xlu0 %3408, %v3215
  %v3410 = vpop.permute.xlu0 %3409
  %3413 = vset.pattern.permute.xlu0 0
  %3414 = vperm.xlu0 %3413, %v3216
  %v3415 = vpop.permute.xlu0 %3414
  %3418 = vset.pattern.permute.xlu0 0
  %3419 = vperm.xlu0 %3418, %v3217
  %v3420 = vpop.permute.xlu0 %3419
  %3423 = vset.pattern.permute.xlu0 0
  %3424 = vperm.xlu0 %3423, %v3218
  %v3425 = vpop.permute.xlu0 %3424
  %3428 = vset.pattern.permute.xlu0 0
  %3429 = vperm.xlu0 %3428, %v3219
  %v3430 = vpop.permute.xlu0 %3429
  %3433 = vset.pattern.permute.xlu0 0
  %3434 = vperm.xlu0 %3433, %v3220
  %v3435 = vpop.permute.xlu0 %3434
  %3438 = vset.pattern.permute.xlu0 0
  %3439 = vperm.xlu0 %3438, %v3221
  %v3440 = vpop.permute.xlu0 %3439
  %3443 = vset.pattern.permute.xlu0 0
  %3444 = vperm.xlu0 %3443, %v3222
  %v3445 = vpop.permute.xlu0 %3444
  %3448 = vset.pattern.permute.xlu0 0
  %3449 = vperm.xlu0 %3448, %v3223
  %v3450 = vpop.permute.xlu0 %3449
  %3453 = vset.pattern.permute.xlu0 0
  %3454 = vperm.xlu0 %3453, %v3224
  %v3455 = vpop.permute.xlu0 %3454
  %3458 = vset.pattern.permute.xlu0 0
  %3459 = vperm.xlu0 %3458, %v3225
  %v3460 = vpop.permute.xlu0 %3459
  %3463 = vset.pattern.permute.xlu0 0
  %3464 = vperm.xlu0 %3463, %v3226
  %v3465 = vpop.permute.xlu0 %3464
  %3468 = vset.pattern.permute.xlu0 0
  %3469 = vperm.xlu0 %3468, %v3227
  %v3470 = vpop.permute.xlu0 %3469
  %3473 = vset.pattern.permute.xlu0 0
  %3474 = vperm.xlu0 %3473, %v3228
  %v3475 = vpop.permute.xlu0 %3474
  %3478 = vset.pattern.permute.xlu0 0
  %3479 = vperm.xlu0 %3478, %v3229
  %v3480 = vpop.permute.xlu0 %3479
  %3483 = vset.pattern.permute.xlu0 0
  %3484 = vperm.xlu0 %3483, %v3230
  %v3485 = vpop.permute.xlu0 %3484
  %3488 = vset.pattern.permute.xlu0 0
  %3489 = vperm.xlu0 %3488, %v3231
  %v3490 = vpop.permute.xlu0 %3489
  %3493 = vset.pattern.permute.xlu0 0
  %3494 = vperm.xlu0 %3493, %v3232
  %v3495 = vpop.permute.xlu0 %3494
  %3498 = vset.pattern.permute.xlu0 0
  %3499 = vperm.xlu0 %3498, %v3233
  %v3500 = vpop.permute.xlu0 %3499
  %3503 = vset.pattern.permute.xlu0 0
  %3504 = vperm.xlu0 %3503, %v3234
  %v3505 = vpop.permute.xlu0 %3504
  %3508 = vset.pattern.permute.xlu0 0
  %3509 = vperm.xlu0 %3508, %v3235
  %v3510 = vpop.permute.xlu0 %3509
  %3513 = vset.pattern.permute.xlu0 0
  %3514 = vperm.xlu0 %3513, %v3236
  %v3515 = vpop.permute.xlu0 %3514
  %3518 = vset.pattern.permute.xlu0 0
  %3519 = vperm.xlu0 %3518, %v3237
  %v3520 = vpop.permute.xlu0 %3519
  %3523 = vset.pattern.permute.xlu0 0
  %3524 = vperm.xlu0 %3523, %v3238
  %v3525 = vpop.permute.xlu0 %3524
  %3528 = vset.pattern.permute.xlu0 0
  %3529 = vperm.xlu0 %3528, %v3239
  %v3530 = vpop.permute.xlu0 %3529
  %3533 = vset.pattern.permute.xlu0 0
  %3534 = vperm.xlu0 %3533, %v3240
  %v3535 = vpop.permute.xlu0 %3534
  %3538 = vset.pattern.permute.xlu0 0
  %3539 = vperm.xlu0 %3538, %v3241
  %v3540 = vpop.permute.xlu0 %3539
  %3543 = vset.pattern.permute.xlu0 0
  %3544 = vperm.xlu0 %3543, %v3242
  %v3545 = vpop.permute.xlu0 %3544
  %3548 = vset.pattern.permute.xlu0 0
  %3549 = vperm.xlu0 %3548, %v3243
  %v3550 = vpop.permute.xlu0 %3549
  %3553 = vset.pattern.permute.xlu0 0
  %3554 = vperm.xlu0 %3553, %v3244
  %v3555 = vpop.permute.xlu0 %3554
  %3558 = vset.pattern.permute.xlu0 0
  %3559 = vperm.xlu0 %3558, %v3245
  %v3560 = vpop.permute.xlu0 %3559
  %3563 = vset.pattern.permute.xlu0 0
  %3564 = vperm.xlu0 %3563, %v3246
  %v3565 = vpop.permute.xlu0 %3564
  %v3567 = vmul.f32 %v3055, %v3250
  %v3568 = vmul.f32 %v3056, %v3255
  %v3569 = vmul.f32 %v3057, %v3260
  %v3570 = vmul.f32 %v3058, %v3265
  %v3571 = vmul.f32 %v3059, %v3270
  %v3572 = vmul.f32 %v3060, %v3275
  %v3573 = vmul.f32 %v3061, %v3280
  %v3574 = vmul.f32 %v3062, %v3285
  %v3575 = vmul.f32 %v3063, %v3290
  %v3576 = vmul.f32 %v3064, %v3295
  %v3577 = vmul.f32 %v3065, %v3300
  %v3578 = vmul.f32 %v3066, %v3305
  %v3579 = vmul.f32 %v3067, %v3310
  %v3580 = vmul.f32 %v3068, %v3315
  %v3581 = vmul.f32 %v3069, %v3320
  %v3582 = vmul.f32 %v3070, %v3325
  %v3583 = vmul.f32 %v3071, %v3330
  %v3584 = vmul.f32 %v3072, %v3335
  %v3585 = vmul.f32 %v3073, %v3340
  %v3586 = vmul.f32 %v3074, %v3345
  %v3587 = vmul.f32 %v3075, %v3350
  %v3588 = vmul.f32 %v3076, %v3355
  %v3589 = vmul.f32 %v3077, %v3360
  %v3590 = vmul.f32 %v3078, %v3365
  %v3591 = vmul.f32 %v3079, %v3370
  %v3592 = vmul.f32 %v3080, %v3375
  %v3593 = vmul.f32 %v3081, %v3380
  %v3594 = vmul.f32 %v3082, %v3385
  %v3595 = vmul.f32 %v3083, %v3390
  %v3596 = vmul.f32 %v3084, %v3395
  %v3597 = vmul.f32 %v3085, %v3400
  %v3598 = vmul.f32 %v3086, %v3405
  %v3599 = vmul.f32 %v3087, %v3410
  %v3600 = vmul.f32 %v3088, %v3415
  %v3601 = vmul.f32 %v3089, %v3420
  %v3602 = vmul.f32 %v3090, %v3425
  %v3603 = vmul.f32 %v3091, %v3430
  %v3604 = vmul.f32 %v3092, %v3435
  %v3605 = vmul.f32 %v3093, %v3440
  %v3606 = vmul.f32 %v3094, %v3445
  %v3607 = vmul.f32 %v3095, %v3450
  %v3608 = vmul.f32 %v3096, %v3455
  %v3609 = vmul.f32 %v3097, %v3460
  %v3610 = vmul.f32 %v3098, %v3465
  %v3611 = vmul.f32 %v3099, %v3470
  %v3612 = vmul.f32 %v3100, %v3475
  %v3613 = vmul.f32 %v3101, %v3480
  %v3614 = vmul.f32 %v3102, %v3485
  %v3615 = vmul.f32 %v3103, %v3490
  %v3616 = vmul.f32 %v3104, %v3495
  %v3617 = vmul.f32 %v3105, %v3500
  %v3618 = vmul.f32 %v3106, %v3505
  %v3619 = vmul.f32 %v3107, %v3510
  %v3620 = vmul.f32 %v3108, %v3515
  %v3621 = vmul.f32 %v3109, %v3520
  %v3622 = vmul.f32 %v3110, %v3525
  %v3623 = vmul.f32 %v3111, %v3530
  %v3624 = vmul.f32 %v3112, %v3535
  %v3625 = vmul.f32 %v3113, %v3540
  %v3626 = vmul.f32 %v3114, %v3545
  %v3627 = vmul.f32 %v3115, %v3550
  %v3628 = vmul.f32 %v3116, %v3555
  %v3629 = vmul.f32 %v3117, %v3560
  %v3630 = vmul.f32 %v3118, %v3565
  %v3631 = vpack.c.bf16 %v3568, %v3567
  %v3632 = vpack.c.bf16 %v3570, %v3569
  %v3633 = vpack.c.bf16 %v3572, %v3571
  %v3634 = vpack.c.bf16 %v3574, %v3573
  %v3635 = vpack.c.bf16 %v3576, %v3575
  %v3636 = vpack.c.bf16 %v3578, %v3577
  %v3637 = vpack.c.bf16 %v3580, %v3579
  %v3638 = vpack.c.bf16 %v3582, %v3581
  %v3639 = vpack.c.bf16 %v3584, %v3583
  %v3640 = vpack.c.bf16 %v3586, %v3585
  %v3641 = vpack.c.bf16 %v3588, %v3587
  %v3642 = vpack.c.bf16 %v3590, %v3589
  %v3643 = vpack.c.bf16 %v3592, %v3591
  %v3644 = vpack.c.bf16 %v3594, %v3593
  %v3645 = vpack.c.bf16 %v3596, %v3595
  %v3646 = vpack.c.bf16 %v3598, %v3597
  %v3647 = vpack.c.bf16 %v3600, %v3599
  %v3648 = vpack.c.bf16 %v3602, %v3601
  %v3649 = vpack.c.bf16 %v3604, %v3603
  %v3650 = vpack.c.bf16 %v3606, %v3605
  %v3651 = vpack.c.bf16 %v3608, %v3607
  %v3652 = vpack.c.bf16 %v3610, %v3609
  %v3653 = vpack.c.bf16 %v3612, %v3611
  %v3654 = vpack.c.bf16 %v3614, %v3613
  %v3655 = vpack.c.bf16 %v3616, %v3615
  %v3656 = vpack.c.bf16 %v3618, %v3617
  %v3657 = vpack.c.bf16 %v3620, %v3619
  %v3658 = vpack.c.bf16 %v3622, %v3621
  %v3659 = vpack.c.bf16 %v3624, %v3623
  %v3660 = vpack.c.bf16 %v3626, %v3625
  %v3661 = vpack.c.bf16 %v3628, %v3627
  %v3662 = vpack.c.bf16 %v3630, %v3629
  %v3695 = vunpack.c.l.b16 %v3631
  %v3696 = vunpack.c.h.b16 %v3631
  %v3697 = vunpack.c.l.b16 %v3632
  %v3698 = vunpack.c.h.b16 %v3632
  %v3699 = vunpack.c.l.b16 %v3633
  %v3700 = vunpack.c.h.b16 %v3633
  %v3701 = vunpack.c.l.b16 %v3634
  %v3702 = vunpack.c.h.b16 %v3634
  %v3703 = vunpack.c.l.b16 %v3635
  %v3704 = vunpack.c.h.b16 %v3635
  %v3705 = vunpack.c.l.b16 %v3636
  %v3706 = vunpack.c.h.b16 %v3636
  %v3707 = vunpack.c.l.b16 %v3637
  %v3708 = vunpack.c.h.b16 %v3637
  %v3709 = vunpack.c.l.b16 %v3638
  %v3710 = vunpack.c.h.b16 %v3638
  %v3711 = vunpack.c.l.b16 %v3639
  %v3712 = vunpack.c.h.b16 %v3639
  %v3713 = vunpack.c.l.b16 %v3640
  %v3714 = vunpack.c.h.b16 %v3640
  %v3715 = vunpack.c.l.b16 %v3641
  %v3716 = vunpack.c.h.b16 %v3641
  %v3717 = vunpack.c.l.b16 %v3642
  %v3718 = vunpack.c.h.b16 %v3642
  %v3719 = vunpack.c.l.b16 %v3643
  %v3720 = vunpack.c.h.b16 %v3643
  %v3721 = vunpack.c.l.b16 %v3644
  %v3722 = vunpack.c.h.b16 %v3644
  %v3723 = vunpack.c.l.b16 %v3645
  %v3724 = vunpack.c.h.b16 %v3645
  %v3725 = vunpack.c.l.b16 %v3646
  %v3726 = vunpack.c.h.b16 %v3646
  %v3727 = vunpack.c.l.b16 %v3647
  %v3728 = vunpack.c.h.b16 %v3647
  %v3729 = vunpack.c.l.b16 %v3648
  %v3730 = vunpack.c.h.b16 %v3648
  %v3731 = vunpack.c.l.b16 %v3649
  %v3732 = vunpack.c.h.b16 %v3649
  %v3733 = vunpack.c.l.b16 %v3650
  %v3734 = vunpack.c.h.b16 %v3650
  %v3735 = vunpack.c.l.b16 %v3651
  %v3736 = vunpack.c.h.b16 %v3651
  %v3737 = vunpack.c.l.b16 %v3652
  %v3738 = vunpack.c.h.b16 %v3652
  %v3739 = vunpack.c.l.b16 %v3653
  %v3740 = vunpack.c.h.b16 %v3653
  %v3741 = vunpack.c.l.b16 %v3654
  %v3742 = vunpack.c.h.b16 %v3654
  %v3743 = vunpack.c.l.b16 %v3655
  %v3744 = vunpack.c.h.b16 %v3655
  %v3745 = vunpack.c.l.b16 %v3656
  %v3746 = vunpack.c.h.b16 %v3656
  %v3747 = vunpack.c.l.b16 %v3657
  %v3748 = vunpack.c.h.b16 %v3657
  %v3749 = vunpack.c.l.b16 %v3658
  %v3750 = vunpack.c.h.b16 %v3658
  %v3751 = vunpack.c.l.b16 %v3659
  %v3752 = vunpack.c.h.b16 %v3659
  %v3753 = vunpack.c.l.b16 %v3660
  %v3754 = vunpack.c.h.b16 %v3660
  %v3755 = vunpack.c.l.b16 %v3661
  %v3756 = vunpack.c.h.b16 %v3661
  %v3757 = vunpack.c.l.b16 %v3662
  %v3758 = vunpack.c.h.b16 %v3662
  %v3759 = vpack.c.b16 %v3695, %v3695
  %v3760 = vpack.c.b16 %v3696, %v3696
  %v3761 = vpack.c.b16 %v3697, %v3697
  %v3762 = vpack.c.b16 %v3698, %v3698
  %v3763 = vpack.c.b16 %v3699, %v3699
  %v3764 = vpack.c.b16 %v3700, %v3700
  %v3765 = vpack.c.b16 %v3701, %v3701
  %v3766 = vpack.c.b16 %v3702, %v3702
  %v3767 = vpack.c.b16 %v3703, %v3703
  %v3768 = vpack.c.b16 %v3704, %v3704
  %v3769 = vpack.c.b16 %v3705, %v3705
  %v3770 = vpack.c.b16 %v3706, %v3706
  %v3771 = vpack.c.b16 %v3707, %v3707
  %v3772 = vpack.c.b16 %v3708, %v3708
  %v3773 = vpack.c.b16 %v3709, %v3709
  %v3774 = vpack.c.b16 %v3710, %v3710
  %v3775 = vpack.c.b16 %v3711, %v3711
  %v3776 = vpack.c.b16 %v3712, %v3712
  %v3777 = vpack.c.b16 %v3713, %v3713
  %v3778 = vpack.c.b16 %v3714, %v3714
  %v3779 = vpack.c.b16 %v3715, %v3715
  %v3780 = vpack.c.b16 %v3716, %v3716
  %v3781 = vpack.c.b16 %v3717, %v3717
  %v3782 = vpack.c.b16 %v3718, %v3718
  %v3783 = vpack.c.b16 %v3719, %v3719
  %v3784 = vpack.c.b16 %v3720, %v3720
  %v3785 = vpack.c.b16 %v3721, %v3721
  %v3786 = vpack.c.b16 %v3722, %v3722
  %v3787 = vpack.c.b16 %v3723, %v3723
  %v3788 = vpack.c.b16 %v3724, %v3724
  %v3789 = vpack.c.b16 %v3725, %v3725
  %v3790 = vpack.c.b16 %v3726, %v3726
  %v3791 = vpack.c.b16 %v3727, %v3727
  %v3792 = vpack.c.b16 %v3728, %v3728
  %v3793 = vpack.c.b16 %v3729, %v3729
  %v3794 = vpack.c.b16 %v3730, %v3730
  %v3795 = vpack.c.b16 %v3731, %v3731
  %v3796 = vpack.c.b16 %v3732, %v3732
  %v3797 = vpack.c.b16 %v3733, %v3733
  %v3798 = vpack.c.b16 %v3734, %v3734
  %v3799 = vpack.c.b16 %v3735, %v3735
  %v3800 = vpack.c.b16 %v3736, %v3736
  %v3801 = vpack.c.b16 %v3737, %v3737
  %v3802 = vpack.c.b16 %v3738, %v3738
  %v3803 = vpack.c.b16 %v3739, %v3739
  %v3804 = vpack.c.b16 %v3740, %v3740
  %v3805 = vpack.c.b16 %v3741, %v3741
  %v3806 = vpack.c.b16 %v3742, %v3742
  %v3807 = vpack.c.b16 %v3743, %v3743
  %v3808 = vpack.c.b16 %v3744, %v3744
  %v3809 = vpack.c.b16 %v3745, %v3745
  %v3810 = vpack.c.b16 %v3746, %v3746
  %v3811 = vpack.c.b16 %v3747, %v3747
  %v3812 = vpack.c.b16 %v3748, %v3748
  %v3813 = vpack.c.b16 %v3749, %v3749
  %v3814 = vpack.c.b16 %v3750, %v3750
  %v3815 = vpack.c.b16 %v3751, %v3751
  %v3816 = vpack.c.b16 %v3752, %v3752
  %v3817 = vpack.c.b16 %v3753, %v3753
  %v3818 = vpack.c.b16 %v3754, %v3754
  %v3819 = vpack.c.b16 %v3755, %v3755
  %v3820 = vpack.c.b16 %v3756, %v3756
  %v3821 = vpack.c.b16 %v3757, %v3757
  %v3822 = vpack.c.b16 %v3758, %v3758
  %vm3887 = vcmask 257024
  %3888 = vst.msk [vmem:[%s8] sm:$0xf] %vm3887, %v3759
  %3889 = vst.msk [vmem:[%s8 + $0x4] sm:$0xf] %vm3887, %v3760
  %3890 = vst.msk [vmem:[%s8 + $0x8] sm:$0xf] %vm3887, %v3761
  %3891 = vst.msk [vmem:[%s8 + $0xc] sm:$0xf] %vm3887, %v3762
  %3892 = vst.msk [vmem:[%s8 + $0x10] sm:$0xf] %vm3887, %v3763
  %3893 = vst.msk [vmem:[%s8 + $0x14] sm:$0xf] %vm3887, %v3764
  %3894 = vst.msk [vmem:[%s8 + $0x18] sm:$0xf] %vm3887, %v3765
  %3895 = vst.msk [vmem:[%s8 + $0x1c] sm:$0xf] %vm3887, %v3766
  %3896 = vst.msk [vmem:[%s8 + $0x20] sm:$0xf] %vm3887, %v3767
  %3897 = vst.msk [vmem:[%s8 + $0x24] sm:$0xf] %vm3887, %v3768
  %3898 = vst.msk [vmem:[%s8 + $0x28] sm:$0xf] %vm3887, %v3769
  %3899 = vst.msk [vmem:[%s8 + $0x2c] sm:$0xf] %vm3887, %v3770
  %3900 = vst.msk [vmem:[%s8 + $0x30] sm:$0xf] %vm3887, %v3771
  %3901 = vst.msk [vmem:[%s8 + $0x34] sm:$0xf] %vm3887, %v3772
  %3902 = vst.msk [vmem:[%s8 + $0x38] sm:$0xf] %vm3887, %v3773
  %3903 = vst.msk [vmem:[%s8 + $0x3c] sm:$0xf] %vm3887, %v3774
  %3904 = vst.msk [vmem:[%s8 + $0x40] sm:$0xf] %vm3887, %v3775
  %3905 = vst.msk [vmem:[%s8 + $0x44] sm:$0xf] %vm3887, %v3776
  %3906 = vst.msk [vmem:[%s8 + $0x48] sm:$0xf] %vm3887, %v3777
  %3907 = vst.msk [vmem:[%s8 + $0x4c] sm:$0xf] %vm3887, %v3778
  %3908 = vst.msk [vmem:[%s8 + $0x50] sm:$0xf] %vm3887, %v3779
  %3909 = vst.msk [vmem:[%s8 + $0x54] sm:$0xf] %vm3887, %v3780
  %3910 = vst.msk [vmem:[%s8 + $0x58] sm:$0xf] %vm3887, %v3781
  %3911 = vst.msk [vmem:[%s8 + $0x5c] sm:$0xf] %vm3887, %v3782
  %3912 = vst.msk [vmem:[%s8 + $0x60] sm:$0xf] %vm3887, %v3783
  %3913 = vst.msk [vmem:[%s8 + $0x64] sm:$0xf] %vm3887, %v3784
  %3914 = vst.msk [vmem:[%s8 + $0x68] sm:$0xf] %vm3887, %v3785
  %3915 = vst.msk [vmem:[%s8 + $0x6c] sm:$0xf] %vm3887, %v3786
  %3916 = vst.msk [vmem:[%s8 + $0x70] sm:$0xf] %vm3887, %v3787
  %3917 = vst.msk [vmem:[%s8 + $0x74] sm:$0xf] %vm3887, %v3788
  %3918 = vst.msk [vmem:[%s8 + $0x78] sm:$0xf] %vm3887, %v3789
  %3919 = vst.msk [vmem:[%s8 + $0x7c] sm:$0xf] %vm3887, %v3790
  %3920 = vst.msk [vmem:[%s8 + $0x80] sm:$0xf] %vm3887, %v3791
  %3921 = vst.msk [vmem:[%s8 + $0x84] sm:$0xf] %vm3887, %v3792
  %3922 = vst.msk [vmem:[%s8 + $0x88] sm:$0xf] %vm3887, %v3793
  %3923 = vst.msk [vmem:[%s8 + $0x8c] sm:$0xf] %vm3887, %v3794
  %3924 = vst.msk [vmem:[%s8 + $0x90] sm:$0xf] %vm3887, %v3795
  %3925 = vst.msk [vmem:[%s8 + $0x94] sm:$0xf] %vm3887, %v3796
  %3926 = vst.msk [vmem:[%s8 + $0x98] sm:$0xf] %vm3887, %v3797
  %3927 = vst.msk [vmem:[%s8 + $0x9c] sm:$0xf] %vm3887, %v3798
  %3928 = vst.msk [vmem:[%s8 + $0xa0] sm:$0xf] %vm3887, %v3799
  %3929 = vst.msk [vmem:[%s8 + $0xa4] sm:$0xf] %vm3887, %v3800
  %3930 = vst.msk [vmem:[%s8 + $0xa8] sm:$0xf] %vm3887, %v3801
  %3931 = vst.msk [vmem:[%s8 + $0xac] sm:$0xf] %vm3887, %v3802
  %3932 = vst.msk [vmem:[%s8 + $0xb0] sm:$0xf] %vm3887, %v3803
  %3933 = vst.msk [vmem:[%s8 + $0xb4] sm:$0xf] %vm3887, %v3804
  %3934 = vst.msk [vmem:[%s8 + $0xb8] sm:$0xf] %vm3887, %v3805
  %3935 = vst.msk [vmem:[%s8 + $0xbc] sm:$0xf] %vm3887, %v3806
  %3936 = vst.msk [vmem:[%s8 + $0xc0] sm:$0xf] %vm3887, %v3807
  %3937 = vst.msk [vmem:[%s8 + $0xc4] sm:$0xf] %vm3887, %v3808
  %3938 = vst.msk [vmem:[%s8 + $0xc8] sm:$0xf] %vm3887, %v3809
  %3939 = vst.msk [vmem:[%s8 + $0xcc] sm:$0xf] %vm3887, %v3810
  %3940 = vst.msk [vmem:[%s8 + $0xd0] sm:$0xf] %vm3887, %v3811
  %3941 = vst.msk [vmem:[%s8 + $0xd4] sm:$0xf] %vm3887, %v3812
  %3942 = vst.msk [vmem:[%s8 + $0xd8] sm:$0xf] %vm3887, %v3813
  %3943 = vst.msk [vmem:[%s8 + $0xdc] sm:$0xf] %vm3887, %v3814
  %3944 = vst.msk [vmem:[%s8 + $0xe0] sm:$0xf] %vm3887, %v3815
  %3945 = vst.msk [vmem:[%s8 + $0xe4] sm:$0xf] %vm3887, %v3816
  %3946 = vst.msk [vmem:[%s8 + $0xe8] sm:$0xf] %vm3887, %v3817
  %3947 = vst.msk [vmem:[%s8 + $0xec] sm:$0xf] %vm3887, %v3818
  %3948 = vst.msk [vmem:[%s8 + $0xf0] sm:$0xf] %vm3887, %v3819
  %3949 = vst.msk [vmem:[%s8 + $0xf4] sm:$0xf] %vm3887, %v3820
  %3950 = vst.msk [vmem:[%s8 + $0xf8] sm:$0xf] %vm3887, %v3821
  %3951 = vst.msk [vmem:[%s8 + $0xfc] sm:$0xf] %vm3887, %v3822
  // Predicated region
  $region34: #{tpu_custom_call.1} parent=0 // pred_check
    _
  $region35: #{tpu_custom_call.1} parent=0 // pred_check_branch
    %3953 = sbr.rel (0) target = $region37
  $region36: #{tpu_custom_call.1} parent=0 // pred_region
    _
  $region37: #{tpu_custom_call.1} parent=0 // pred_fallthru
    _
  // Predicated region
  $region38: #{tpu_custom_call.1} parent=0 // pred_check
    _
  $region39: #{tpu_custom_call.1} parent=0 // pred_check_branch
    %3955 = sbr.rel (0) target = $region41
  $region40: #{tpu_custom_call.1} parent=0 // pred_region
    _
  $region41: #{tpu_custom_call.1} parent=0 // pred_fallthru
    _

</llo_original>
